<compile_context>
chip_gen: v6e
topology: v6e:2x2x1
jax: 0.10.0
libtpu: 0.0.40
codegen_flags: <defaults>
</compile_context>

<pallas_src>
import functools
import math

import jax
import jax.numpy as jnp
from jax.experimental import pallas as pl
from jax.experimental.pallas import tpu as pltpu


D_PAD = 128     # padded latent width  (lane-tile aligned, MXU-native K/N)
A_PAD = 128     # padded action width


# --------------------------- parameter preparation --------------------------- #

def init_params(key, obs_dim, latent_dim, action_dim, conv_channels=16):
    """Raw (PyTorch-layout) f32 parameters of the synthesized Encoder + actor."""
    C, H, W = obs_dim
    ks = jax.random.split(key, 12)

    def nrm(k, shape, scale):
        return (scale * jax.random.normal(k, shape)).astype(jnp.float32)

    D = latent_dim
    flat = conv_channels * (H // 4) * (W // 4)   # channels-last flatten of conv2 out
    return dict(
        conv1_w=nrm(ks[0], (conv_channels, C, 3, 3), 0.1),
        conv1_b=nrm(ks[1], (conv_channels,), 0.1),
        conv2_w=nrm(ks[2], (conv_channels, conv_channels, 3, 3), 0.1),
        conv2_b=nrm(ks[3], (conv_channels,), 0.1),
        fc_w=nrm(ks[4], (flat, D), 0.05),
        fc_b=nrm(ks[5], (D,), 0.1),
        # nn.GRUCell equivalents: gru_w_ih == torch weight_ih.T, gates [r, z, n].
        gru_w_ih=nrm(ks[6], (D, 3 * D), 0.1),
        gru_w_hh=nrm(ks[7], (D, 3 * D), 0.1),
        gru_b_ih=nrm(ks[8], (3 * D,), 0.1),
        gru_b_hh=nrm(ks[9], (3 * D,), 0.1),
        # SimpleActor, Discrete: hidden_depth=0 => Linear(2*embedding, action_dim)
        actor_w=nrm(ks[10], (2 * D, action_dim), 0.1),
        actor_b=nrm(ks[11], (action_dim,), 0.1),
    )


def _width_fold(w, in_w, stride, pad):
    """Fold only the WIDTH dim of a 3x3 conv into per-row-tap matrices.

    Returns ([M_0, M_1, M_2], out_w) with M_i of shape (in_w*Cin, out_w*Cout):
        M_i[(w, c), (q, o)] = w[o, c, i, j]  where  w == stride*q + j - pad
    One conv output row p is then  sum_i  X[input row 2p+i-1] @ M_i
    (the i == 0 term is dropped at p == 0, where input row -1 is zero padding;
    width padding is baked into the matrices).
    """
    cout, cin, kh, kw = w.shape
    out_w = (in_w + 2 * pad - kw) // stride + 1
    jj = jnp.arange(kw).reshape(kw, 1, 1)
    wi = jnp.arange(in_w).reshape(1, in_w, 1)
    qq = jnp.arange(out_w).reshape(1, 1, out_w)
    sel = (wi == stride * qq + jj - pad).astype(jnp.float32)   # (kw, in_w, out_w)
    mats = []
    for i in range(kh):
        m = jnp.einsum('jwq,ocj->wcqo', sel, w[:, :, i, :])
        mats.append(m.reshape(in_w * cin, out_w * cout))
    return mats, out_w


def prepare_params(raw, obs_dim, latent_dim, action_dim):
    """One-time fold / pad / cast into kernel-friendly slabs (outside hot path)."""
    C, H, W = obs_dim
    D, A = latent_dim, action_dim
    bf, f32 = jnp.bfloat16, jnp.float32

    m1, w1 = _width_fold(raw['conv1_w'], W, 2, 1)
    m2, w2 = _width_fold(raw['conv2_w'], w1, 2, 1)

    # fc: rows follow the channels-last (p, q, c) flatten; cols padded to D_PAD.
    fc_w = jnp.zeros((raw['fc_w'].shape[0], D_PAD), f32).at[:, :D].set(raw['fc_w'])
    fc_b = jnp.zeros((1, D_PAD), f32).at[0, :D].set(raw['fc_b'])

    def pad_gru_w(wm):
        out = jnp.zeros((D_PAD, 3 * D_PAD), f32)
        for g in range(3):                          # place each gate at a 128-aligned offset
            out = out.at[:D, g * D_PAD:g * D_PAD + D].set(wm[:, g * D:(g + 1) * D])
        return out

    def pad_gru_b(b):
        out = jnp.zeros((1, 3 * D_PAD), f32)
        for g in range(3):
            out = out.at[0, g * D_PAD:g * D_PAD + D].set(b[g * D:(g + 1) * D])
        return out

    aw_t = jnp.zeros((D_PAD, A_PAD), f32).at[:D, :A].set(raw['actor_w'][:D])
    aw_t1 = jnp.zeros((D_PAD, A_PAD), f32).at[:D, :A].set(raw['actor_w'][D:])

    return dict(
        conv1_m=jnp.stack(m1).astype(bf),                                   # (3, W*C,  W1*C1)
        conv1_b=jnp.tile(raw['conv1_b'], w1).reshape(1, -1).astype(f32),    # (1, W1*C1) order (q, o)
        conv2_m=jnp.stack(m2).astype(bf),                                   # (3, W1*C1, W2*C2)
        conv2_b=jnp.tile(raw['conv2_b'], w2).reshape(1, -1).astype(f32),
        fc_w=fc_w.astype(bf),
        fc_b=fc_b,
        gru_w_ih=pad_gru_w(raw['gru_w_ih']).astype(bf),
        gru_w_hh=pad_gru_w(raw['gru_w_hh']).astype(bf),
        gru_b_ih=pad_gru_b(raw['gru_b_ih']),
        gru_b_hh=pad_gru_b(raw['gru_b_hh']),
        actor_w_t=aw_t.astype(bf),
        actor_w_t1=aw_t1.astype(bf),
        actor_b=jnp.zeros((1, A_PAD), f32).at[0, :A].set(raw['actor_b']),
    )


# ------------------------------ fused Pallas kernel -------------------------- #

def _fused_forward_kernel(x_ref, c1m_ref, c1b_ref, c2m_ref, c2b_ref,
                          fcw_ref, fcb_ref, wih_ref, whh_ref, bih_ref, bhh_ref,
                          mem0_ref, mask_ref, awt_ref, awt1_ref, ab_ref,
                          out_ref, *, n_obs, h1, h2):
    f32, bf16 = jnp.float32, jnp.bfloat16

    def conv_layer(in_rows, m_ref, b_ref, h_out):
        # stride-2 / pad-1 / 3x3 conv as per-output-row, per-row-tap matmuls.
        m0, m1, m2 = m_ref[0], m_ref[1], m_ref[2]
        b = b_ref[...]
        outs = []
        for p in range(h_out):                       # static unrolled loop
            acc = jnp.dot(in_rows[2 * p], m1, preferred_element_type=f32)
            acc = acc + jnp.dot(in_rows[2 * p + 1], m2, preferred_element_type=f32)
            if p > 0:                                # p == 0: input row -1 is zero padding
                acc = acc + jnp.dot(in_rows[2 * p - 1], m0, preferred_element_type=f32)
            outs.append(jnp.maximum(acc + b, 0.0).astype(bf16))
        return outs

    # conv1 -> conv2 on the stacked [obs ; next_obs] batch, all in VMEM/vregs.
    x_rows = [x_ref[h] for h in range(2 * h1)]       # each (N, W*C) bf16
    c1 = conv_layer(x_rows, c1m_ref, c1b_ref, h1)    # h1 x (N, W1*C1)
    c2 = conv_layer(c1, c2m_ref, c2b_ref, h2)        # h2 x (N, W2*C2)

    # fc over the (h2, W2*C2) channels-last flatten, fc_w row blocks sliced statically.
    l2 = c2[0].shape[-1]
    emb = fcb_ref[...]
    for u in range(h2):
        emb = emb + jnp.dot(c2[u], fcw_ref[u * l2:(u + 1) * l2, :],
                            preferred_element_type=f32)
    emb = jnp.maximum(emb, 0.0)                      # (2*n_obs, D_PAD) f32

    # GRU: input-side gate matmul hoisted over the full stacked batch; only the
    # h-side matmul stays on the sequential path.  Gate slices are 128-aligned.
    gi_all = (jnp.dot(emb.astype(bf16), wih_ref[...], preferred_element_type=f32)
              + bih_ref[...])
    whh = whh_ref[...]
    bhh = bhh_ref[...]

    def gru(gi, h):                                  # nn.GRUCell semantics, gates [r, z, n]
        gh = jnp.dot(h.astype(bf16), whh, preferred_element_type=f32) + bhh
        r = jax.nn.sigmoid(gi[:, 0:D_PAD] + gh[:, 0:D_PAD])
        z = jax.nn.sigmoid(gi[:, D_PAD:2 * D_PAD] + gh[:, D_PAD:2 * D_PAD])
        n = jnp.tanh(gi[:, 2 * D_PAD:3 * D_PAD] + r * gh[:, 2 * D_PAD:3 * D_PAD])
        return (1.0 - z) * n + z * h                 # carried in f32

    mem = gru(gi_all[:n_obs], mem0_ref[...])         # x_t == new memory
    nmem = gru(gi_all[n_obs:], mem * mask_ref[...])  # x_t1 == next memory

    # inverse_model(cat(x_t, x_t1)) == x_t @ W[:D] + x_t1 @ W[D:] + b
    logits = (jnp.dot(mem.astype(bf16), awt_ref[...], preferred_element_type=f32)
              + jnp.dot(nmem.astype(bf16), awt1_ref[...], preferred_element_type=f32)
              + ab_ref[...])

    # single lane-dense output slab [logits | mem | nmem]; 128-aligned stores.
    out_ref[:, 0:A_PAD] = logits
    out_ref[:, A_PAD:A_PAD + D_PAD] = mem
    out_ref[:, A_PAD + D_PAD:A_PAD + 2 * D_PAD] = nmem


def _full_spec(shape):
    return pl.BlockSpec(shape, lambda i: (0,) * len(shape))


def fused_forward(prepared, x, mem0, mask):
    """One pallas_call running conv1 -> conv2 -> fc -> GRU(obs) -> GRU(next_obs) -> actor."""
    h_in, n_all, _ = x.shape
    n_obs = n_all // 2
    h1, h2 = h_in // 2, h_in // 4

    inputs = (x,
              prepared['conv1_m'], prepared['conv1_b'],
              prepared['conv2_m'], prepared['conv2_b'],
              prepared['fc_w'], prepared['fc_b'],
              prepared['gru_w_ih'], prepared['gru_w_hh'],
              prepared['gru_b_ih'], prepared['gru_b_hh'],
              mem0, mask,
              prepared['actor_w_t'], prepared['actor_w_t1'], prepared['actor_b'])

    out_shape = jax.ShapeDtypeStruct((n_obs, A_PAD + 2 * D_PAD), jnp.float32)

    # VMEM budget from the actual slab sizes (double-buffered full blocks + slack).
    in_bytes = sum(int(math.prod(a.shape)) * a.dtype.itemsize for a in inputs)
    out_bytes = int(math.prod(out_shape.shape)) * 4
    vmem_limit = int(min(2 * (in_bytes + out_bytes) + (4 << 20), 64 << 20))

    return pl.pallas_call(
        functools.partial(_fused_forward_kernel, n_obs=n_obs, h1=h1, h2=h2),
        out_shape=out_shape,
        grid=(1,),
        in_specs=[_full_spec(a.shape) for a in inputs],
        out_specs=_full_spec(out_shape.shape),
        compiler_params=pltpu.CompilerParams(
            dimension_semantics=("arbitrary",),
            vmem_limit_bytes=vmem_limit),
    )(*inputs)


# ------------------------------- model forward ------------------------------- #

def inverse_transition_forward(prepared, obs, next_obs, memory=None, next_memory_mask=None,
                               *, latent_dim, action_dim):
    """InverseTransitionModel.forward, action_type == 'Discrete'."""
    B, C, H, W = obs.shape
    b_pad = max(8, ((B + 7) // 8) * 8)               # sublane-tile aligned batch halves
    if memory is None:
        memory = jnp.zeros((B, latent_dim), jnp.float32)
    if next_memory_mask is None:
        next_memory_mask = jnp.ones((B, 1), jnp.float32)

    def pad_rows(a, n):
        return jnp.pad(a, ((0, n - a.shape[0]),) + ((0, 0),) * (a.ndim - 1))

    # obs and next_obs share the memory-independent conv/FC stack -> stack them
    # along the sample axis.  Layout (H, sample, W*C) so every conv row access in
    # the kernel is a static, sublane-aligned slice (no strided gathers).
    x = jnp.concatenate([pad_rows(obs, b_pad), pad_rows(next_obs, b_pad)], axis=0)
    x = jnp.transpose(x, (2, 0, 3, 1)).reshape(H, 2 * b_pad, W * C).astype(jnp.bfloat16)

    mem0 = (jnp.zeros((b_pad, D_PAD), jnp.float32)
            .at[:B, :latent_dim].set(memory.astype(jnp.float32)))
    mask = (jnp.ones((b_pad, 1), jnp.float32)
            .at[:B, :].set(next_memory_mask.astype(jnp.float32)))
    mask = jnp.tile(mask, (1, D_PAD))

    slab = fused_forward(prepared, x, mem0, mask)
    logits = slab[:B, :action_dim]
    mem = slab[:B, A_PAD:A_PAD + latent_dim]
    nmem = slab[:B, A_PAD + D_PAD:A_PAD + D_PAD + latent_dim]
    return logits, mem, nmem


# ---------------------------- pure-JAX reference ----------------------------- #

def reference_forward(raw, obs, next_obs, memory, next_memory_mask):
    def conv(x, w, b):
        y = jax.lax.conv_general_dilated(
            x, w, window_strides=(2, 2), padding=((1, 1), (1, 1)),
            dimension_numbers=('NCHW', 'OIHW', 'NCHW'))
        return jnp.maximum(y + b.reshape(1, -1, 1, 1), 0.0)

    D = raw['gru_w_hh'].shape[0]

    def encode(x, mem):
        h = conv(x, raw['conv1_w'], raw['conv1_b'])
        h = conv(h, raw['conv2_w'], raw['conv2_b'])
        flat = h.transpose(0, 2, 3, 1).reshape(x.shape[0], -1)   # channels-last flatten
        emb = jnp.maximum(flat @ raw['fc_w'] + raw['fc_b'], 0.0)
        gi = emb @ raw['gru_w_ih'] + raw['gru_b_ih']
        gh = mem @ raw['gru_w_hh'] + raw['gru_b_hh']
        r = jax.nn.sigmoid(gi[:, :D] + gh[:, :D])
        z = jax.nn.sigmoid(gi[:, D:2 * D] + gh[:, D:2 * D])
        n = jnp.tanh(gi[:, 2 * D:] + r * gh[:, 2 * D:])
        new_mem = (1.0 - z) * n + z * mem
        return new_mem, new_mem

    x_t, mem = encode(obs, memory)
    x_t1, next_mem = encode(next_obs, mem * next_memory_mask)
    x = jnp.concatenate([x_t, x_t1], axis=1)
    logits = x @ raw['actor_w'] + raw['actor_b']
    return logits, mem, next_mem


# ----------------------------------- main ------------------------------------ #

if __name__ == "__main__":
    key = jax.random.PRNGKey(0)
    k_obs, k_next, k_param = jax.random.split(key, 3)

    B, C, H, W = 2, 4, 16, 16
    latent_dim, action_dim = 32, 6

    obs = jax.random.normal(k_obs, (B, C, H, W), jnp.float32)
    next_obs = jax.random.normal(k_next, (B, C, H, W), jnp.float32)
    memory0 = jnp.zeros((B, latent_dim), jnp.float32)
    next_memory_mask = jnp.ones((B, 1), jnp.float32)

    raw = init_params(k_param, (C, H, W), latent_dim, action_dim)
    prepared = prepare_params(raw, (C, H, W), latent_dim, action_dim)   # one-time folding

    fwd = jax.jit(functools.partial(inverse_transition_forward,
                                    latent_dim=latent_dim, action_dim=action_dim))
    logits, memory, next_memory = fwd(prepared, obs, next_obs, memory0, next_memory_mask)
    jax.block_until_ready((logits, memory, next_memory))

    assert logits.shape == (B, action_dim)
    assert memory.shape == (B, latent_dim)
    assert next_memory.shape == (B, latent_dim)

    # Check against a pure-f32 JAX reference.  The kernel uses bf16 matmul inputs
    # with f32 accumulation, which bounds the deviation to ~1e-3 at these value
    # magnitudes; 2e-2 keeps margin while being far tighter than the previous 1e-1.
    ref_logits, ref_mem, ref_nmem = reference_forward(
        raw, obs, next_obs, memory0, next_memory_mask)
    assert jnp.allclose(logits, ref_logits, atol=2e-2, rtol=2e-2)
    assert jnp.allclose(memory, ref_mem, atol=2e-2, rtol=2e-2)
    assert jnp.allclose(next_memory, ref_nmem, atol=2e-2, rtol=2e-2)

    print("KERNEL_OK")
</pallas_src>

<mosaic_0001>
module attributes {stable_mosaic.version = 11 : i64} {
  func.func @_fused_forward_kernel(%arg0: i32, %arg1: memref<16x16x64xbf16, #tpu.memory_space<vmem>>, %arg2: memref<3x64x128xbf16, #tpu.memory_space<vmem>>, %arg3: memref<1x128xf32, #tpu.memory_space<vmem>>, %arg4: memref<3x128x64xbf16, #tpu.memory_space<vmem>>, %arg5: memref<1x64xf32, #tpu.memory_space<vmem>>, %arg6: memref<256x128xbf16, #tpu.memory_space<vmem>>, %arg7: memref<1x128xf32, #tpu.memory_space<vmem>>, %arg8: memref<128x384xbf16, #tpu.memory_space<vmem>>, %arg9: memref<128x384xbf16, #tpu.memory_space<vmem>>, %arg10: memref<1x384xf32, #tpu.memory_space<vmem>>, %arg11: memref<1x384xf32, #tpu.memory_space<vmem>>, %arg12: memref<8x128xf32, #tpu.memory_space<vmem>>, %arg13: memref<8x128xf32, #tpu.memory_space<vmem>>, %arg14: memref<128x128xbf16, #tpu.memory_space<vmem>>, %arg15: memref<128x128xbf16, #tpu.memory_space<vmem>>, %arg16: memref<1x128xf32, #tpu.memory_space<vmem>>, %arg17: memref<8x384xf32, #tpu.memory_space<vmem>>) attributes {dimension_semantics = [#tpu.dimension_semantics<arbitrary>], iteration_bounds = array<i64: 1>, scalar_prefetch = 0 : i64, scratch_operands = 0 : i64, tpu.core_type = #tpu.core_type<tc>, window_params = [{pipeline_mode = #tpu.pipeline_mode<synchronous>, transform_indices = @transform_0, window_bounds = array<i64: 16, 16, 64>}, {pipeline_mode = #tpu.pipeline_mode<synchronous>, transform_indices = @transform_1, window_bounds = array<i64: 3, 64, 128>}, {pipeline_mode = #tpu.pipeline_mode<synchronous>, transform_indices = @transform_2, window_bounds = array<i64: 1, 128>}, {pipeline_mode = #tpu.pipeline_mode<synchronous>, transform_indices = @transform_3, window_bounds = array<i64: 3, 128, 64>}, {pipeline_mode = #tpu.pipeline_mode<synchronous>, transform_indices = @transform_4, window_bounds = array<i64: 1, 64>}, {pipeline_mode = #tpu.pipeline_mode<synchronous>, transform_indices = @transform_5, window_bounds = array<i64: 256, 128>}, {pipeline_mode = #tpu.pipeline_mode<synchronous>, transform_indices = @transform_6, window_bounds = array<i64: 1, 128>}, {pipeline_mode = #tpu.pipeline_mode<synchronous>, transform_indices = @transform_7, window_bounds = array<i64: 128, 384>}, {pipeline_mode = #tpu.pipeline_mode<synchronous>, transform_indices = @transform_8, window_bounds = array<i64: 128, 384>}, {pipeline_mode = #tpu.pipeline_mode<synchronous>, transform_indices = @transform_9, window_bounds = array<i64: 1, 384>}, {pipeline_mode = #tpu.pipeline_mode<synchronous>, transform_indices = @transform_10, window_bounds = array<i64: 1, 384>}, {pipeline_mode = #tpu.pipeline_mode<synchronous>, transform_indices = @transform_11, window_bounds = array<i64: 8, 128>}, {pipeline_mode = #tpu.pipeline_mode<synchronous>, transform_indices = @transform_12, window_bounds = array<i64: 8, 128>}, {pipeline_mode = #tpu.pipeline_mode<synchronous>, transform_indices = @transform_13, window_bounds = array<i64: 128, 128>}, {pipeline_mode = #tpu.pipeline_mode<synchronous>, transform_indices = @transform_14, window_bounds = array<i64: 128, 128>}, {pipeline_mode = #tpu.pipeline_mode<synchronous>, transform_indices = @transform_15, window_bounds = array<i64: 1, 128>}, {pipeline_mode = #tpu.pipeline_mode<synchronous>, transform_indices = @transform_16, window_bounds = array<i64: 8, 384>}]} {
    %c0 = arith.constant 0 : index
    %c0_0 = arith.constant 0 : index
    %c0_1 = arith.constant 0 : index
    %0 = vector.load %arg1[%c0, %c0_0, %c0_1] : memref<16x16x64xbf16, #tpu.memory_space<vmem>>, vector<1x16x64xbf16>
    %1 = vector.shape_cast %0 : vector<1x16x64xbf16> to vector<16x64xbf16>
    %c1 = arith.constant 1 : index
    %c0_2 = arith.constant 0 : index
    %c0_3 = arith.constant 0 : index
    %2 = vector.load %arg1[%c1, %c0_2, %c0_3] : memref<16x16x64xbf16, #tpu.memory_space<vmem>>, vector<1x16x64xbf16>
    %3 = vector.shape_cast %2 : vector<1x16x64xbf16> to vector<16x64xbf16>
    %c2 = arith.constant 2 : index
    %c0_4 = arith.constant 0 : index
    %c0_5 = arith.constant 0 : index
    %4 = vector.load %arg1[%c2, %c0_4, %c0_5] : memref<16x16x64xbf16, #tpu.memory_space<vmem>>, vector<1x16x64xbf16>
    %5 = vector.shape_cast %4 : vector<1x16x64xbf16> to vector<16x64xbf16>
    %c3 = arith.constant 3 : index
    %c0_6 = arith.constant 0 : index
    %c0_7 = arith.constant 0 : index
    %6 = vector.load %arg1[%c3, %c0_6, %c0_7] : memref<16x16x64xbf16, #tpu.memory_space<vmem>>, vector<1x16x64xbf16>
    %7 = vector.shape_cast %6 : vector<1x16x64xbf16> to vector<16x64xbf16>
    %c4 = arith.constant 4 : index
    %c0_8 = arith.constant 0 : index
    %c0_9 = arith.constant 0 : index
    %8 = vector.load %arg1[%c4, %c0_8, %c0_9] : memref<16x16x64xbf16, #tpu.memory_space<vmem>>, vector<1x16x64xbf16>
    %9 = vector.shape_cast %8 : vector<1x16x64xbf16> to vector<16x64xbf16>
    %c5 = arith.constant 5 : index
    %c0_10 = arith.constant 0 : index
    %c0_11 = arith.constant 0 : index
    %10 = vector.load %arg1[%c5, %c0_10, %c0_11] : memref<16x16x64xbf16, #tpu.memory_space<vmem>>, vector<1x16x64xbf16>
    %11 = vector.shape_cast %10 : vector<1x16x64xbf16> to vector<16x64xbf16>
    %c6 = arith.constant 6 : index
    %c0_12 = arith.constant 0 : index
    %c0_13 = arith.constant 0 : index
    %12 = vector.load %arg1[%c6, %c0_12, %c0_13] : memref<16x16x64xbf16, #tpu.memory_space<vmem>>, vector<1x16x64xbf16>
    %13 = vector.shape_cast %12 : vector<1x16x64xbf16> to vector<16x64xbf16>
    %c7 = arith.constant 7 : index
    %c0_14 = arith.constant 0 : index
    %c0_15 = arith.constant 0 : index
    %14 = vector.load %arg1[%c7, %c0_14, %c0_15] : memref<16x16x64xbf16, #tpu.memory_space<vmem>>, vector<1x16x64xbf16>
    %15 = vector.shape_cast %14 : vector<1x16x64xbf16> to vector<16x64xbf16>
    %c8 = arith.constant 8 : index
    %c0_16 = arith.constant 0 : index
    %c0_17 = arith.constant 0 : index
    %16 = vector.load %arg1[%c8, %c0_16, %c0_17] : memref<16x16x64xbf16, #tpu.memory_space<vmem>>, vector<1x16x64xbf16>
    %17 = vector.shape_cast %16 : vector<1x16x64xbf16> to vector<16x64xbf16>
    %c9 = arith.constant 9 : index
    %c0_18 = arith.constant 0 : index
    %c0_19 = arith.constant 0 : index
    %18 = vector.load %arg1[%c9, %c0_18, %c0_19] : memref<16x16x64xbf16, #tpu.memory_space<vmem>>, vector<1x16x64xbf16>
    %19 = vector.shape_cast %18 : vector<1x16x64xbf16> to vector<16x64xbf16>
    %c10 = arith.constant 10 : index
    %c0_20 = arith.constant 0 : index
    %c0_21 = arith.constant 0 : index
    %20 = vector.load %arg1[%c10, %c0_20, %c0_21] : memref<16x16x64xbf16, #tpu.memory_space<vmem>>, vector<1x16x64xbf16>
    %21 = vector.shape_cast %20 : vector<1x16x64xbf16> to vector<16x64xbf16>
    %c11 = arith.constant 11 : index
    %c0_22 = arith.constant 0 : index
    %c0_23 = arith.constant 0 : index
    %22 = vector.load %arg1[%c11, %c0_22, %c0_23] : memref<16x16x64xbf16, #tpu.memory_space<vmem>>, vector<1x16x64xbf16>
    %23 = vector.shape_cast %22 : vector<1x16x64xbf16> to vector<16x64xbf16>
    %c12 = arith.constant 12 : index
    %c0_24 = arith.constant 0 : index
    %c0_25 = arith.constant 0 : index
    %24 = vector.load %arg1[%c12, %c0_24, %c0_25] : memref<16x16x64xbf16, #tpu.memory_space<vmem>>, vector<1x16x64xbf16>
    %25 = vector.shape_cast %24 : vector<1x16x64xbf16> to vector<16x64xbf16>
    %c13 = arith.constant 13 : index
    %c0_26 = arith.constant 0 : index
    %c0_27 = arith.constant 0 : index
    %26 = vector.load %arg1[%c13, %c0_26, %c0_27] : memref<16x16x64xbf16, #tpu.memory_space<vmem>>, vector<1x16x64xbf16>
    %27 = vector.shape_cast %26 : vector<1x16x64xbf16> to vector<16x64xbf16>
    %c14 = arith.constant 14 : index
    %c0_28 = arith.constant 0 : index
    %c0_29 = arith.constant 0 : index
    %28 = vector.load %arg1[%c14, %c0_28, %c0_29] : memref<16x16x64xbf16, #tpu.memory_space<vmem>>, vector<1x16x64xbf16>
    %29 = vector.shape_cast %28 : vector<1x16x64xbf16> to vector<16x64xbf16>
    %c15 = arith.constant 15 : index
    %c0_30 = arith.constant 0 : index
    %c0_31 = arith.constant 0 : index
    %30 = vector.load %arg1[%c15, %c0_30, %c0_31] : memref<16x16x64xbf16, #tpu.memory_space<vmem>>, vector<1x16x64xbf16>
    %31 = vector.shape_cast %30 : vector<1x16x64xbf16> to vector<16x64xbf16>
    %c0_32 = arith.constant 0 : index
    %c0_33 = arith.constant 0 : index
    %c0_34 = arith.constant 0 : index
    %32 = vector.load %arg2[%c0_32, %c0_33, %c0_34] : memref<3x64x128xbf16, #tpu.memory_space<vmem>>, vector<1x64x128xbf16>
    %33 = vector.shape_cast %32 : vector<1x64x128xbf16> to vector<64x128xbf16>
    %c1_35 = arith.constant 1 : index
    %c0_36 = arith.constant 0 : index
    %c0_37 = arith.constant 0 : index
    %34 = vector.load %arg2[%c1_35, %c0_36, %c0_37] : memref<3x64x128xbf16, #tpu.memory_space<vmem>>, vector<1x64x128xbf16>
    %35 = vector.shape_cast %34 : vector<1x64x128xbf16> to vector<64x128xbf16>
    %c2_38 = arith.constant 2 : index
    %c0_39 = arith.constant 0 : index
    %c0_40 = arith.constant 0 : index
    %36 = vector.load %arg2[%c2_38, %c0_39, %c0_40] : memref<3x64x128xbf16, #tpu.memory_space<vmem>>, vector<1x64x128xbf16>
    %37 = vector.shape_cast %36 : vector<1x64x128xbf16> to vector<64x128xbf16>
    %c0_41 = arith.constant 0 : index
    %c0_42 = arith.constant 0 : index
    %38 = vector.load %arg3[%c0_41, %c0_42] : memref<1x128xf32, #tpu.memory_space<vmem>>, vector<1x128xf32>
    %cst = arith.constant dense<0.000000e+00> : vector<16x128xf32>
    %39 = tpu.matmul %1, %35, %cst {dimension_numbers = #tpu.dot_dimension_numbers<[1], [0], [0], [1], [0, 0, 1, 1], [], []>} : vector<16x64xbf16>, vector<64x128xbf16>, vector<16x128xf32> -> vector<16x128xf32>
    %cst_43 = arith.constant dense<0.000000e+00> : vector<16x128xf32>
    %40 = tpu.matmul %3, %37, %cst_43 {dimension_numbers = #tpu.dot_dimension_numbers<[1], [0], [0], [1], [0, 0, 1, 1], [], []>} : vector<16x64xbf16>, vector<64x128xbf16>, vector<16x128xf32> -> vector<16x128xf32>
    %41 = arith.addf %39, %40 : vector<16x128xf32>
    %42 = vector.broadcast %38 : vector<1x128xf32> to vector<16x128xf32>
    %43 = arith.addf %41, %42 : vector<16x128xf32>
    %cst_44 = arith.constant 0.000000e+00 : f32
    %44 = vector.broadcast %cst_44 : f32 to vector<16x128xf32>
    %45 = arith.maximumf %43, %44 : vector<16x128xf32>
    %46 = arith.truncf %45 : vector<16x128xf32> to vector<16x128xbf16>
    %cst_45 = arith.constant dense<0.000000e+00> : vector<16x128xf32>
    %47 = tpu.matmul %5, %35, %cst_45 {dimension_numbers = #tpu.dot_dimension_numbers<[1], [0], [0], [1], [0, 0, 1, 1], [], []>} : vector<16x64xbf16>, vector<64x128xbf16>, vector<16x128xf32> -> vector<16x128xf32>
    %cst_46 = arith.constant dense<0.000000e+00> : vector<16x128xf32>
    %48 = tpu.matmul %7, %37, %cst_46 {dimension_numbers = #tpu.dot_dimension_numbers<[1], [0], [0], [1], [0, 0, 1, 1], [], []>} : vector<16x64xbf16>, vector<64x128xbf16>, vector<16x128xf32> -> vector<16x128xf32>
    %49 = arith.addf %47, %48 : vector<16x128xf32>
    %cst_47 = arith.constant dense<0.000000e+00> : vector<16x128xf32>
    %50 = tpu.matmul %3, %33, %cst_47 {dimension_numbers = #tpu.dot_dimension_numbers<[1], [0], [0], [1], [0, 0, 1, 1], [], []>} : vector<16x64xbf16>, vector<64x128xbf16>, vector<16x128xf32> -> vector<16x128xf32>
    %51 = arith.addf %49, %50 : vector<16x128xf32>
    %52 = vector.broadcast %38 : vector<1x128xf32> to vector<16x128xf32>
    %53 = arith.addf %51, %52 : vector<16x128xf32>
    %cst_48 = arith.constant 0.000000e+00 : f32
    %54 = vector.broadcast %cst_48 : f32 to vector<16x128xf32>
    %55 = arith.maximumf %53, %54 : vector<16x128xf32>
    %56 = arith.truncf %55 : vector<16x128xf32> to vector<16x128xbf16>
    %cst_49 = arith.constant dense<0.000000e+00> : vector<16x128xf32>
    %57 = tpu.matmul %9, %35, %cst_49 {dimension_numbers = #tpu.dot_dimension_numbers<[1], [0], [0], [1], [0, 0, 1, 1], [], []>} : vector<16x64xbf16>, vector<64x128xbf16>, vector<16x128xf32> -> vector<16x128xf32>
    %cst_50 = arith.constant dense<0.000000e+00> : vector<16x128xf32>
    %58 = tpu.matmul %11, %37, %cst_50 {dimension_numbers = #tpu.dot_dimension_numbers<[1], [0], [0], [1], [0, 0, 1, 1], [], []>} : vector<16x64xbf16>, vector<64x128xbf16>, vector<16x128xf32> -> vector<16x128xf32>
    %59 = arith.addf %57, %58 : vector<16x128xf32>
    %cst_51 = arith.constant dense<0.000000e+00> : vector<16x128xf32>
    %60 = tpu.matmul %7, %33, %cst_51 {dimension_numbers = #tpu.dot_dimension_numbers<[1], [0], [0], [1], [0, 0, 1, 1], [], []>} : vector<16x64xbf16>, vector<64x128xbf16>, vector<16x128xf32> -> vector<16x128xf32>
    %61 = arith.addf %59, %60 : vector<16x128xf32>
    %62 = vector.broadcast %38 : vector<1x128xf32> to vector<16x128xf32>
    %63 = arith.addf %61, %62 : vector<16x128xf32>
    %cst_52 = arith.constant 0.000000e+00 : f32
    %64 = vector.broadcast %cst_52 : f32 to vector<16x128xf32>
    %65 = arith.maximumf %63, %64 : vector<16x128xf32>
    %66 = arith.truncf %65 : vector<16x128xf32> to vector<16x128xbf16>
    %cst_53 = arith.constant dense<0.000000e+00> : vector<16x128xf32>
    %67 = tpu.matmul %13, %35, %cst_53 {dimension_numbers = #tpu.dot_dimension_numbers<[1], [0], [0], [1], [0, 0, 1, 1], [], []>} : vector<16x64xbf16>, vector<64x128xbf16>, vector<16x128xf32> -> vector<16x128xf32>
    %cst_54 = arith.constant dense<0.000000e+00> : vector<16x128xf32>
    %68 = tpu.matmul %15, %37, %cst_54 {dimension_numbers = #tpu.dot_dimension_numbers<[1], [0], [0], [1], [0, 0, 1, 1], [], []>} : vector<16x64xbf16>, vector<64x128xbf16>, vector<16x128xf32> -> vector<16x128xf32>
    %69 = arith.addf %67, %68 : vector<16x128xf32>
    %cst_55 = arith.constant dense<0.000000e+00> : vector<16x128xf32>
    %70 = tpu.matmul %11, %33, %cst_55 {dimension_numbers = #tpu.dot_dimension_numbers<[1], [0], [0], [1], [0, 0, 1, 1], [], []>} : vector<16x64xbf16>, vector<64x128xbf16>, vector<16x128xf32> -> vector<16x128xf32>
    %71 = arith.addf %69, %70 : vector<16x128xf32>
    %72 = vector.broadcast %38 : vector<1x128xf32> to vector<16x128xf32>
    %73 = arith.addf %71, %72 : vector<16x128xf32>
    %cst_56 = arith.constant 0.000000e+00 : f32
    %74 = vector.broadcast %cst_56 : f32 to vector<16x128xf32>
    %75 = arith.maximumf %73, %74 : vector<16x128xf32>
    %76 = arith.truncf %75 : vector<16x128xf32> to vector<16x128xbf16>
    %cst_57 = arith.constant dense<0.000000e+00> : vector<16x128xf32>
    %77 = tpu.matmul %17, %35, %cst_57 {dimension_numbers = #tpu.dot_dimension_numbers<[1], [0], [0], [1], [0, 0, 1, 1], [], []>} : vector<16x64xbf16>, vector<64x128xbf16>, vector<16x128xf32> -> vector<16x128xf32>
    %cst_58 = arith.constant dense<0.000000e+00> : vector<16x128xf32>
    %78 = tpu.matmul %19, %37, %cst_58 {dimension_numbers = #tpu.dot_dimension_numbers<[1], [0], [0], [1], [0, 0, 1, 1], [], []>} : vector<16x64xbf16>, vector<64x128xbf16>, vector<16x128xf32> -> vector<16x128xf32>
    %79 = arith.addf %77, %78 : vector<16x128xf32>
    %cst_59 = arith.constant dense<0.000000e+00> : vector<16x128xf32>
    %80 = tpu.matmul %15, %33, %cst_59 {dimension_numbers = #tpu.dot_dimension_numbers<[1], [0], [0], [1], [0, 0, 1, 1], [], []>} : vector<16x64xbf16>, vector<64x128xbf16>, vector<16x128xf32> -> vector<16x128xf32>
    %81 = arith.addf %79, %80 : vector<16x128xf32>
    %82 = vector.broadcast %38 : vector<1x128xf32> to vector<16x128xf32>
    %83 = arith.addf %81, %82 : vector<16x128xf32>
    %cst_60 = arith.constant 0.000000e+00 : f32
    %84 = vector.broadcast %cst_60 : f32 to vector<16x128xf32>
    %85 = arith.maximumf %83, %84 : vector<16x128xf32>
    %86 = arith.truncf %85 : vector<16x128xf32> to vector<16x128xbf16>
    %cst_61 = arith.constant dense<0.000000e+00> : vector<16x128xf32>
    %87 = tpu.matmul %21, %35, %cst_61 {dimension_numbers = #tpu.dot_dimension_numbers<[1], [0], [0], [1], [0, 0, 1, 1], [], []>} : vector<16x64xbf16>, vector<64x128xbf16>, vector<16x128xf32> -> vector<16x128xf32>
    %cst_62 = arith.constant dense<0.000000e+00> : vector<16x128xf32>
    %88 = tpu.matmul %23, %37, %cst_62 {dimension_numbers = #tpu.dot_dimension_numbers<[1], [0], [0], [1], [0, 0, 1, 1], [], []>} : vector<16x64xbf16>, vector<64x128xbf16>, vector<16x128xf32> -> vector<16x128xf32>
    %89 = arith.addf %87, %88 : vector<16x128xf32>
    %cst_63 = arith.constant dense<0.000000e+00> : vector<16x128xf32>
    %90 = tpu.matmul %19, %33, %cst_63 {dimension_numbers = #tpu.dot_dimension_numbers<[1], [0], [0], [1], [0, 0, 1, 1], [], []>} : vector<16x64xbf16>, vector<64x128xbf16>, vector<16x128xf32> -> vector<16x128xf32>
    %91 = arith.addf %89, %90 : vector<16x128xf32>
    %92 = vector.broadcast %38 : vector<1x128xf32> to vector<16x128xf32>
    %93 = arith.addf %91, %92 : vector<16x128xf32>
    %cst_64 = arith.constant 0.000000e+00 : f32
    %94 = vector.broadcast %cst_64 : f32 to vector<16x128xf32>
    %95 = arith.maximumf %93, %94 : vector<16x128xf32>
    %96 = arith.truncf %95 : vector<16x128xf32> to vector<16x128xbf16>
    %cst_65 = arith.constant dense<0.000000e+00> : vector<16x128xf32>
    %97 = tpu.matmul %25, %35, %cst_65 {dimension_numbers = #tpu.dot_dimension_numbers<[1], [0], [0], [1], [0, 0, 1, 1], [], []>} : vector<16x64xbf16>, vector<64x128xbf16>, vector<16x128xf32> -> vector<16x128xf32>
    %cst_66 = arith.constant dense<0.000000e+00> : vector<16x128xf32>
    %98 = tpu.matmul %27, %37, %cst_66 {dimension_numbers = #tpu.dot_dimension_numbers<[1], [0], [0], [1], [0, 0, 1, 1], [], []>} : vector<16x64xbf16>, vector<64x128xbf16>, vector<16x128xf32> -> vector<16x128xf32>
    %99 = arith.addf %97, %98 : vector<16x128xf32>
    %cst_67 = arith.constant dense<0.000000e+00> : vector<16x128xf32>
    %100 = tpu.matmul %23, %33, %cst_67 {dimension_numbers = #tpu.dot_dimension_numbers<[1], [0], [0], [1], [0, 0, 1, 1], [], []>} : vector<16x64xbf16>, vector<64x128xbf16>, vector<16x128xf32> -> vector<16x128xf32>
    %101 = arith.addf %99, %100 : vector<16x128xf32>
    %102 = vector.broadcast %38 : vector<1x128xf32> to vector<16x128xf32>
    %103 = arith.addf %101, %102 : vector<16x128xf32>
    %cst_68 = arith.constant 0.000000e+00 : f32
    %104 = vector.broadcast %cst_68 : f32 to vector<16x128xf32>
    %105 = arith.maximumf %103, %104 : vector<16x128xf32>
    %106 = arith.truncf %105 : vector<16x128xf32> to vector<16x128xbf16>
    %cst_69 = arith.constant dense<0.000000e+00> : vector<16x128xf32>
    %107 = tpu.matmul %29, %35, %cst_69 {dimension_numbers = #tpu.dot_dimension_numbers<[1], [0], [0], [1], [0, 0, 1, 1], [], []>} : vector<16x64xbf16>, vector<64x128xbf16>, vector<16x128xf32> -> vector<16x128xf32>
    %cst_70 = arith.constant dense<0.000000e+00> : vector<16x128xf32>
    %108 = tpu.matmul %31, %37, %cst_70 {dimension_numbers = #tpu.dot_dimension_numbers<[1], [0], [0], [1], [0, 0, 1, 1], [], []>} : vector<16x64xbf16>, vector<64x128xbf16>, vector<16x128xf32> -> vector<16x128xf32>
    %109 = arith.addf %107, %108 : vector<16x128xf32>
    %cst_71 = arith.constant dense<0.000000e+00> : vector<16x128xf32>
    %110 = tpu.matmul %27, %33, %cst_71 {dimension_numbers = #tpu.dot_dimension_numbers<[1], [0], [0], [1], [0, 0, 1, 1], [], []>} : vector<16x64xbf16>, vector<64x128xbf16>, vector<16x128xf32> -> vector<16x128xf32>
    %111 = arith.addf %109, %110 : vector<16x128xf32>
    %112 = vector.broadcast %38 : vector<1x128xf32> to vector<16x128xf32>
    %113 = arith.addf %111, %112 : vector<16x128xf32>
    %cst_72 = arith.constant 0.000000e+00 : f32
    %114 = vector.broadcast %cst_72 : f32 to vector<16x128xf32>
    %115 = arith.maximumf %113, %114 : vector<16x128xf32>
    %116 = arith.truncf %115 : vector<16x128xf32> to vector<16x128xbf16>
    %c0_73 = arith.constant 0 : index
    %c0_74 = arith.constant 0 : index
    %c0_75 = arith.constant 0 : index
    %117 = vector.load %arg4[%c0_73, %c0_74, %c0_75] : memref<3x128x64xbf16, #tpu.memory_space<vmem>>, vector<1x128x64xbf16>
    %118 = vector.shape_cast %117 : vector<1x128x64xbf16> to vector<128x64xbf16>
    %c1_76 = arith.constant 1 : index
    %c0_77 = arith.constant 0 : index
    %c0_78 = arith.constant 0 : index
    %119 = vector.load %arg4[%c1_76, %c0_77, %c0_78] : memref<3x128x64xbf16, #tpu.memory_space<vmem>>, vector<1x128x64xbf16>
    %120 = vector.shape_cast %119 : vector<1x128x64xbf16> to vector<128x64xbf16>
    %c2_79 = arith.constant 2 : index
    %c0_80 = arith.constant 0 : index
    %c0_81 = arith.constant 0 : index
    %121 = vector.load %arg4[%c2_79, %c0_80, %c0_81] : memref<3x128x64xbf16, #tpu.memory_space<vmem>>, vector<1x128x64xbf16>
    %122 = vector.shape_cast %121 : vector<1x128x64xbf16> to vector<128x64xbf16>
    %c0_82 = arith.constant 0 : index
    %c0_83 = arith.constant 0 : index
    %123 = vector.load %arg5[%c0_82, %c0_83] : memref<1x64xf32, #tpu.memory_space<vmem>>, vector<1x64xf32>
    %cst_84 = arith.constant dense<0.000000e+00> : vector<16x64xf32>
    %124 = tpu.matmul %46, %120, %cst_84 {dimension_numbers = #tpu.dot_dimension_numbers<[1], [0], [0], [1], [0, 0, 1, 1], [], []>} : vector<16x128xbf16>, vector<128x64xbf16>, vector<16x64xf32> -> vector<16x64xf32>
    %cst_85 = arith.constant dense<0.000000e+00> : vector<16x64xf32>
    %125 = tpu.matmul %56, %122, %cst_85 {dimension_numbers = #tpu.dot_dimension_numbers<[1], [0], [0], [1], [0, 0, 1, 1], [], []>} : vector<16x128xbf16>, vector<128x64xbf16>, vector<16x64xf32> -> vector<16x64xf32>
    %126 = arith.addf %124, %125 : vector<16x64xf32>
    %127 = vector.broadcast %123 : vector<1x64xf32> to vector<16x64xf32>
    %128 = arith.addf %126, %127 : vector<16x64xf32>
    %cst_86 = arith.constant 0.000000e+00 : f32
    %129 = vector.broadcast %cst_86 : f32 to vector<16x64xf32>
    %130 = arith.maximumf %128, %129 : vector<16x64xf32>
    %131 = arith.truncf %130 : vector<16x64xf32> to vector<16x64xbf16>
    %cst_87 = arith.constant dense<0.000000e+00> : vector<16x64xf32>
    %132 = tpu.matmul %66, %120, %cst_87 {dimension_numbers = #tpu.dot_dimension_numbers<[1], [0], [0], [1], [0, 0, 1, 1], [], []>} : vector<16x128xbf16>, vector<128x64xbf16>, vector<16x64xf32> -> vector<16x64xf32>
    %cst_88 = arith.constant dense<0.000000e+00> : vector<16x64xf32>
    %133 = tpu.matmul %76, %122, %cst_88 {dimension_numbers = #tpu.dot_dimension_numbers<[1], [0], [0], [1], [0, 0, 1, 1], [], []>} : vector<16x128xbf16>, vector<128x64xbf16>, vector<16x64xf32> -> vector<16x64xf32>
    %134 = arith.addf %132, %133 : vector<16x64xf32>
    %cst_89 = arith.constant dense<0.000000e+00> : vector<16x64xf32>
    %135 = tpu.matmul %56, %118, %cst_89 {dimension_numbers = #tpu.dot_dimension_numbers<[1], [0], [0], [1], [0, 0, 1, 1], [], []>} : vector<16x128xbf16>, vector<128x64xbf16>, vector<16x64xf32> -> vector<16x64xf32>
    %136 = arith.addf %134, %135 : vector<16x64xf32>
    %137 = vector.broadcast %123 : vector<1x64xf32> to vector<16x64xf32>
    %138 = arith.addf %136, %137 : vector<16x64xf32>
    %cst_90 = arith.constant 0.000000e+00 : f32
    %139 = vector.broadcast %cst_90 : f32 to vector<16x64xf32>
    %140 = arith.maximumf %138, %139 : vector<16x64xf32>
    %141 = arith.truncf %140 : vector<16x64xf32> to vector<16x64xbf16>
    %cst_91 = arith.constant dense<0.000000e+00> : vector<16x64xf32>
    %142 = tpu.matmul %86, %120, %cst_91 {dimension_numbers = #tpu.dot_dimension_numbers<[1], [0], [0], [1], [0, 0, 1, 1], [], []>} : vector<16x128xbf16>, vector<128x64xbf16>, vector<16x64xf32> -> vector<16x64xf32>
    %cst_92 = arith.constant dense<0.000000e+00> : vector<16x64xf32>
    %143 = tpu.matmul %96, %122, %cst_92 {dimension_numbers = #tpu.dot_dimension_numbers<[1], [0], [0], [1], [0, 0, 1, 1], [], []>} : vector<16x128xbf16>, vector<128x64xbf16>, vector<16x64xf32> -> vector<16x64xf32>
    %144 = arith.addf %142, %143 : vector<16x64xf32>
    %cst_93 = arith.constant dense<0.000000e+00> : vector<16x64xf32>
    %145 = tpu.matmul %76, %118, %cst_93 {dimension_numbers = #tpu.dot_dimension_numbers<[1], [0], [0], [1], [0, 0, 1, 1], [], []>} : vector<16x128xbf16>, vector<128x64xbf16>, vector<16x64xf32> -> vector<16x64xf32>
    %146 = arith.addf %144, %145 : vector<16x64xf32>
    %147 = vector.broadcast %123 : vector<1x64xf32> to vector<16x64xf32>
    %148 = arith.addf %146, %147 : vector<16x64xf32>
    %cst_94 = arith.constant 0.000000e+00 : f32
    %149 = vector.broadcast %cst_94 : f32 to vector<16x64xf32>
    %150 = arith.maximumf %148, %149 : vector<16x64xf32>
    %151 = arith.truncf %150 : vector<16x64xf32> to vector<16x64xbf16>
    %cst_95 = arith.constant dense<0.000000e+00> : vector<16x64xf32>
    %152 = tpu.matmul %106, %120, %cst_95 {dimension_numbers = #tpu.dot_dimension_numbers<[1], [0], [0], [1], [0, 0, 1, 1], [], []>} : vector<16x128xbf16>, vector<128x64xbf16>, vector<16x64xf32> -> vector<16x64xf32>
    %cst_96 = arith.constant dense<0.000000e+00> : vector<16x64xf32>
    %153 = tpu.matmul %116, %122, %cst_96 {dimension_numbers = #tpu.dot_dimension_numbers<[1], [0], [0], [1], [0, 0, 1, 1], [], []>} : vector<16x128xbf16>, vector<128x64xbf16>, vector<16x64xf32> -> vector<16x64xf32>
    %154 = arith.addf %152, %153 : vector<16x64xf32>
    %cst_97 = arith.constant dense<0.000000e+00> : vector<16x64xf32>
    %155 = tpu.matmul %96, %118, %cst_97 {dimension_numbers = #tpu.dot_dimension_numbers<[1], [0], [0], [1], [0, 0, 1, 1], [], []>} : vector<16x128xbf16>, vector<128x64xbf16>, vector<16x64xf32> -> vector<16x64xf32>
    %156 = arith.addf %154, %155 : vector<16x64xf32>
    %157 = vector.broadcast %123 : vector<1x64xf32> to vector<16x64xf32>
    %158 = arith.addf %156, %157 : vector<16x64xf32>
    %cst_98 = arith.constant 0.000000e+00 : f32
    %159 = vector.broadcast %cst_98 : f32 to vector<16x64xf32>
    %160 = arith.maximumf %158, %159 : vector<16x64xf32>
    %161 = arith.truncf %160 : vector<16x64xf32> to vector<16x64xbf16>
    %c0_99 = arith.constant 0 : index
    %c0_100 = arith.constant 0 : index
    %162 = vector.load %arg7[%c0_99, %c0_100] : memref<1x128xf32, #tpu.memory_space<vmem>>, vector<1x128xf32>
    %c0_101 = arith.constant 0 : index
    %c0_102 = arith.constant 0 : index
    %163 = vector.load %arg6[%c0_101, %c0_102] : memref<256x128xbf16, #tpu.memory_space<vmem>>, vector<64x128xbf16>
    %cst_103 = arith.constant dense<0.000000e+00> : vector<16x128xf32>
    %164 = tpu.matmul %131, %163, %cst_103 {dimension_numbers = #tpu.dot_dimension_numbers<[1], [0], [0], [1], [0, 0, 1, 1], [], []>} : vector<16x64xbf16>, vector<64x128xbf16>, vector<16x128xf32> -> vector<16x128xf32>
    %165 = vector.broadcast %162 : vector<1x128xf32> to vector<16x128xf32>
    %166 = arith.addf %165, %164 : vector<16x128xf32>
    %c64 = arith.constant 64 : index
    %c0_104 = arith.constant 0 : index
    %167 = vector.load %arg6[%c64, %c0_104] : memref<256x128xbf16, #tpu.memory_space<vmem>>, vector<64x128xbf16>
    %cst_105 = arith.constant dense<0.000000e+00> : vector<16x128xf32>
    %168 = tpu.matmul %141, %167, %cst_105 {dimension_numbers = #tpu.dot_dimension_numbers<[1], [0], [0], [1], [0, 0, 1, 1], [], []>} : vector<16x64xbf16>, vector<64x128xbf16>, vector<16x128xf32> -> vector<16x128xf32>
    %169 = arith.addf %166, %168 : vector<16x128xf32>
    %c128 = arith.constant 128 : index
    %c0_106 = arith.constant 0 : index
    %170 = vector.load %arg6[%c128, %c0_106] : memref<256x128xbf16, #tpu.memory_space<vmem>>, vector<64x128xbf16>
    %cst_107 = arith.constant dense<0.000000e+00> : vector<16x128xf32>
    %171 = tpu.matmul %151, %170, %cst_107 {dimension_numbers = #tpu.dot_dimension_numbers<[1], [0], [0], [1], [0, 0, 1, 1], [], []>} : vector<16x64xbf16>, vector<64x128xbf16>, vector<16x128xf32> -> vector<16x128xf32>
    %172 = arith.addf %169, %171 : vector<16x128xf32>
    %c192 = arith.constant 192 : index
    %c0_108 = arith.constant 0 : index
    %173 = vector.load %arg6[%c192, %c0_108] : memref<256x128xbf16, #tpu.memory_space<vmem>>, vector<64x128xbf16>
    %cst_109 = arith.constant dense<0.000000e+00> : vector<16x128xf32>
    %174 = tpu.matmul %161, %173, %cst_109 {dimension_numbers = #tpu.dot_dimension_numbers<[1], [0], [0], [1], [0, 0, 1, 1], [], []>} : vector<16x64xbf16>, vector<64x128xbf16>, vector<16x128xf32> -> vector<16x128xf32>
    %175 = arith.addf %172, %174 : vector<16x128xf32>
    %cst_110 = arith.constant 0.000000e+00 : f32
    %176 = vector.broadcast %cst_110 : f32 to vector<16x128xf32>
    %177 = arith.maximumf %175, %176 : vector<16x128xf32>
    %178 = arith.truncf %177 : vector<16x128xf32> to vector<16x128xbf16>
    %c0_111 = arith.constant 0 : index
    %c0_112 = arith.constant 0 : index
    %179 = vector.load %arg8[%c0_111, %c0_112] : memref<128x384xbf16, #tpu.memory_space<vmem>>, vector<128x384xbf16>
    %cst_113 = arith.constant dense<0.000000e+00> : vector<16x384xf32>
    %180 = tpu.matmul %178, %179, %cst_113 {dimension_numbers = #tpu.dot_dimension_numbers<[1], [0], [0], [1], [0, 0, 1, 1], [], []>} : vector<16x128xbf16>, vector<128x384xbf16>, vector<16x384xf32> -> vector<16x384xf32>
    %c0_114 = arith.constant 0 : index
    %c0_115 = arith.constant 0 : index
    %181 = vector.load %arg10[%c0_114, %c0_115] : memref<1x384xf32, #tpu.memory_space<vmem>>, vector<1x384xf32>
    %182 = vector.broadcast %181 : vector<1x384xf32> to vector<16x384xf32>
    %183 = arith.addf %180, %182 : vector<16x384xf32>
    %c0_116 = arith.constant 0 : index
    %c0_117 = arith.constant 0 : index
    %184 = vector.load %arg9[%c0_116, %c0_117] : memref<128x384xbf16, #tpu.memory_space<vmem>>, vector<128x384xbf16>
    %c0_118 = arith.constant 0 : index
    %c0_119 = arith.constant 0 : index
    %185 = vector.load %arg11[%c0_118, %c0_119] : memref<1x384xf32, #tpu.memory_space<vmem>>, vector<1x384xf32>
    %186 = vector.extract_strided_slice %183 {offsets = [0, 0], sizes = [8, 384], strides = [1, 1]} : vector<16x384xf32> to vector<8x384xf32>
    %c0_120 = arith.constant 0 : index
    %c0_121 = arith.constant 0 : index
    %187 = vector.load %arg12[%c0_120, %c0_121] : memref<8x128xf32, #tpu.memory_space<vmem>>, vector<8x128xf32>
    %188 = arith.truncf %187 : vector<8x128xf32> to vector<8x128xbf16>
    %cst_122 = arith.constant dense<0.000000e+00> : vector<8x384xf32>
    %189 = tpu.matmul %188, %184, %cst_122 {dimension_numbers = #tpu.dot_dimension_numbers<[1], [0], [0], [1], [0, 0, 1, 1], [], []>} : vector<8x128xbf16>, vector<128x384xbf16>, vector<8x384xf32> -> vector<8x384xf32>
    %190 = vector.broadcast %185 : vector<1x384xf32> to vector<8x384xf32>
    %191 = arith.addf %189, %190 : vector<8x384xf32>
    %192 = vector.extract_strided_slice %186 {offsets = [0, 0], sizes = [8, 128], strides = [1, 1]} : vector<8x384xf32> to vector<8x128xf32>
    %193 = vector.extract_strided_slice %191 {offsets = [0, 0], sizes = [8, 128], strides = [1, 1]} : vector<8x384xf32> to vector<8x128xf32>
    %194 = arith.addf %192, %193 : vector<8x128xf32>
    %195 = arith.negf %194 : vector<8x128xf32>
    %196 = math.exp %195 : vector<8x128xf32>
    %cst_123 = arith.constant 1.000000e+00 : f32
    %197 = vector.broadcast %cst_123 : f32 to vector<8x128xf32>
    %198 = arith.addf %197, %196 : vector<8x128xf32>
    %199 = arith.divf %197, %198 : vector<8x128xf32>
    %200 = vector.extract_strided_slice %186 {offsets = [0, 128], sizes = [8, 128], strides = [1, 1]} : vector<8x384xf32> to vector<8x128xf32>
    %201 = vector.extract_strided_slice %191 {offsets = [0, 128], sizes = [8, 128], strides = [1, 1]} : vector<8x384xf32> to vector<8x128xf32>
    %202 = arith.addf %200, %201 : vector<8x128xf32>
    %203 = arith.negf %202 : vector<8x128xf32>
    %204 = math.exp %203 : vector<8x128xf32>
    %cst_124 = arith.constant 1.000000e+00 : f32
    %205 = vector.broadcast %cst_124 : f32 to vector<8x128xf32>
    %206 = arith.addf %205, %204 : vector<8x128xf32>
    %207 = arith.divf %205, %206 : vector<8x128xf32>
    %208 = vector.extract_strided_slice %186 {offsets = [0, 256], sizes = [8, 128], strides = [1, 1]} : vector<8x384xf32> to vector<8x128xf32>
    %209 = vector.extract_strided_slice %191 {offsets = [0, 256], sizes = [8, 128], strides = [1, 1]} : vector<8x384xf32> to vector<8x128xf32>
    %210 = arith.mulf %199, %209 : vector<8x128xf32>
    %211 = arith.addf %208, %210 : vector<8x128xf32>
    %212 = math.tanh %211 : vector<8x128xf32>
    %cst_125 = arith.constant 1.000000e+00 : f32
    %213 = vector.broadcast %cst_125 : f32 to vector<8x128xf32>
    %214 = arith.subf %213, %207 : vector<8x128xf32>
    %215 = arith.mulf %214, %212 : vector<8x128xf32>
    %216 = arith.mulf %207, %187 : vector<8x128xf32>
    %217 = arith.addf %215, %216 : vector<8x128xf32>
    %218 = vector.extract_strided_slice %183 {offsets = [8, 0], sizes = [8, 384], strides = [1, 1]} : vector<16x384xf32> to vector<8x384xf32>
    %c0_126 = arith.constant 0 : index
    %c0_127 = arith.constant 0 : index
    %219 = vector.load %arg13[%c0_126, %c0_127] : memref<8x128xf32, #tpu.memory_space<vmem>>, vector<8x128xf32>
    %220 = arith.mulf %217, %219 : vector<8x128xf32>
    %221 = arith.truncf %220 : vector<8x128xf32> to vector<8x128xbf16>
    %cst_128 = arith.constant dense<0.000000e+00> : vector<8x384xf32>
    %222 = tpu.matmul %221, %184, %cst_128 {dimension_numbers = #tpu.dot_dimension_numbers<[1], [0], [0], [1], [0, 0, 1, 1], [], []>} : vector<8x128xbf16>, vector<128x384xbf16>, vector<8x384xf32> -> vector<8x384xf32>
    %223 = vector.broadcast %185 : vector<1x384xf32> to vector<8x384xf32>
    %224 = arith.addf %222, %223 : vector<8x384xf32>
    %225 = vector.extract_strided_slice %218 {offsets = [0, 0], sizes = [8, 128], strides = [1, 1]} : vector<8x384xf32> to vector<8x128xf32>
    %226 = vector.extract_strided_slice %224 {offsets = [0, 0], sizes = [8, 128], strides = [1, 1]} : vector<8x384xf32> to vector<8x128xf32>
    %227 = arith.addf %225, %226 : vector<8x128xf32>
    %228 = arith.negf %227 : vector<8x128xf32>
    %229 = math.exp %228 : vector<8x128xf32>
    %cst_129 = arith.constant 1.000000e+00 : f32
    %230 = vector.broadcast %cst_129 : f32 to vector<8x128xf32>
    %231 = arith.addf %230, %229 : vector<8x128xf32>
    %232 = arith.divf %230, %231 : vector<8x128xf32>
    %233 = vector.extract_strided_slice %218 {offsets = [0, 128], sizes = [8, 128], strides = [1, 1]} : vector<8x384xf32> to vector<8x128xf32>
    %234 = vector.extract_strided_slice %224 {offsets = [0, 128], sizes = [8, 128], strides = [1, 1]} : vector<8x384xf32> to vector<8x128xf32>
    %235 = arith.addf %233, %234 : vector<8x128xf32>
    %236 = arith.negf %235 : vector<8x128xf32>
    %237 = math.exp %236 : vector<8x128xf32>
    %cst_130 = arith.constant 1.000000e+00 : f32
    %238 = vector.broadcast %cst_130 : f32 to vector<8x128xf32>
    %239 = arith.addf %238, %237 : vector<8x128xf32>
    %240 = arith.divf %238, %239 : vector<8x128xf32>
    %241 = vector.extract_strided_slice %218 {offsets = [0, 256], sizes = [8, 128], strides = [1, 1]} : vector<8x384xf32> to vector<8x128xf32>
    %242 = vector.extract_strided_slice %224 {offsets = [0, 256], sizes = [8, 128], strides = [1, 1]} : vector<8x384xf32> to vector<8x128xf32>
    %243 = arith.mulf %232, %242 : vector<8x128xf32>
    %244 = arith.addf %241, %243 : vector<8x128xf32>
    %245 = math.tanh %244 : vector<8x128xf32>
    %cst_131 = arith.constant 1.000000e+00 : f32
    %246 = vector.broadcast %cst_131 : f32 to vector<8x128xf32>
    %247 = arith.subf %246, %240 : vector<8x128xf32>
    %248 = arith.mulf %247, %245 : vector<8x128xf32>
    %249 = arith.mulf %240, %220 : vector<8x128xf32>
    %250 = arith.addf %248, %249 : vector<8x128xf32>
    %251 = arith.truncf %217 : vector<8x128xf32> to vector<8x128xbf16>
    %c0_132 = arith.constant 0 : index
    %c0_133 = arith.constant 0 : index
    %252 = vector.load %arg14[%c0_132, %c0_133] : memref<128x128xbf16, #tpu.memory_space<vmem>>, vector<128x128xbf16>
    %cst_134 = arith.constant dense<0.000000e+00> : vector<8x128xf32>
    %253 = tpu.matmul %251, %252, %cst_134 {dimension_numbers = #tpu.dot_dimension_numbers<[1], [0], [0], [1], [0, 0, 1, 1], [], []>} : vector<8x128xbf16>, vector<128x128xbf16>, vector<8x128xf32> -> vector<8x128xf32>
    %254 = arith.truncf %250 : vector<8x128xf32> to vector<8x128xbf16>
    %c0_135 = arith.constant 0 : index
    %c0_136 = arith.constant 0 : index
    %255 = vector.load %arg15[%c0_135, %c0_136] : memref<128x128xbf16, #tpu.memory_space<vmem>>, vector<128x128xbf16>
    %cst_137 = arith.constant dense<0.000000e+00> : vector<8x128xf32>
    %256 = tpu.matmul %254, %255, %cst_137 {dimension_numbers = #tpu.dot_dimension_numbers<[1], [0], [0], [1], [0, 0, 1, 1], [], []>} : vector<8x128xbf16>, vector<128x128xbf16>, vector<8x128xf32> -> vector<8x128xf32>
    %257 = arith.addf %253, %256 : vector<8x128xf32>
    %c0_138 = arith.constant 0 : index
    %c0_139 = arith.constant 0 : index
    %258 = vector.load %arg16[%c0_138, %c0_139] : memref<1x128xf32, #tpu.memory_space<vmem>>, vector<1x128xf32>
    %259 = vector.broadcast %258 : vector<1x128xf32> to vector<8x128xf32>
    %260 = arith.addf %257, %259 : vector<8x128xf32>
    %c0_140 = arith.constant 0 : index
    %c0_141 = arith.constant 0 : index
    %261 = vector.load %arg17[%c0_140, %c0_141] : memref<8x384xf32, #tpu.memory_space<vmem>>, vector<8x128xf32>
    tpu.vector_store %arg17[%c0_140, %c0_141], %260 {strides = array<i32>} : memref<8x384xf32, #tpu.memory_space<vmem>>, vector<8x128xf32>,
    %c0_142 = arith.constant 0 : index
    %c128_143 = arith.constant 128 : index
    %262 = vector.load %arg17[%c0_142, %c128_143] : memref<8x384xf32, #tpu.memory_space<vmem>>, vector<8x128xf32>
    tpu.vector_store %arg17[%c0_142, %c128_143], %217 {strides = array<i32>} : memref<8x384xf32, #tpu.memory_space<vmem>>, vector<8x128xf32>,
    %c0_144 = arith.constant 0 : index
    %c256 = arith.constant 256 : index
    %263 = vector.load %arg17[%c0_144, %c256] : memref<8x384xf32, #tpu.memory_space<vmem>>, vector<8x128xf32>
    tpu.vector_store %arg17[%c0_144, %c256], %250 {strides = array<i32>} : memref<8x384xf32, #tpu.memory_space<vmem>>, vector<8x128xf32>,
    return
  }
  func.func @transform_0(%arg0: i32) -> (i32, i32, i32) {
    %c0_i32 = arith.constant 0 : i32
    %c0_i32_0 = arith.constant 0 : i32
    %c0_i32_1 = arith.constant 0 : i32
    %c0_i32_2 = arith.constant 0 : i32
    return %c0_i32, %c0_i32_0, %c0_i32_1 : i32, i32, i32
  }
  func.func @transform_1(%arg0: i32) -> (i32, i32, i32) {
    %c0_i32 = arith.constant 0 : i32
    %c0_i32_0 = arith.constant 0 : i32
    %c0_i32_1 = arith.constant 0 : i32
    %c0_i32_2 = arith.constant 0 : i32
    return %c0_i32, %c0_i32_0, %c0_i32_1 : i32, i32, i32
  }
  func.func @transform_2(%arg0: i32) -> (i32, i32) {
    %c0_i32 = arith.constant 0 : i32
    %c0_i32_0 = arith.constant 0 : i32
    %c0_i32_1 = arith.constant 0 : i32
    return %c0_i32, %c0_i32_0 : i32, i32
  }
  func.func @transform_3(%arg0: i32) -> (i32, i32, i32) {
    %c0_i32 = arith.constant 0 : i32
    %c0_i32_0 = arith.constant 0 : i32
    %c0_i32_1 = arith.constant 0 : i32
    %c0_i32_2 = arith.constant 0 : i32
    return %c0_i32, %c0_i32_0, %c0_i32_1 : i32, i32, i32
  }
  func.func @transform_4(%arg0: i32) -> (i32, i32) {
    %c0_i32 = arith.constant 0 : i32
    %c0_i32_0 = arith.constant 0 : i32
    %c0_i32_1 = arith.constant 0 : i32
    return %c0_i32, %c0_i32_0 : i32, i32
  }
  func.func @transform_5(%arg0: i32) -> (i32, i32) {
    %c0_i32 = arith.constant 0 : i32
    %c0_i32_0 = arith.constant 0 : i32
    %c0_i32_1 = arith.constant 0 : i32
    return %c0_i32, %c0_i32_0 : i32, i32
  }
  func.func @transform_6(%arg0: i32) -> (i32, i32) {
    %c0_i32 = arith.constant 0 : i32
    %c0_i32_0 = arith.constant 0 : i32
    %c0_i32_1 = arith.constant 0 : i32
    return %c0_i32, %c0_i32_0 : i32, i32
  }
  func.func @transform_7(%arg0: i32) -> (i32, i32) {
    %c0_i32 = arith.constant 0 : i32
    %c0_i32_0 = arith.constant 0 : i32
    %c0_i32_1 = arith.constant 0 : i32
    return %c0_i32, %c0_i32_0 : i32, i32
  }
  func.func @transform_8(%arg0: i32) -> (i32, i32) {
    %c0_i32 = arith.constant 0 : i32
    %c0_i32_0 = arith.constant 0 : i32
    %c0_i32_1 = arith.constant 0 : i32
    return %c0_i32, %c0_i32_0 : i32, i32
  }
  func.func @transform_9(%arg0: i32) -> (i32, i32) {
    %c0_i32 = arith.constant 0 : i32
    %c0_i32_0 = arith.constant 0 : i32
    %c0_i32_1 = arith.constant 0 : i32
    return %c0_i32, %c0_i32_0 : i32, i32
  }
  func.func @transform_10(%arg0: i32) -> (i32, i32) {
    %c0_i32 = arith.constant 0 : i32
    %c0_i32_0 = arith.constant 0 : i32
    %c0_i32_1 = arith.constant 0 : i32
    return %c0_i32, %c0_i32_0 : i32, i32
  }
  func.func @transform_11(%arg0: i32) -> (i32, i32) {
    %c0_i32 = arith.constant 0 : i32
    %c0_i32_0 = arith.constant 0 : i32
    %c0_i32_1 = arith.constant 0 : i32
    return %c0_i32, %c0_i32_0 : i32, i32
  }
  func.func @transform_12(%arg0: i32) -> (i32, i32) {
    %c0_i32 = arith.constant 0 : i32
    %c0_i32_0 = arith.constant 0 : i32
    %c0_i32_1 = arith.constant 0 : i32
    return %c0_i32, %c0_i32_0 : i32, i32
  }
  func.func @transform_13(%arg0: i32) -> (i32, i32) {
    %c0_i32 = arith.constant 0 : i32
    %c0_i32_0 = arith.constant 0 : i32
    %c0_i32_1 = arith.constant 0 : i32
    return %c0_i32, %c0_i32_0 : i32, i32
  }
  func.func @transform_14(%arg0: i32) -> (i32, i32) {
    %c0_i32 = arith.constant 0 : i32
    %c0_i32_0 = arith.constant 0 : i32
    %c0_i32_1 = arith.constant 0 : i32
    return %c0_i32, %c0_i32_0 : i32, i32
  }
  func.func @transform_15(%arg0: i32) -> (i32, i32) {
    %c0_i32 = arith.constant 0 : i32
    %c0_i32_0 = arith.constant 0 : i32
    %c0_i32_1 = arith.constant 0 : i32
    return %c0_i32, %c0_i32_0 : i32, i32
  }
  func.func @transform_16(%arg0: i32) -> (i32, i32) {
    %c0_i32 = arith.constant 0 : i32
    %c0_i32_0 = arith.constant 0 : i32
    %c0_i32_1 = arith.constant 0 : i32
    return %c0_i32, %c0_i32_0 : i32, i32
  }
}

</mosaic_0001>

<llo_original>
// kernel: inverse_transition_forward.1
$region0: #{inverse_transition_forward.1}
  #allocation0 [shape = 'u32[]', space=smem, size = 0x4, offset = 0x4, fixed_abs, tag = 'smem constant byte address 0x4 - core index']
  #allocation1 [shape = 'u32[144,128]{1,0:T(1,128)}', space=vmem, size = 0x12000, scoped, tag = 'internal scratch']
  %s0 = inlined_call_operand.vmem [shape: bf16[16,16,64], index: 0, kind: input, shape index: {}]
  %s1 = inlined_call_operand.vmem [shape: bf16[3,64,128], index: 1, kind: input, shape index: {}]
  %s2 = inlined_call_operand.vmem [shape: f32[1,128], index: 2, kind: input, shape index: {}]
  %s3 = inlined_call_operand.vmem [shape: bf16[3,128,64], index: 3, kind: input, shape index: {}]
  %s4 = inlined_call_operand.vmem [shape: f32[1,64], index: 4, kind: input, shape index: {}]
  %s5 = inlined_call_operand.vmem [shape: bf16[256,128], index: 5, kind: input, shape index: {}]
  %s6 = inlined_call_operand.vmem [shape: f32[1,128], index: 6, kind: input, shape index: {}]
  %s7 = inlined_call_operand.vmem [shape: bf16[128,384], index: 7, kind: input, shape index: {}]
  %s8 = inlined_call_operand.vmem [shape: bf16[128,384], index: 8, kind: input, shape index: {}]
  %s9 = inlined_call_operand.vmem [shape: f32[1,384], index: 9, kind: input, shape index: {}]
  %s10 = inlined_call_operand.vmem [shape: f32[1,384], index: 10, kind: input, shape index: {}]
  %s11 = inlined_call_operand.vmem [shape: f32[8,128], index: 11, kind: input, shape index: {}]
  %s12 = inlined_call_operand.vmem [shape: f32[8,128], index: 12, kind: input, shape index: {}]
  %s13 = inlined_call_operand.vmem [shape: bf16[128,128], index: 13, kind: input, shape index: {}]
  %s14 = inlined_call_operand.vmem [shape: bf16[128,128], index: 14, kind: input, shape index: {}]
  %s15 = inlined_call_operand.vmem [shape: f32[1,128], index: 15, kind: input, shape index: {}]
  %s16 = inlined_call_operand.vmem [shape: f32[8,384], index: 16, kind: output, shape index: {}]
  %s17 = sld [smem:[#allocation0]]
  $region74: #{inverse_transition_forward.1} parent=0
    _
  %s19 = ssub.s32 1, %s17
  %s20 = scalar_select 0, %s19, %s17
  // Predicated region
  $region2: #{inverse_transition_forward.1} parent=0 // pred_check
    _
  $region3: #{inverse_transition_forward.1} parent=0 // pred_check_branch
    %22 = sbr.rel (0) target = $region5
  $region4: #{inverse_transition_forward.1} parent=0 // pred_region
    _
  $region5: #{inverse_transition_forward.1} parent=0 // pred_fallthru
    _
  // Predicated region
  $region6: #{inverse_transition_forward.1} parent=0 // pred_check
    _
  $region7: #{inverse_transition_forward.1} parent=0 // pred_check_branch
    %24 = sbr.rel (0) target = $region9
  $region8: #{inverse_transition_forward.1} parent=0 // pred_region
    _
  $region9: #{inverse_transition_forward.1} parent=0 // pred_fallthru
    _
  // Predicated region
  $region10: #{inverse_transition_forward.1} parent=0 // pred_check
    _
  $region11: #{inverse_transition_forward.1} parent=0 // pred_check_branch
    %26 = sbr.rel (0) target = $region13
  $region12: #{inverse_transition_forward.1} parent=0 // pred_region
    _
  $region13: #{inverse_transition_forward.1} parent=0 // pred_fallthru
    _
  // Predicated region
  $region14: #{inverse_transition_forward.1} parent=0 // pred_check
    _
  $region15: #{inverse_transition_forward.1} parent=0 // pred_check_branch
    %28 = sbr.rel (0) target = $region17
  $region16: #{inverse_transition_forward.1} parent=0 // pred_region
    _
  $region17: #{inverse_transition_forward.1} parent=0 // pred_fallthru
    _
  // Predicated region
  $region18: #{inverse_transition_forward.1} parent=0 // pred_check
    _
  $region19: #{inverse_transition_forward.1} parent=0 // pred_check_branch
    %30 = sbr.rel (0) target = $region21
  $region20: #{inverse_transition_forward.1} parent=0 // pred_region
    _
  $region21: #{inverse_transition_forward.1} parent=0 // pred_fallthru
    _
  // Predicated region
  $region22: #{inverse_transition_forward.1} parent=0 // pred_check
    _
  $region23: #{inverse_transition_forward.1} parent=0 // pred_check_branch
    %32 = sbr.rel (0) target = $region25
  $region24: #{inverse_transition_forward.1} parent=0 // pred_region
    _
  $region25: #{inverse_transition_forward.1} parent=0 // pred_fallthru
    _
  // Predicated region
  $region26: #{inverse_transition_forward.1} parent=0 // pred_check
    _
  $region27: #{inverse_transition_forward.1} parent=0 // pred_check_branch
    %34 = sbr.rel (0) target = $region29
  $region28: #{inverse_transition_forward.1} parent=0 // pred_region
    _
  $region29: #{inverse_transition_forward.1} parent=0 // pred_fallthru
    _
  // Predicated region
  $region30: #{inverse_transition_forward.1} parent=0 // pred_check
    _
  $region31: #{inverse_transition_forward.1} parent=0 // pred_check_branch
    %36 = sbr.rel (0) target = $region33
  $region32: #{inverse_transition_forward.1} parent=0 // pred_region
    _
  $region33: #{inverse_transition_forward.1} parent=0 // pred_fallthru
    _
  // Predicated region
  $region34: #{inverse_transition_forward.1} parent=0 // pred_check
    _
  $region35: #{inverse_transition_forward.1} parent=0 // pred_check_branch
    %38 = sbr.rel (0) target = $region37
  $region36: #{inverse_transition_forward.1} parent=0 // pred_region
    _
  $region37: #{inverse_transition_forward.1} parent=0 // pred_fallthru
    _
  // Predicated region
  $region38: #{inverse_transition_forward.1} parent=0 // pred_check
    _
  $region39: #{inverse_transition_forward.1} parent=0 // pred_check_branch
    %40 = sbr.rel (0) target = $region41
  $region40: #{inverse_transition_forward.1} parent=0 // pred_region
    _
  $region41: #{inverse_transition_forward.1} parent=0 // pred_fallthru
    _
  // Predicated region
  $region42: #{inverse_transition_forward.1} parent=0 // pred_check
    _
  $region43: #{inverse_transition_forward.1} parent=0 // pred_check_branch
    %42 = sbr.rel (0) target = $region45
  $region44: #{inverse_transition_forward.1} parent=0 // pred_region
    _
  $region45: #{inverse_transition_forward.1} parent=0 // pred_fallthru
    _
  // Predicated region
  $region46: #{inverse_transition_forward.1} parent=0 // pred_check
    _
  $region47: #{inverse_transition_forward.1} parent=0 // pred_check_branch
    %44 = sbr.rel (0) target = $region49
  $region48: #{inverse_transition_forward.1} parent=0 // pred_region
    _
  $region49: #{inverse_transition_forward.1} parent=0 // pred_fallthru
    _
  // Predicated region
  $region50: #{inverse_transition_forward.1} parent=0 // pred_check
    _
  $region51: #{inverse_transition_forward.1} parent=0 // pred_check_branch
    %46 = sbr.rel (0) target = $region53
  $region52: #{inverse_transition_forward.1} parent=0 // pred_region
    _
  $region53: #{inverse_transition_forward.1} parent=0 // pred_fallthru
    _
  // Predicated region
  $region54: #{inverse_transition_forward.1} parent=0 // pred_check
    _
  $region55: #{inverse_transition_forward.1} parent=0 // pred_check_branch
    %48 = sbr.rel (0) target = $region57
  $region56: #{inverse_transition_forward.1} parent=0 // pred_region
    _
  $region57: #{inverse_transition_forward.1} parent=0 // pred_fallthru
    _
  // Predicated region
  $region58: #{inverse_transition_forward.1} parent=0 // pred_check
    _
  $region59: #{inverse_transition_forward.1} parent=0 // pred_check_branch
    %50 = sbr.rel (0) target = $region61
  $region60: #{inverse_transition_forward.1} parent=0 // pred_region
    _
  $region61: #{inverse_transition_forward.1} parent=0 // pred_fallthru
    _
  // Predicated region
  $region62: #{inverse_transition_forward.1} parent=0 // pred_check
    _
  $region63: #{inverse_transition_forward.1} parent=0 // pred_check_branch
    %52 = sbr.rel (0) target = $region65
  $region64: #{inverse_transition_forward.1} parent=0 // pred_region
    _
  $region65: #{inverse_transition_forward.1} parent=0 // pred_fallthru
    _
  %v54 = vld [vmem:[%s0] sm:$0xf]
  %v55 = vld [vmem:[%s0 + $0x4] sm:$0xf]
  %s56 = scalar_lea.vmem %s0, 8
  %v57 = vld [vmem:[%s56] sm:$0xf]
  %v58 = vld [vmem:[%s56 + $0x4] sm:$0xf]
  %s59 = scalar_lea.vmem %s0, 16
  %v60 = vld [vmem:[%s59] sm:$0xf]
  %v61 = vld [vmem:[%s59 + $0x4] sm:$0xf]
  %s62 = scalar_lea.vmem %s0, 24
  %v63 = vld [vmem:[%s62] sm:$0xf]
  %v64 = vld [vmem:[%s62 + $0x4] sm:$0xf]
  %s65 = scalar_lea.vmem %s0, 32
  %v66 = vld [vmem:[%s65] sm:$0xf]
  %v67 = vld [vmem:[%s65 + $0x4] sm:$0xf]
  %s68 = scalar_lea.vmem %s0, 40
  %v69 = vld [vmem:[%s68] sm:$0xf]
  %v70 = vld [vmem:[%s68 + $0x4] sm:$0xf]
  %s71 = scalar_lea.vmem %s0, 48
  %v72 = vld [vmem:[%s71] sm:$0xf]
  %v73 = vld [vmem:[%s71 + $0x4] sm:$0xf]
  %s74 = scalar_lea.vmem %s0, 56
  %v75 = vld [vmem:[%s74] sm:$0xf]
  %v76 = vld [vmem:[%s74 + $0x4] sm:$0xf]
  %s77 = scalar_lea.vmem %s0, 64
  %v78 = vld [vmem:[%s77] sm:$0xf]
  %v79 = vld [vmem:[%s77 + $0x4] sm:$0xf]
  %s80 = scalar_lea.vmem %s0, 72
  %v81 = vld [vmem:[%s80] sm:$0xf]
  %v82 = vld [vmem:[%s80 + $0x4] sm:$0xf]
  %s83 = scalar_lea.vmem %s0, 80
  %v84 = vld [vmem:[%s83] sm:$0xf]
  %v85 = vld [vmem:[%s83 + $0x4] sm:$0xf]
  %s86 = scalar_lea.vmem %s0, 88
  %v87 = vld [vmem:[%s86] sm:$0xf]
  %v88 = vld [vmem:[%s86 + $0x4] sm:$0xf]
  %s89 = scalar_lea.vmem %s0, 96
  %v90 = vld [vmem:[%s89] sm:$0xf]
  %v91 = vld [vmem:[%s89 + $0x4] sm:$0xf]
  %s92 = scalar_lea.vmem %s0, 104
  %v93 = vld [vmem:[%s92] sm:$0xf]
  %v94 = vld [vmem:[%s92 + $0x4] sm:$0xf]
  %s95 = scalar_lea.vmem %s0, 112
  %v96 = vld [vmem:[%s95] sm:$0xf]
  %v97 = vld [vmem:[%s95 + $0x4] sm:$0xf]
  %s98 = scalar_lea.vmem %s0, 120
  %v99 = vld [vmem:[%s98] sm:$0xf]
  %v100 = vld [vmem:[%s98 + $0x4] sm:$0xf]
  %v101 = vld [vmem:[%s1] sm:$0xf]
  %v102 = vld [vmem:[%s1 + $0x4] sm:$0xf]
  %v103 = vld [vmem:[%s1 + $0x8] sm:$0xf]
  %v104 = vld [vmem:[%s1 + $0xc] sm:$0xf]
  %v105 = vld [vmem:[%s1 + $0x10] sm:$0xf]
  %v106 = vld [vmem:[%s1 + $0x14] sm:$0xf]
  %v107 = vld [vmem:[%s1 + $0x18] sm:$0xf]
  %v108 = vld [vmem:[%s1 + $0x1c] sm:$0xf]
  %s109 = scalar_lea.vmem %s1, 32
  %v110 = vld [vmem:[%s109] sm:$0xf]
  %v111 = vld [vmem:[%s109 + $0x4] sm:$0xf]
  %v112 = vld [vmem:[%s109 + $0x8] sm:$0xf]
  %v113 = vld [vmem:[%s109 + $0xc] sm:$0xf]
  %v114 = vld [vmem:[%s109 + $0x10] sm:$0xf]
  %v115 = vld [vmem:[%s109 + $0x14] sm:$0xf]
  %v116 = vld [vmem:[%s109 + $0x18] sm:$0xf]
  %v117 = vld [vmem:[%s109 + $0x1c] sm:$0xf]
  %s118 = scalar_lea.vmem %s1, 64
  %v119 = vld [vmem:[%s118] sm:$0xf]
  %v120 = vld [vmem:[%s118 + $0x4] sm:$0xf]
  %v121 = vld [vmem:[%s118 + $0x8] sm:$0xf]
  %v122 = vld [vmem:[%s118 + $0xc] sm:$0xf]
  %v123 = vld [vmem:[%s118 + $0x10] sm:$0xf]
  %v124 = vld [vmem:[%s118 + $0x14] sm:$0xf]
  %v125 = vld [vmem:[%s118 + $0x18] sm:$0xf]
  %v126 = vld [vmem:[%s118 + $0x1c] sm:$0xf]
  %v127 = vld [vmem:[%s2] sm:$0x1]
  %v130 = vunpack.c.l.b16 %v57
  %v131 = vunpack.c.l.b16 %v58
  %v132 = vpack.c.b16 %v131, %v130
  %v141 = vunpack.c.l.b16 %v119
  %v142 = vunpack.c.l.b16 %v120
  %v143 = vunpack.c.l.b16 %v121
  %v144 = vunpack.c.l.b16 %v122
  %v145 = vunpack.c.l.b16 %v123
  %v146 = vunpack.c.l.b16 %v124
  %v147 = vunpack.c.l.b16 %v125
  %v148 = vunpack.c.l.b16 %v126
  %v149 = vpack.c.b16 %v142, %v141
  %v150 = vpack.c.b16 %v144, %v143
  %v151 = vpack.c.b16 %v146, %v145
  %v152 = vpack.c.b16 %v148, %v147
  %vm157 = vcmask 523264
  %v159 = vsel %vm157, %v132, 0
  %161 = vmatprep.subr.bf16.mxu0 0
  %162 = vmatpush1.bf16.msra.mxu0 0
  %163 = vmatprep.subr.bf16.mxu0 0
  %164 = vmatpush1.bf16.msra.mxu0 0
  %165 = vmatprep.subr.bf16.mxu0 0
  %166 = vmatpush1.bf16.msra.mxu0 0
  %167 = vmatprep.subr.bf16.mxu0 0
  %168 = vmatpush1.bf16.msra.mxu0 0
  %169 = vmatprep.subr.bf16.mxu0 0
  %170 = vmatpush1.bf16.msra.mxu0 %v152
  %171 = vmatprep.subr.bf16.mxu0 0
  %172 = vmatpush1.bf16.msra.mxu0 %v151
  %173 = vmatprep.subr.bf16.mxu0 0
  %174 = vmatpush1.bf16.msra.mxu0 %v150
  %175 = vmatprep.subr.bf16.mxu0 0
  %176 = vmatpush1.bf16.msra.mxu0 %v149
  %177 = vmatprep.subr.bf16.mxu0 0
  %178 = vmatpush2.bf16.msra.mxu0 0
  %179 = vmatprep.subr.bf16.mxu0 0
  %180 = vmatpush2.bf16.msra.mxu0 0
  %181 = vmatprep.subr.bf16.mxu0 0
  %182 = vmatpush2.bf16.msra.mxu0 0
  %183 = vmatprep.subr.bf16.mxu0 0
  %184 = vmatpush2.bf16.msra.mxu0 0
  %185 = vmatprep.subr.bf16.mxu0 0
  %186 = vmatpush2.bf16.msra.mxu0 0
  %187 = vmatprep.subr.bf16.mxu0 0
  %188 = vmatpush2.bf16.msra.mxu0 0
  %189 = vmatprep.subr.bf16.mxu0 0
  %190 = vmatpush2.bf16.msra.mxu0 0
  %191 = vmatprep.subr.bf16.mxu0 0
  %192 = vmatpush2.bf16.msra.mxu0 0
  %193 = vmatprep.mubr.bf16.mxu0 0
  %194 = vmatmul.mubr.bf16.gmra.mxu0 %v159
  %v195 = vpop.f32.mrf.mxu0
  %v196 = vadd.f32 0.0, %v195
  %v197 = vpop.f32.mrf.mxu0
  %v198 = vpop.f32.mrf.mxu0
  %v199 = vadd.f32 0.0, %v198
  %v200 = vpop.f32.mrf.mxu0
  %201 = vdwg.mxu0
  %v204 = vunpack.c.l.b16 %v54
  %v205 = vunpack.c.l.b16 %v55
  %v206 = vpack.c.b16 %v205, %v204
  %v215 = vunpack.c.l.b16 %v110
  %v216 = vunpack.c.l.b16 %v111
  %v217 = vunpack.c.l.b16 %v112
  %v218 = vunpack.c.l.b16 %v113
  %v219 = vunpack.c.l.b16 %v114
  %v220 = vunpack.c.l.b16 %v115
  %v221 = vunpack.c.l.b16 %v116
  %v222 = vunpack.c.l.b16 %v117
  %v223 = vpack.c.b16 %v216, %v215
  %v224 = vpack.c.b16 %v218, %v217
  %v225 = vpack.c.b16 %v220, %v219
  %v226 = vpack.c.b16 %v222, %v221
  %v232 = vsel %vm157, %v206, 0
  %234 = vmatprep.subr.bf16.mxu0 0
  %235 = vmatpush1.bf16.msra.mxu0 0
  %236 = vmatprep.subr.bf16.mxu0 0
  %237 = vmatpush1.bf16.msra.mxu0 0
  %238 = vmatprep.subr.bf16.mxu0 0
  %239 = vmatpush1.bf16.msra.mxu0 0
  %240 = vmatprep.subr.bf16.mxu0 0
  %241 = vmatpush1.bf16.msra.mxu0 0
  %242 = vmatprep.subr.bf16.mxu0 0
  %243 = vmatpush1.bf16.msra.mxu0 %v226
  %244 = vmatprep.subr.bf16.mxu0 0
  %245 = vmatpush1.bf16.msra.mxu0 %v225
  %246 = vmatprep.subr.bf16.mxu0 0
  %247 = vmatpush1.bf16.msra.mxu0 %v224
  %248 = vmatprep.subr.bf16.mxu0 0
  %249 = vmatpush1.bf16.msra.mxu0 %v223
  %250 = vmatprep.subr.bf16.mxu0 0
  %251 = vmatpush2.bf16.msra.mxu0 0
  %252 = vmatprep.subr.bf16.mxu0 0
  %253 = vmatpush2.bf16.msra.mxu0 0
  %254 = vmatprep.subr.bf16.mxu0 0
  %255 = vmatpush2.bf16.msra.mxu0 0
  %256 = vmatprep.subr.bf16.mxu0 0
  %257 = vmatpush2.bf16.msra.mxu0 0
  %258 = vmatprep.subr.bf16.mxu0 0
  %259 = vmatpush2.bf16.msra.mxu0 0
  %260 = vmatprep.subr.bf16.mxu0 0
  %261 = vmatpush2.bf16.msra.mxu0 0
  %262 = vmatprep.subr.bf16.mxu0 0
  %263 = vmatpush2.bf16.msra.mxu0 0
  %264 = vmatprep.subr.bf16.mxu0 0
  %265 = vmatpush2.bf16.msra.mxu0 0
  %266 = vmatprep.mubr.bf16.mxu0 0
  %267 = vmatmul.mubr.bf16.gmra.mxu0 %v232
  %v268 = vpop.f32.mrf.mxu0
  %v269 = vadd.f32 %v196, %v268
  %v270 = vpop.f32.mrf.mxu0
  %v271 = vpop.f32.mrf.mxu0
  %v272 = vadd.f32 %v199, %v271
  %v273 = vpop.f32.mrf.mxu0
  %274 = vdwg.mxu0
  %v276 = vlaneseq
  %v277 = vshrl.u32 %v276, 7
  %v278 = vsub.s32 0, %v277
  %v279 = vrot.slane %v127, %v278
  %v281 = vadd.f32 %v269, %v279
  %v282 = vadd.f32 %v272, %v279
  %v283 = vmax.f32 %v281, 0.0
  %v284 = vmax.f32 %v282, 0.0
  %v285 = vpack.c.bf16 %v284, %v283
  %v288 = vunpack.c.l.b16 %v63
  %v289 = vunpack.c.l.b16 %v64
  %v290 = vpack.c.b16 %v289, %v288
  %v292 = vsel %vm157, %v290, 0
  %294 = vmatprep.subr.bf16.mxu0 0
  %295 = vmatpush1.bf16.msra.mxu0 0
  %296 = vmatprep.subr.bf16.mxu0 0
  %297 = vmatpush1.bf16.msra.mxu0 0
  %298 = vmatprep.subr.bf16.mxu0 0
  %299 = vmatpush1.bf16.msra.mxu0 0
  %300 = vmatprep.subr.bf16.mxu0 0
  %301 = vmatpush1.bf16.msra.mxu0 0
  %302 = vmatprep.subr.bf16.mxu0 0
  %303 = vmatpush1.bf16.msra.mxu0 %v152
  %304 = vmatprep.subr.bf16.mxu0 0
  %305 = vmatpush1.bf16.msra.mxu0 %v151
  %306 = vmatprep.subr.bf16.mxu0 0
  %307 = vmatpush1.bf16.msra.mxu0 %v150
  %308 = vmatprep.subr.bf16.mxu0 0
  %309 = vmatpush1.bf16.msra.mxu0 %v149
  %310 = vmatprep.subr.bf16.mxu0 0
  %311 = vmatpush2.bf16.msra.mxu0 0
  %312 = vmatprep.subr.bf16.mxu0 0
  %313 = vmatpush2.bf16.msra.mxu0 0
  %314 = vmatprep.subr.bf16.mxu0 0
  %315 = vmatpush2.bf16.msra.mxu0 0
  %316 = vmatprep.subr.bf16.mxu0 0
  %317 = vmatpush2.bf16.msra.mxu0 0
  %318 = vmatprep.subr.bf16.mxu0 0
  %319 = vmatpush2.bf16.msra.mxu0 0
  %320 = vmatprep.subr.bf16.mxu0 0
  %321 = vmatpush2.bf16.msra.mxu0 0
  %322 = vmatprep.subr.bf16.mxu0 0
  %323 = vmatpush2.bf16.msra.mxu0 0
  %324 = vmatprep.subr.bf16.mxu0 0
  %325 = vmatpush2.bf16.msra.mxu0 0
  %326 = vmatprep.mubr.bf16.mxu0 0
  %327 = vmatmul.mubr.bf16.gmra.mxu0 %v292
  %v328 = vpop.f32.mrf.mxu0
  %v329 = vadd.f32 0.0, %v328
  %v330 = vpop.f32.mrf.mxu0
  %v331 = vpop.f32.mrf.mxu0
  %v332 = vadd.f32 0.0, %v331
  %v333 = vpop.f32.mrf.mxu0
  %334 = vdwg.mxu0
  %v337 = vunpack.c.l.b16 %v60
  %v338 = vunpack.c.l.b16 %v61
  %v339 = vpack.c.b16 %v338, %v337
  %v341 = vsel %vm157, %v339, 0
  %343 = vmatprep.subr.bf16.mxu0 0
  %344 = vmatpush1.bf16.msra.mxu0 0
  %345 = vmatprep.subr.bf16.mxu0 0
  %346 = vmatpush1.bf16.msra.mxu0 0
  %347 = vmatprep.subr.bf16.mxu0 0
  %348 = vmatpush1.bf16.msra.mxu0 0
  %349 = vmatprep.subr.bf16.mxu0 0
  %350 = vmatpush1.bf16.msra.mxu0 0
  %351 = vmatprep.subr.bf16.mxu0 0
  %352 = vmatpush1.bf16.msra.mxu0 %v226
  %353 = vmatprep.subr.bf16.mxu0 0
  %354 = vmatpush1.bf16.msra.mxu0 %v225
  %355 = vmatprep.subr.bf16.mxu0 0
  %356 = vmatpush1.bf16.msra.mxu0 %v224
  %357 = vmatprep.subr.bf16.mxu0 0
  %358 = vmatpush1.bf16.msra.mxu0 %v223
  %359 = vmatprep.subr.bf16.mxu0 0
  %360 = vmatpush2.bf16.msra.mxu0 0
  %361 = vmatprep.subr.bf16.mxu0 0
  %362 = vmatpush2.bf16.msra.mxu0 0
  %363 = vmatprep.subr.bf16.mxu0 0
  %364 = vmatpush2.bf16.msra.mxu0 0
  %365 = vmatprep.subr.bf16.mxu0 0
  %366 = vmatpush2.bf16.msra.mxu0 0
  %367 = vmatprep.subr.bf16.mxu0 0
  %368 = vmatpush2.bf16.msra.mxu0 0
  %369 = vmatprep.subr.bf16.mxu0 0
  %370 = vmatpush2.bf16.msra.mxu0 0
  %371 = vmatprep.subr.bf16.mxu0 0
  %372 = vmatpush2.bf16.msra.mxu0 0
  %373 = vmatprep.subr.bf16.mxu0 0
  %374 = vmatpush2.bf16.msra.mxu0 0
  %375 = vmatprep.mubr.bf16.mxu0 0
  %376 = vmatmul.mubr.bf16.gmra.mxu0 %v341
  %v377 = vpop.f32.mrf.mxu0
  %v378 = vadd.f32 %v329, %v377
  %v379 = vpop.f32.mrf.mxu0
  %v380 = vpop.f32.mrf.mxu0
  %v381 = vadd.f32 %v332, %v380
  %v382 = vpop.f32.mrf.mxu0
  %383 = vdwg.mxu0
  %v392 = vunpack.c.l.b16 %v101
  %v393 = vunpack.c.l.b16 %v102
  %v394 = vunpack.c.l.b16 %v103
  %v395 = vunpack.c.l.b16 %v104
  %v396 = vunpack.c.l.b16 %v105
  %v397 = vunpack.c.l.b16 %v106
  %v398 = vunpack.c.l.b16 %v107
  %v399 = vunpack.c.l.b16 %v108
  %v400 = vpack.c.b16 %v393, %v392
  %v401 = vpack.c.b16 %v395, %v394
  %v402 = vpack.c.b16 %v397, %v396
  %v403 = vpack.c.b16 %v399, %v398
  %408 = vmatprep.subr.bf16.mxu0 0
  %409 = vmatpush1.bf16.msra.mxu0 0
  %410 = vmatprep.subr.bf16.mxu0 0
  %411 = vmatpush1.bf16.msra.mxu0 0
  %412 = vmatprep.subr.bf16.mxu0 0
  %413 = vmatpush1.bf16.msra.mxu0 0
  %414 = vmatprep.subr.bf16.mxu0 0
  %415 = vmatpush1.bf16.msra.mxu0 0
  %416 = vmatprep.subr.bf16.mxu0 0
  %417 = vmatpush1.bf16.msra.mxu0 %v403
  %418 = vmatprep.subr.bf16.mxu0 0
  %419 = vmatpush1.bf16.msra.mxu0 %v402
  %420 = vmatprep.subr.bf16.mxu0 0
  %421 = vmatpush1.bf16.msra.mxu0 %v401
  %422 = vmatprep.subr.bf16.mxu0 0
  %423 = vmatpush1.bf16.msra.mxu0 %v400
  %424 = vmatprep.subr.bf16.mxu0 0
  %425 = vmatpush2.bf16.msra.mxu0 0
  %426 = vmatprep.subr.bf16.mxu0 0
  %427 = vmatpush2.bf16.msra.mxu0 0
  %428 = vmatprep.subr.bf16.mxu0 0
  %429 = vmatpush2.bf16.msra.mxu0 0
  %430 = vmatprep.subr.bf16.mxu0 0
  %431 = vmatpush2.bf16.msra.mxu0 0
  %432 = vmatprep.subr.bf16.mxu0 0
  %433 = vmatpush2.bf16.msra.mxu0 0
  %434 = vmatprep.subr.bf16.mxu0 0
  %435 = vmatpush2.bf16.msra.mxu0 0
  %436 = vmatprep.subr.bf16.mxu0 0
  %437 = vmatpush2.bf16.msra.mxu0 0
  %438 = vmatprep.subr.bf16.mxu0 0
  %439 = vmatpush2.bf16.msra.mxu0 0
  %440 = vmatprep.mubr.bf16.mxu0 0
  %441 = vmatmul.mubr.bf16.gmra.mxu0 %v159
  %v442 = vpop.f32.mrf.mxu0
  %v443 = vadd.f32 0.0, %v442
  %v444 = vpop.f32.mrf.mxu0
  %v445 = vpop.f32.mrf.mxu0
  %v446 = vadd.f32 0.0, %v445
  %v447 = vpop.f32.mrf.mxu0
  %448 = vdwg.mxu0
  %v449 = vadd.f32 %v378, %v443
  %v450 = vadd.f32 %v381, %v446
  %v451 = vadd.f32 %v449, %v279
  %v452 = vadd.f32 %v450, %v279
  %v453 = vmax.f32 %v451, 0.0
  %v454 = vmax.f32 %v452, 0.0
  %v455 = vpack.c.bf16 %v454, %v453
  %v458 = vunpack.c.l.b16 %v69
  %v459 = vunpack.c.l.b16 %v70
  %v460 = vpack.c.b16 %v459, %v458
  %v462 = vsel %vm157, %v460, 0
  %464 = vmatprep.subr.bf16.mxu0 0
  %465 = vmatpush1.bf16.msra.mxu0 0
  %466 = vmatprep.subr.bf16.mxu0 0
  %467 = vmatpush1.bf16.msra.mxu0 0
  %468 = vmatprep.subr.bf16.mxu0 0
  %469 = vmatpush1.bf16.msra.mxu0 0
  %470 = vmatprep.subr.bf16.mxu0 0
  %471 = vmatpush1.bf16.msra.mxu0 0
  %472 = vmatprep.subr.bf16.mxu0 0
  %473 = vmatpush1.bf16.msra.mxu0 %v152
  %474 = vmatprep.subr.bf16.mxu0 0
  %475 = vmatpush1.bf16.msra.mxu0 %v151
  %476 = vmatprep.subr.bf16.mxu0 0
  %477 = vmatpush1.bf16.msra.mxu0 %v150
  %478 = vmatprep.subr.bf16.mxu0 0
  %479 = vmatpush1.bf16.msra.mxu0 %v149
  %480 = vmatprep.subr.bf16.mxu0 0
  %481 = vmatpush2.bf16.msra.mxu0 0
  %482 = vmatprep.subr.bf16.mxu0 0
  %483 = vmatpush2.bf16.msra.mxu0 0
  %484 = vmatprep.subr.bf16.mxu0 0
  %485 = vmatpush2.bf16.msra.mxu0 0
  %486 = vmatprep.subr.bf16.mxu0 0
  %487 = vmatpush2.bf16.msra.mxu0 0
  %488 = vmatprep.subr.bf16.mxu0 0
  %489 = vmatpush2.bf16.msra.mxu0 0
  %490 = vmatprep.subr.bf16.mxu0 0
  %491 = vmatpush2.bf16.msra.mxu0 0
  %492 = vmatprep.subr.bf16.mxu0 0
  %493 = vmatpush2.bf16.msra.mxu0 0
  %494 = vmatprep.subr.bf16.mxu0 0
  %495 = vmatpush2.bf16.msra.mxu0 0
  %496 = vmatprep.mubr.bf16.mxu0 0
  %497 = vmatmul.mubr.bf16.gmra.mxu0 %v462
  %v498 = vpop.f32.mrf.mxu0
  %v499 = vadd.f32 0.0, %v498
  %v500 = vpop.f32.mrf.mxu0
  %v501 = vpop.f32.mrf.mxu0
  %v502 = vadd.f32 0.0, %v501
  %v503 = vpop.f32.mrf.mxu0
  %504 = vdwg.mxu0
  %v507 = vunpack.c.l.b16 %v66
  %v508 = vunpack.c.l.b16 %v67
  %v509 = vpack.c.b16 %v508, %v507
  %v511 = vsel %vm157, %v509, 0
  %513 = vmatprep.subr.bf16.mxu0 0
  %514 = vmatpush1.bf16.msra.mxu0 0
  %515 = vmatprep.subr.bf16.mxu0 0
  %516 = vmatpush1.bf16.msra.mxu0 0
  %517 = vmatprep.subr.bf16.mxu0 0
  %518 = vmatpush1.bf16.msra.mxu0 0
  %519 = vmatprep.subr.bf16.mxu0 0
  %520 = vmatpush1.bf16.msra.mxu0 0
  %521 = vmatprep.subr.bf16.mxu0 0
  %522 = vmatpush1.bf16.msra.mxu0 %v226
  %523 = vmatprep.subr.bf16.mxu0 0
  %524 = vmatpush1.bf16.msra.mxu0 %v225
  %525 = vmatprep.subr.bf16.mxu0 0
  %526 = vmatpush1.bf16.msra.mxu0 %v224
  %527 = vmatprep.subr.bf16.mxu0 0
  %528 = vmatpush1.bf16.msra.mxu0 %v223
  %529 = vmatprep.subr.bf16.mxu0 0
  %530 = vmatpush2.bf16.msra.mxu0 0
  %531 = vmatprep.subr.bf16.mxu0 0
  %532 = vmatpush2.bf16.msra.mxu0 0
  %533 = vmatprep.subr.bf16.mxu0 0
  %534 = vmatpush2.bf16.msra.mxu0 0
  %535 = vmatprep.subr.bf16.mxu0 0
  %536 = vmatpush2.bf16.msra.mxu0 0
  %537 = vmatprep.subr.bf16.mxu0 0
  %538 = vmatpush2.bf16.msra.mxu0 0
  %539 = vmatprep.subr.bf16.mxu0 0
  %540 = vmatpush2.bf16.msra.mxu0 0
  %541 = vmatprep.subr.bf16.mxu0 0
  %542 = vmatpush2.bf16.msra.mxu0 0
  %543 = vmatprep.subr.bf16.mxu0 0
  %544 = vmatpush2.bf16.msra.mxu0 0
  %545 = vmatprep.mubr.bf16.mxu0 0
  %546 = vmatmul.mubr.bf16.gmra.mxu0 %v511
  %v547 = vpop.f32.mrf.mxu0
  %v548 = vadd.f32 %v499, %v547
  %v549 = vpop.f32.mrf.mxu0
  %v550 = vpop.f32.mrf.mxu0
  %v551 = vadd.f32 %v502, %v550
  %v552 = vpop.f32.mrf.mxu0
  %553 = vdwg.mxu0
  %554 = vmatprep.subr.bf16.mxu0 0
  %555 = vmatpush1.bf16.msra.mxu0 0
  %556 = vmatprep.subr.bf16.mxu0 0
  %557 = vmatpush1.bf16.msra.mxu0 0
  %558 = vmatprep.subr.bf16.mxu0 0
  %559 = vmatpush1.bf16.msra.mxu0 0
  %560 = vmatprep.subr.bf16.mxu0 0
  %561 = vmatpush1.bf16.msra.mxu0 0
  %562 = vmatprep.subr.bf16.mxu0 0
  %563 = vmatpush1.bf16.msra.mxu0 %v403
  %564 = vmatprep.subr.bf16.mxu0 0
  %565 = vmatpush1.bf16.msra.mxu0 %v402
  %566 = vmatprep.subr.bf16.mxu0 0
  %567 = vmatpush1.bf16.msra.mxu0 %v401
  %568 = vmatprep.subr.bf16.mxu0 0
  %569 = vmatpush1.bf16.msra.mxu0 %v400
  %570 = vmatprep.subr.bf16.mxu0 0
  %571 = vmatpush2.bf16.msra.mxu0 0
  %572 = vmatprep.subr.bf16.mxu0 0
  %573 = vmatpush2.bf16.msra.mxu0 0
  %574 = vmatprep.subr.bf16.mxu0 0
  %575 = vmatpush2.bf16.msra.mxu0 0
  %576 = vmatprep.subr.bf16.mxu0 0
  %577 = vmatpush2.bf16.msra.mxu0 0
  %578 = vmatprep.subr.bf16.mxu0 0
  %579 = vmatpush2.bf16.msra.mxu0 0
  %580 = vmatprep.subr.bf16.mxu0 0
  %581 = vmatpush2.bf16.msra.mxu0 0
  %582 = vmatprep.subr.bf16.mxu0 0
  %583 = vmatpush2.bf16.msra.mxu0 0
  %584 = vmatprep.subr.bf16.mxu0 0
  %585 = vmatpush2.bf16.msra.mxu0 0
  %586 = vmatprep.mubr.bf16.mxu0 0
  %587 = vmatmul.mubr.bf16.gmra.mxu0 %v292
  %v588 = vpop.f32.mrf.mxu0
  %v589 = vadd.f32 0.0, %v588
  %v590 = vpop.f32.mrf.mxu0
  %v591 = vpop.f32.mrf.mxu0
  %v592 = vadd.f32 0.0, %v591
  %v593 = vpop.f32.mrf.mxu0
  %594 = vdwg.mxu0
  %v595 = vadd.f32 %v548, %v589
  %v596 = vadd.f32 %v551, %v592
  %v597 = vadd.f32 %v595, %v279
  %v598 = vadd.f32 %v596, %v279
  %v599 = vmax.f32 %v597, 0.0
  %v600 = vmax.f32 %v598, 0.0
  %v601 = vpack.c.bf16 %v600, %v599
  %v604 = vunpack.c.l.b16 %v75
  %v605 = vunpack.c.l.b16 %v76
  %v606 = vpack.c.b16 %v605, %v604
  %v608 = vsel %vm157, %v606, 0
  %610 = vmatprep.subr.bf16.mxu0 0
  %611 = vmatpush1.bf16.msra.mxu0 0
  %612 = vmatprep.subr.bf16.mxu0 0
  %613 = vmatpush1.bf16.msra.mxu0 0
  %614 = vmatprep.subr.bf16.mxu0 0
  %615 = vmatpush1.bf16.msra.mxu0 0
  %616 = vmatprep.subr.bf16.mxu0 0
  %617 = vmatpush1.bf16.msra.mxu0 0
  %618 = vmatprep.subr.bf16.mxu0 0
  %619 = vmatpush1.bf16.msra.mxu0 %v152
  %620 = vmatprep.subr.bf16.mxu0 0
  %621 = vmatpush1.bf16.msra.mxu0 %v151
  %622 = vmatprep.subr.bf16.mxu0 0
  %623 = vmatpush1.bf16.msra.mxu0 %v150
  %624 = vmatprep.subr.bf16.mxu0 0
  %625 = vmatpush1.bf16.msra.mxu0 %v149
  %626 = vmatprep.subr.bf16.mxu0 0
  %627 = vmatpush2.bf16.msra.mxu0 0
  %628 = vmatprep.subr.bf16.mxu0 0
  %629 = vmatpush2.bf16.msra.mxu0 0
  %630 = vmatprep.subr.bf16.mxu0 0
  %631 = vmatpush2.bf16.msra.mxu0 0
  %632 = vmatprep.subr.bf16.mxu0 0
  %633 = vmatpush2.bf16.msra.mxu0 0
  %634 = vmatprep.subr.bf16.mxu0 0
  %635 = vmatpush2.bf16.msra.mxu0 0
  %636 = vmatprep.subr.bf16.mxu0 0
  %637 = vmatpush2.bf16.msra.mxu0 0
  %638 = vmatprep.subr.bf16.mxu0 0
  %639 = vmatpush2.bf16.msra.mxu0 0
  %640 = vmatprep.subr.bf16.mxu0 0
  %641 = vmatpush2.bf16.msra.mxu0 0
  %642 = vmatprep.mubr.bf16.mxu0 0
  %643 = vmatmul.mubr.bf16.gmra.mxu0 %v608
  %v644 = vpop.f32.mrf.mxu0
  %v645 = vadd.f32 0.0, %v644
  %v646 = vpop.f32.mrf.mxu0
  %v647 = vpop.f32.mrf.mxu0
  %v648 = vadd.f32 0.0, %v647
  %v649 = vpop.f32.mrf.mxu0
  %650 = vdwg.mxu0
  %v653 = vunpack.c.l.b16 %v72
  %v654 = vunpack.c.l.b16 %v73
  %v655 = vpack.c.b16 %v654, %v653
  %v657 = vsel %vm157, %v655, 0
  %659 = vmatprep.subr.bf16.mxu0 0
  %660 = vmatpush1.bf16.msra.mxu0 0
  %661 = vmatprep.subr.bf16.mxu0 0
  %662 = vmatpush1.bf16.msra.mxu0 0
  %663 = vmatprep.subr.bf16.mxu0 0
  %664 = vmatpush1.bf16.msra.mxu0 0
  %665 = vmatprep.subr.bf16.mxu0 0
  %666 = vmatpush1.bf16.msra.mxu0 0
  %667 = vmatprep.subr.bf16.mxu0 0
  %668 = vmatpush1.bf16.msra.mxu0 %v226
  %669 = vmatprep.subr.bf16.mxu0 0
  %670 = vmatpush1.bf16.msra.mxu0 %v225
  %671 = vmatprep.subr.bf16.mxu0 0
  %672 = vmatpush1.bf16.msra.mxu0 %v224
  %673 = vmatprep.subr.bf16.mxu0 0
  %674 = vmatpush1.bf16.msra.mxu0 %v223
  %675 = vmatprep.subr.bf16.mxu0 0
  %676 = vmatpush2.bf16.msra.mxu0 0
  %677 = vmatprep.subr.bf16.mxu0 0
  %678 = vmatpush2.bf16.msra.mxu0 0
  %679 = vmatprep.subr.bf16.mxu0 0
  %680 = vmatpush2.bf16.msra.mxu0 0
  %681 = vmatprep.subr.bf16.mxu0 0
  %682 = vmatpush2.bf16.msra.mxu0 0
  %683 = vmatprep.subr.bf16.mxu0 0
  %684 = vmatpush2.bf16.msra.mxu0 0
  %685 = vmatprep.subr.bf16.mxu0 0
  %686 = vmatpush2.bf16.msra.mxu0 0
  %687 = vmatprep.subr.bf16.mxu0 0
  %688 = vmatpush2.bf16.msra.mxu0 0
  %689 = vmatprep.subr.bf16.mxu0 0
  %690 = vmatpush2.bf16.msra.mxu0 0
  %691 = vmatprep.mubr.bf16.mxu0 0
  %692 = vmatmul.mubr.bf16.gmra.mxu0 %v657
  %v693 = vpop.f32.mrf.mxu0
  %v694 = vadd.f32 %v645, %v693
  %v695 = vpop.f32.mrf.mxu0
  %v696 = vpop.f32.mrf.mxu0
  %v697 = vadd.f32 %v648, %v696
  %v698 = vpop.f32.mrf.mxu0
  %699 = vdwg.mxu0
  %700 = vmatprep.subr.bf16.mxu0 0
  %701 = vmatpush1.bf16.msra.mxu0 0
  %702 = vmatprep.subr.bf16.mxu0 0
  %703 = vmatpush1.bf16.msra.mxu0 0
  %704 = vmatprep.subr.bf16.mxu0 0
  %705 = vmatpush1.bf16.msra.mxu0 0
  %706 = vmatprep.subr.bf16.mxu0 0
  %707 = vmatpush1.bf16.msra.mxu0 0
  %708 = vmatprep.subr.bf16.mxu0 0
  %709 = vmatpush1.bf16.msra.mxu0 %v403
  %710 = vmatprep.subr.bf16.mxu0 0
  %711 = vmatpush1.bf16.msra.mxu0 %v402
  %712 = vmatprep.subr.bf16.mxu0 0
  %713 = vmatpush1.bf16.msra.mxu0 %v401
  %714 = vmatprep.subr.bf16.mxu0 0
  %715 = vmatpush1.bf16.msra.mxu0 %v400
  %716 = vmatprep.subr.bf16.mxu0 0
  %717 = vmatpush2.bf16.msra.mxu0 0
  %718 = vmatprep.subr.bf16.mxu0 0
  %719 = vmatpush2.bf16.msra.mxu0 0
  %720 = vmatprep.subr.bf16.mxu0 0
  %721 = vmatpush2.bf16.msra.mxu0 0
  %722 = vmatprep.subr.bf16.mxu0 0
  %723 = vmatpush2.bf16.msra.mxu0 0
  %724 = vmatprep.subr.bf16.mxu0 0
  %725 = vmatpush2.bf16.msra.mxu0 0
  %726 = vmatprep.subr.bf16.mxu0 0
  %727 = vmatpush2.bf16.msra.mxu0 0
  %728 = vmatprep.subr.bf16.mxu0 0
  %729 = vmatpush2.bf16.msra.mxu0 0
  %730 = vmatprep.subr.bf16.mxu0 0
  %731 = vmatpush2.bf16.msra.mxu0 0
  %732 = vmatprep.mubr.bf16.mxu0 0
  %733 = vmatmul.mubr.bf16.gmra.mxu0 %v462
  %v734 = vpop.f32.mrf.mxu0
  %v735 = vadd.f32 0.0, %v734
  %v736 = vpop.f32.mrf.mxu0
  %v737 = vpop.f32.mrf.mxu0
  %v738 = vadd.f32 0.0, %v737
  %v739 = vpop.f32.mrf.mxu0
  %740 = vdwg.mxu0
  %v741 = vadd.f32 %v694, %v735
  %v742 = vadd.f32 %v697, %v738
  %v743 = vadd.f32 %v741, %v279
  %v744 = vadd.f32 %v742, %v279
  %v745 = vmax.f32 %v743, 0.0
  %v746 = vmax.f32 %v744, 0.0
  %v747 = vpack.c.bf16 %v746, %v745
  %v750 = vunpack.c.l.b16 %v81
  %v751 = vunpack.c.l.b16 %v82
  %v752 = vpack.c.b16 %v751, %v750
  %v754 = vsel %vm157, %v752, 0
  %756 = vmatprep.subr.bf16.mxu0 0
  %757 = vmatpush1.bf16.msra.mxu0 0
  %758 = vmatprep.subr.bf16.mxu0 0
  %759 = vmatpush1.bf16.msra.mxu0 0
  %760 = vmatprep.subr.bf16.mxu0 0
  %761 = vmatpush1.bf16.msra.mxu0 0
  %762 = vmatprep.subr.bf16.mxu0 0
  %763 = vmatpush1.bf16.msra.mxu0 0
  %764 = vmatprep.subr.bf16.mxu0 0
  %765 = vmatpush1.bf16.msra.mxu0 %v152
  %766 = vmatprep.subr.bf16.mxu0 0
  %767 = vmatpush1.bf16.msra.mxu0 %v151
  %768 = vmatprep.subr.bf16.mxu0 0
  %769 = vmatpush1.bf16.msra.mxu0 %v150
  %770 = vmatprep.subr.bf16.mxu0 0
  %771 = vmatpush1.bf16.msra.mxu0 %v149
  %772 = vmatprep.subr.bf16.mxu0 0
  %773 = vmatpush2.bf16.msra.mxu0 0
  %774 = vmatprep.subr.bf16.mxu0 0
  %775 = vmatpush2.bf16.msra.mxu0 0
  %776 = vmatprep.subr.bf16.mxu0 0
  %777 = vmatpush2.bf16.msra.mxu0 0
  %778 = vmatprep.subr.bf16.mxu0 0
  %779 = vmatpush2.bf16.msra.mxu0 0
  %780 = vmatprep.subr.bf16.mxu0 0
  %781 = vmatpush2.bf16.msra.mxu0 0
  %782 = vmatprep.subr.bf16.mxu0 0
  %783 = vmatpush2.bf16.msra.mxu0 0
  %784 = vmatprep.subr.bf16.mxu0 0
  %785 = vmatpush2.bf16.msra.mxu0 0
  %786 = vmatprep.subr.bf16.mxu0 0
  %787 = vmatpush2.bf16.msra.mxu0 0
  %788 = vmatprep.mubr.bf16.mxu0 0
  %789 = vmatmul.mubr.bf16.gmra.mxu0 %v754
  %v790 = vpop.f32.mrf.mxu0
  %v791 = vadd.f32 0.0, %v790
  %v792 = vpop.f32.mrf.mxu0
  %v793 = vpop.f32.mrf.mxu0
  %v794 = vadd.f32 0.0, %v793
  %v795 = vpop.f32.mrf.mxu0
  %796 = vdwg.mxu0
  %v799 = vunpack.c.l.b16 %v78
  %v800 = vunpack.c.l.b16 %v79
  %v801 = vpack.c.b16 %v800, %v799
  %v803 = vsel %vm157, %v801, 0
  %805 = vmatprep.subr.bf16.mxu0 0
  %806 = vmatpush1.bf16.msra.mxu0 0
  %807 = vmatprep.subr.bf16.mxu0 0
  %808 = vmatpush1.bf16.msra.mxu0 0
  %809 = vmatprep.subr.bf16.mxu0 0
  %810 = vmatpush1.bf16.msra.mxu0 0
  %811 = vmatprep.subr.bf16.mxu0 0
  %812 = vmatpush1.bf16.msra.mxu0 0
  %813 = vmatprep.subr.bf16.mxu0 0
  %814 = vmatpush1.bf16.msra.mxu0 %v226
  %815 = vmatprep.subr.bf16.mxu0 0
  %816 = vmatpush1.bf16.msra.mxu0 %v225
  %817 = vmatprep.subr.bf16.mxu0 0
  %818 = vmatpush1.bf16.msra.mxu0 %v224
  %819 = vmatprep.subr.bf16.mxu0 0
  %820 = vmatpush1.bf16.msra.mxu0 %v223
  %821 = vmatprep.subr.bf16.mxu0 0
  %822 = vmatpush2.bf16.msra.mxu0 0
  %823 = vmatprep.subr.bf16.mxu0 0
  %824 = vmatpush2.bf16.msra.mxu0 0
  %825 = vmatprep.subr.bf16.mxu0 0
  %826 = vmatpush2.bf16.msra.mxu0 0
  %827 = vmatprep.subr.bf16.mxu0 0
  %828 = vmatpush2.bf16.msra.mxu0 0
  %829 = vmatprep.subr.bf16.mxu0 0
  %830 = vmatpush2.bf16.msra.mxu0 0
  %831 = vmatprep.subr.bf16.mxu0 0
  %832 = vmatpush2.bf16.msra.mxu0 0
  %833 = vmatprep.subr.bf16.mxu0 0
  %834 = vmatpush2.bf16.msra.mxu0 0
  %835 = vmatprep.subr.bf16.mxu0 0
  %836 = vmatpush2.bf16.msra.mxu0 0
  %837 = vmatprep.mubr.bf16.mxu0 0
  %838 = vmatmul.mubr.bf16.gmra.mxu0 %v803
  %v839 = vpop.f32.mrf.mxu0
  %v840 = vadd.f32 %v791, %v839
  %v841 = vpop.f32.mrf.mxu0
  %v842 = vpop.f32.mrf.mxu0
  %v843 = vadd.f32 %v794, %v842
  %v844 = vpop.f32.mrf.mxu0
  %845 = vdwg.mxu0
  %846 = vmatprep.subr.bf16.mxu0 0
  %847 = vmatpush1.bf16.msra.mxu0 0
  %848 = vmatprep.subr.bf16.mxu0 0
  %849 = vmatpush1.bf16.msra.mxu0 0
  %850 = vmatprep.subr.bf16.mxu0 0
  %851 = vmatpush1.bf16.msra.mxu0 0
  %852 = vmatprep.subr.bf16.mxu0 0
  %853 = vmatpush1.bf16.msra.mxu0 0
  %854 = vmatprep.subr.bf16.mxu0 0
  %855 = vmatpush1.bf16.msra.mxu0 %v403
  %856 = vmatprep.subr.bf16.mxu0 0
  %857 = vmatpush1.bf16.msra.mxu0 %v402
  %858 = vmatprep.subr.bf16.mxu0 0
  %859 = vmatpush1.bf16.msra.mxu0 %v401
  %860 = vmatprep.subr.bf16.mxu0 0
  %861 = vmatpush1.bf16.msra.mxu0 %v400
  %862 = vmatprep.subr.bf16.mxu0 0
  %863 = vmatpush2.bf16.msra.mxu0 0
  %864 = vmatprep.subr.bf16.mxu0 0
  %865 = vmatpush2.bf16.msra.mxu0 0
  %866 = vmatprep.subr.bf16.mxu0 0
  %867 = vmatpush2.bf16.msra.mxu0 0
  %868 = vmatprep.subr.bf16.mxu0 0
  %869 = vmatpush2.bf16.msra.mxu0 0
  %870 = vmatprep.subr.bf16.mxu0 0
  %871 = vmatpush2.bf16.msra.mxu0 0
  %872 = vmatprep.subr.bf16.mxu0 0
  %873 = vmatpush2.bf16.msra.mxu0 0
  %874 = vmatprep.subr.bf16.mxu0 0
  %875 = vmatpush2.bf16.msra.mxu0 0
  %876 = vmatprep.subr.bf16.mxu0 0
  %877 = vmatpush2.bf16.msra.mxu0 0
  %878 = vmatprep.mubr.bf16.mxu0 0
  %879 = vmatmul.mubr.bf16.gmra.mxu0 %v608
  %v880 = vpop.f32.mrf.mxu0
  %v881 = vadd.f32 0.0, %v880
  %v882 = vpop.f32.mrf.mxu0
  %v883 = vpop.f32.mrf.mxu0
  %v884 = vadd.f32 0.0, %v883
  %v885 = vpop.f32.mrf.mxu0
  %886 = vdwg.mxu0
  %v887 = vadd.f32 %v840, %v881
  %v888 = vadd.f32 %v843, %v884
  %v889 = vadd.f32 %v887, %v279
  %v890 = vadd.f32 %v888, %v279
  %v891 = vmax.f32 %v889, 0.0
  %v892 = vmax.f32 %v890, 0.0
  %v893 = vpack.c.bf16 %v892, %v891
  %v896 = vunpack.c.l.b16 %v87
  %v897 = vunpack.c.l.b16 %v88
  %v898 = vpack.c.b16 %v897, %v896
  %v900 = vsel %vm157, %v898, 0
  %902 = vmatprep.subr.bf16.mxu0 0
  %903 = vmatpush1.bf16.msra.mxu0 0
  %904 = vmatprep.subr.bf16.mxu0 0
  %905 = vmatpush1.bf16.msra.mxu0 0
  %906 = vmatprep.subr.bf16.mxu0 0
  %907 = vmatpush1.bf16.msra.mxu0 0
  %908 = vmatprep.subr.bf16.mxu0 0
  %909 = vmatpush1.bf16.msra.mxu0 0
  %910 = vmatprep.subr.bf16.mxu0 0
  %911 = vmatpush1.bf16.msra.mxu0 %v152
  %912 = vmatprep.subr.bf16.mxu0 0
  %913 = vmatpush1.bf16.msra.mxu0 %v151
  %914 = vmatprep.subr.bf16.mxu0 0
  %915 = vmatpush1.bf16.msra.mxu0 %v150
  %916 = vmatprep.subr.bf16.mxu0 0
  %917 = vmatpush1.bf16.msra.mxu0 %v149
  %918 = vmatprep.subr.bf16.mxu0 0
  %919 = vmatpush2.bf16.msra.mxu0 0
  %920 = vmatprep.subr.bf16.mxu0 0
  %921 = vmatpush2.bf16.msra.mxu0 0
  %922 = vmatprep.subr.bf16.mxu0 0
  %923 = vmatpush2.bf16.msra.mxu0 0
  %924 = vmatprep.subr.bf16.mxu0 0
  %925 = vmatpush2.bf16.msra.mxu0 0
  %926 = vmatprep.subr.bf16.mxu0 0
  %927 = vmatpush2.bf16.msra.mxu0 0
  %928 = vmatprep.subr.bf16.mxu0 0
  %929 = vmatpush2.bf16.msra.mxu0 0
  %930 = vmatprep.subr.bf16.mxu0 0
  %931 = vmatpush2.bf16.msra.mxu0 0
  %932 = vmatprep.subr.bf16.mxu0 0
  %933 = vmatpush2.bf16.msra.mxu0 0
  %934 = vmatprep.mubr.bf16.mxu0 0
  %935 = vmatmul.mubr.bf16.gmra.mxu0 %v900
  %v936 = vpop.f32.mrf.mxu0
  %v937 = vadd.f32 0.0, %v936
  %v938 = vpop.f32.mrf.mxu0
  %v939 = vpop.f32.mrf.mxu0
  %v940 = vadd.f32 0.0, %v939
  %v941 = vpop.f32.mrf.mxu0
  %942 = vdwg.mxu0
  %v945 = vunpack.c.l.b16 %v84
  %v946 = vunpack.c.l.b16 %v85
  %v947 = vpack.c.b16 %v946, %v945
  %v949 = vsel %vm157, %v947, 0
  %951 = vmatprep.subr.bf16.mxu0 0
  %952 = vmatpush1.bf16.msra.mxu0 0
  %953 = vmatprep.subr.bf16.mxu0 0
  %954 = vmatpush1.bf16.msra.mxu0 0
  %955 = vmatprep.subr.bf16.mxu0 0
  %956 = vmatpush1.bf16.msra.mxu0 0
  %957 = vmatprep.subr.bf16.mxu0 0
  %958 = vmatpush1.bf16.msra.mxu0 0
  %959 = vmatprep.subr.bf16.mxu0 0
  %960 = vmatpush1.bf16.msra.mxu0 %v226
  %961 = vmatprep.subr.bf16.mxu0 0
  %962 = vmatpush1.bf16.msra.mxu0 %v225
  %963 = vmatprep.subr.bf16.mxu0 0
  %964 = vmatpush1.bf16.msra.mxu0 %v224
  %965 = vmatprep.subr.bf16.mxu0 0
  %966 = vmatpush1.bf16.msra.mxu0 %v223
  %967 = vmatprep.subr.bf16.mxu0 0
  %968 = vmatpush2.bf16.msra.mxu0 0
  %969 = vmatprep.subr.bf16.mxu0 0
  %970 = vmatpush2.bf16.msra.mxu0 0
  %971 = vmatprep.subr.bf16.mxu0 0
  %972 = vmatpush2.bf16.msra.mxu0 0
  %973 = vmatprep.subr.bf16.mxu0 0
  %974 = vmatpush2.bf16.msra.mxu0 0
  %975 = vmatprep.subr.bf16.mxu0 0
  %976 = vmatpush2.bf16.msra.mxu0 0
  %977 = vmatprep.subr.bf16.mxu0 0
  %978 = vmatpush2.bf16.msra.mxu0 0
  %979 = vmatprep.subr.bf16.mxu0 0
  %980 = vmatpush2.bf16.msra.mxu0 0
  %981 = vmatprep.subr.bf16.mxu0 0
  %982 = vmatpush2.bf16.msra.mxu0 0
  %983 = vmatprep.mubr.bf16.mxu0 0
  %984 = vmatmul.mubr.bf16.gmra.mxu0 %v949
  %v985 = vpop.f32.mrf.mxu0
  %v986 = vadd.f32 %v937, %v985
  %v987 = vpop.f32.mrf.mxu0
  %v988 = vpop.f32.mrf.mxu0
  %v989 = vadd.f32 %v940, %v988
  %v990 = vpop.f32.mrf.mxu0
  %991 = vdwg.mxu0
  %992 = vmatprep.subr.bf16.mxu0 0
  %993 = vmatpush1.bf16.msra.mxu0 0
  %994 = vmatprep.subr.bf16.mxu0 0
  %995 = vmatpush1.bf16.msra.mxu0 0
  %996 = vmatprep.subr.bf16.mxu0 0
  %997 = vmatpush1.bf16.msra.mxu0 0
  %998 = vmatprep.subr.bf16.mxu0 0
  %999 = vmatpush1.bf16.msra.mxu0 0
  %1000 = vmatprep.subr.bf16.mxu0 0
  %1001 = vmatpush1.bf16.msra.mxu0 %v403
  %1002 = vmatprep.subr.bf16.mxu0 0
  %1003 = vmatpush1.bf16.msra.mxu0 %v402
  %1004 = vmatprep.subr.bf16.mxu0 0
  %1005 = vmatpush1.bf16.msra.mxu0 %v401
  %1006 = vmatprep.subr.bf16.mxu0 0
  %1007 = vmatpush1.bf16.msra.mxu0 %v400
  %1008 = vmatprep.subr.bf16.mxu0 0
  %1009 = vmatpush2.bf16.msra.mxu0 0
  %1010 = vmatprep.subr.bf16.mxu0 0
  %1011 = vmatpush2.bf16.msra.mxu0 0
  %1012 = vmatprep.subr.bf16.mxu0 0
  %1013 = vmatpush2.bf16.msra.mxu0 0
  %1014 = vmatprep.subr.bf16.mxu0 0
  %1015 = vmatpush2.bf16.msra.mxu0 0
  %1016 = vmatprep.subr.bf16.mxu0 0
  %1017 = vmatpush2.bf16.msra.mxu0 0
  %1018 = vmatprep.subr.bf16.mxu0 0
  %1019 = vmatpush2.bf16.msra.mxu0 0
  %1020 = vmatprep.subr.bf16.mxu0 0
  %1021 = vmatpush2.bf16.msra.mxu0 0
  %1022 = vmatprep.subr.bf16.mxu0 0
  %1023 = vmatpush2.bf16.msra.mxu0 0
  %1024 = vmatprep.mubr.bf16.mxu0 0
  %1025 = vmatmul.mubr.bf16.gmra.mxu0 %v754
  %v1026 = vpop.f32.mrf.mxu0
  %v1027 = vadd.f32 0.0, %v1026
  %v1028 = vpop.f32.mrf.mxu0
  %v1029 = vpop.f32.mrf.mxu0
  %v1030 = vadd.f32 0.0, %v1029
  %v1031 = vpop.f32.mrf.mxu0
  %1032 = vdwg.mxu0
  %v1033 = vadd.f32 %v986, %v1027
  %v1034 = vadd.f32 %v989, %v1030
  %v1035 = vadd.f32 %v1033, %v279
  %v1036 = vadd.f32 %v1034, %v279
  %v1037 = vmax.f32 %v1035, 0.0
  %v1038 = vmax.f32 %v1036, 0.0
  %v1039 = vpack.c.bf16 %v1038, %v1037
  %v1042 = vunpack.c.l.b16 %v93
  %v1043 = vunpack.c.l.b16 %v94
  %v1044 = vpack.c.b16 %v1043, %v1042
  %v1046 = vsel %vm157, %v1044, 0
  %1048 = vmatprep.subr.bf16.mxu0 0
  %1049 = vmatpush1.bf16.msra.mxu0 0
  %1050 = vmatprep.subr.bf16.mxu0 0
  %1051 = vmatpush1.bf16.msra.mxu0 0
  %1052 = vmatprep.subr.bf16.mxu0 0
  %1053 = vmatpush1.bf16.msra.mxu0 0
  %1054 = vmatprep.subr.bf16.mxu0 0
  %1055 = vmatpush1.bf16.msra.mxu0 0
  %1056 = vmatprep.subr.bf16.mxu0 0
  %1057 = vmatpush1.bf16.msra.mxu0 %v152
  %1058 = vmatprep.subr.bf16.mxu0 0
  %1059 = vmatpush1.bf16.msra.mxu0 %v151
  %1060 = vmatprep.subr.bf16.mxu0 0
  %1061 = vmatpush1.bf16.msra.mxu0 %v150
  %1062 = vmatprep.subr.bf16.mxu0 0
  %1063 = vmatpush1.bf16.msra.mxu0 %v149
  %1064 = vmatprep.subr.bf16.mxu0 0
  %1065 = vmatpush2.bf16.msra.mxu0 0
  %1066 = vmatprep.subr.bf16.mxu0 0
  %1067 = vmatpush2.bf16.msra.mxu0 0
  %1068 = vmatprep.subr.bf16.mxu0 0
  %1069 = vmatpush2.bf16.msra.mxu0 0
  %1070 = vmatprep.subr.bf16.mxu0 0
  %1071 = vmatpush2.bf16.msra.mxu0 0
  %1072 = vmatprep.subr.bf16.mxu0 0
  %1073 = vmatpush2.bf16.msra.mxu0 0
  %1074 = vmatprep.subr.bf16.mxu0 0
  %1075 = vmatpush2.bf16.msra.mxu0 0
  %1076 = vmatprep.subr.bf16.mxu0 0
  %1077 = vmatpush2.bf16.msra.mxu0 0
  %1078 = vmatprep.subr.bf16.mxu0 0
  %1079 = vmatpush2.bf16.msra.mxu0 0
  %1080 = vmatprep.mubr.bf16.mxu0 0
  %1081 = vmatmul.mubr.bf16.gmra.mxu0 %v1046
  %v1082 = vpop.f32.mrf.mxu0
  %v1083 = vadd.f32 0.0, %v1082
  %v1084 = vpop.f32.mrf.mxu0
  %v1085 = vpop.f32.mrf.mxu0
  %v1086 = vadd.f32 0.0, %v1085
  %v1087 = vpop.f32.mrf.mxu0
  %1088 = vdwg.mxu0
  %v1091 = vunpack.c.l.b16 %v90
  %v1092 = vunpack.c.l.b16 %v91
  %v1093 = vpack.c.b16 %v1092, %v1091
  %v1095 = vsel %vm157, %v1093, 0
  %1097 = vmatprep.subr.bf16.mxu0 0
  %1098 = vmatpush1.bf16.msra.mxu0 0
  %1099 = vmatprep.subr.bf16.mxu0 0
  %1100 = vmatpush1.bf16.msra.mxu0 0
  %1101 = vmatprep.subr.bf16.mxu0 0
  %1102 = vmatpush1.bf16.msra.mxu0 0
  %1103 = vmatprep.subr.bf16.mxu0 0
  %1104 = vmatpush1.bf16.msra.mxu0 0
  %1105 = vmatprep.subr.bf16.mxu0 0
  %1106 = vmatpush1.bf16.msra.mxu0 %v226
  %1107 = vmatprep.subr.bf16.mxu0 0
  %1108 = vmatpush1.bf16.msra.mxu0 %v225
  %1109 = vmatprep.subr.bf16.mxu0 0
  %1110 = vmatpush1.bf16.msra.mxu0 %v224
  %1111 = vmatprep.subr.bf16.mxu0 0
  %1112 = vmatpush1.bf16.msra.mxu0 %v223
  %1113 = vmatprep.subr.bf16.mxu0 0
  %1114 = vmatpush2.bf16.msra.mxu0 0
  %1115 = vmatprep.subr.bf16.mxu0 0
  %1116 = vmatpush2.bf16.msra.mxu0 0
  %1117 = vmatprep.subr.bf16.mxu0 0
  %1118 = vmatpush2.bf16.msra.mxu0 0
  %1119 = vmatprep.subr.bf16.mxu0 0
  %1120 = vmatpush2.bf16.msra.mxu0 0
  %1121 = vmatprep.subr.bf16.mxu0 0
  %1122 = vmatpush2.bf16.msra.mxu0 0
  %1123 = vmatprep.subr.bf16.mxu0 0
  %1124 = vmatpush2.bf16.msra.mxu0 0
  %1125 = vmatprep.subr.bf16.mxu0 0
  %1126 = vmatpush2.bf16.msra.mxu0 0
  %1127 = vmatprep.subr.bf16.mxu0 0
  %1128 = vmatpush2.bf16.msra.mxu0 0
  %1129 = vmatprep.mubr.bf16.mxu0 0
  %1130 = vmatmul.mubr.bf16.gmra.mxu0 %v1095
  %v1131 = vpop.f32.mrf.mxu0
  %v1132 = vadd.f32 %v1083, %v1131
  %v1133 = vpop.f32.mrf.mxu0
  %v1134 = vpop.f32.mrf.mxu0
  %v1135 = vadd.f32 %v1086, %v1134
  %v1136 = vpop.f32.mrf.mxu0
  %1137 = vdwg.mxu0
  %1138 = vmatprep.subr.bf16.mxu0 0
  %1139 = vmatpush1.bf16.msra.mxu0 0
  %1140 = vmatprep.subr.bf16.mxu0 0
  %1141 = vmatpush1.bf16.msra.mxu0 0
  %1142 = vmatprep.subr.bf16.mxu0 0
  %1143 = vmatpush1.bf16.msra.mxu0 0
  %1144 = vmatprep.subr.bf16.mxu0 0
  %1145 = vmatpush1.bf16.msra.mxu0 0
  %1146 = vmatprep.subr.bf16.mxu0 0
  %1147 = vmatpush1.bf16.msra.mxu0 %v403
  %1148 = vmatprep.subr.bf16.mxu0 0
  %1149 = vmatpush1.bf16.msra.mxu0 %v402
  %1150 = vmatprep.subr.bf16.mxu0 0
  %1151 = vmatpush1.bf16.msra.mxu0 %v401
  %1152 = vmatprep.subr.bf16.mxu0 0
  %1153 = vmatpush1.bf16.msra.mxu0 %v400
  %1154 = vmatprep.subr.bf16.mxu0 0
  %1155 = vmatpush2.bf16.msra.mxu0 0
  %1156 = vmatprep.subr.bf16.mxu0 0
  %1157 = vmatpush2.bf16.msra.mxu0 0
  %1158 = vmatprep.subr.bf16.mxu0 0
  %1159 = vmatpush2.bf16.msra.mxu0 0
  %1160 = vmatprep.subr.bf16.mxu0 0
  %1161 = vmatpush2.bf16.msra.mxu0 0
  %1162 = vmatprep.subr.bf16.mxu0 0
  %1163 = vmatpush2.bf16.msra.mxu0 0
  %1164 = vmatprep.subr.bf16.mxu0 0
  %1165 = vmatpush2.bf16.msra.mxu0 0
  %1166 = vmatprep.subr.bf16.mxu0 0
  %1167 = vmatpush2.bf16.msra.mxu0 0
  %1168 = vmatprep.subr.bf16.mxu0 0
  %1169 = vmatpush2.bf16.msra.mxu0 0
  %1170 = vmatprep.mubr.bf16.mxu0 0
  %1171 = vmatmul.mubr.bf16.gmra.mxu0 %v900
  %v1172 = vpop.f32.mrf.mxu0
  %v1173 = vadd.f32 0.0, %v1172
  %v1174 = vpop.f32.mrf.mxu0
  %v1175 = vpop.f32.mrf.mxu0
  %v1176 = vadd.f32 0.0, %v1175
  %v1177 = vpop.f32.mrf.mxu0
  %1178 = vdwg.mxu0
  %v1179 = vadd.f32 %v1132, %v1173
  %v1180 = vadd.f32 %v1135, %v1176
  %v1181 = vadd.f32 %v1179, %v279
  %v1182 = vadd.f32 %v1180, %v279
  %v1183 = vmax.f32 %v1181, 0.0
  %v1184 = vmax.f32 %v1182, 0.0
  %v1185 = vpack.c.bf16 %v1184, %v1183
  %v1188 = vunpack.c.l.b16 %v99
  %v1189 = vunpack.c.l.b16 %v100
  %v1190 = vpack.c.b16 %v1189, %v1188
  %v1192 = vsel %vm157, %v1190, 0
  %1194 = vmatprep.subr.bf16.mxu0 0
  %1195 = vmatpush1.bf16.msra.mxu0 0
  %1196 = vmatprep.subr.bf16.mxu0 0
  %1197 = vmatpush1.bf16.msra.mxu0 0
  %1198 = vmatprep.subr.bf16.mxu0 0
  %1199 = vmatpush1.bf16.msra.mxu0 0
  %1200 = vmatprep.subr.bf16.mxu0 0
  %1201 = vmatpush1.bf16.msra.mxu0 0
  %1202 = vmatprep.subr.bf16.mxu0 0
  %1203 = vmatpush1.bf16.msra.mxu0 %v152
  %1204 = vmatprep.subr.bf16.mxu0 0
  %1205 = vmatpush1.bf16.msra.mxu0 %v151
  %1206 = vmatprep.subr.bf16.mxu0 0
  %1207 = vmatpush1.bf16.msra.mxu0 %v150
  %1208 = vmatprep.subr.bf16.mxu0 0
  %1209 = vmatpush1.bf16.msra.mxu0 %v149
  %1210 = vmatprep.subr.bf16.mxu0 0
  %1211 = vmatpush2.bf16.msra.mxu0 0
  %1212 = vmatprep.subr.bf16.mxu0 0
  %1213 = vmatpush2.bf16.msra.mxu0 0
  %1214 = vmatprep.subr.bf16.mxu0 0
  %1215 = vmatpush2.bf16.msra.mxu0 0
  %1216 = vmatprep.subr.bf16.mxu0 0
  %1217 = vmatpush2.bf16.msra.mxu0 0
  %1218 = vmatprep.subr.bf16.mxu0 0
  %1219 = vmatpush2.bf16.msra.mxu0 0
  %1220 = vmatprep.subr.bf16.mxu0 0
  %1221 = vmatpush2.bf16.msra.mxu0 0
  %1222 = vmatprep.subr.bf16.mxu0 0
  %1223 = vmatpush2.bf16.msra.mxu0 0
  %1224 = vmatprep.subr.bf16.mxu0 0
  %1225 = vmatpush2.bf16.msra.mxu0 0
  %1226 = vmatprep.mubr.bf16.mxu0 0
  %1227 = vmatmul.mubr.bf16.gmra.mxu0 %v1192
  %v1228 = vpop.f32.mrf.mxu0
  %v1229 = vadd.f32 0.0, %v1228
  %v1230 = vpop.f32.mrf.mxu0
  %v1231 = vpop.f32.mrf.mxu0
  %v1232 = vadd.f32 0.0, %v1231
  %v1233 = vpop.f32.mrf.mxu0
  %1234 = vdwg.mxu0
  %v1237 = vunpack.c.l.b16 %v96
  %v1238 = vunpack.c.l.b16 %v97
  %v1239 = vpack.c.b16 %v1238, %v1237
  %v1241 = vsel %vm157, %v1239, 0
  %1243 = vmatprep.subr.bf16.mxu0 0
  %1244 = vmatpush1.bf16.msra.mxu0 0
  %1245 = vmatprep.subr.bf16.mxu0 0
  %1246 = vmatpush1.bf16.msra.mxu0 0
  %1247 = vmatprep.subr.bf16.mxu0 0
  %1248 = vmatpush1.bf16.msra.mxu0 0
  %1249 = vmatprep.subr.bf16.mxu0 0
  %1250 = vmatpush1.bf16.msra.mxu0 0
  %1251 = vmatprep.subr.bf16.mxu0 0
  %1252 = vmatpush1.bf16.msra.mxu0 %v226
  %1253 = vmatprep.subr.bf16.mxu0 0
  %1254 = vmatpush1.bf16.msra.mxu0 %v225
  %1255 = vmatprep.subr.bf16.mxu0 0
  %1256 = vmatpush1.bf16.msra.mxu0 %v224
  %1257 = vmatprep.subr.bf16.mxu0 0
  %1258 = vmatpush1.bf16.msra.mxu0 %v223
  %1259 = vmatprep.subr.bf16.mxu0 0
  %1260 = vmatpush2.bf16.msra.mxu0 0
  %1261 = vmatprep.subr.bf16.mxu0 0
  %1262 = vmatpush2.bf16.msra.mxu0 0
  %1263 = vmatprep.subr.bf16.mxu0 0
  %1264 = vmatpush2.bf16.msra.mxu0 0
  %1265 = vmatprep.subr.bf16.mxu0 0
  %1266 = vmatpush2.bf16.msra.mxu0 0
  %1267 = vmatprep.subr.bf16.mxu0 0
  %1268 = vmatpush2.bf16.msra.mxu0 0
  %1269 = vmatprep.subr.bf16.mxu0 0
  %1270 = vmatpush2.bf16.msra.mxu0 0
  %1271 = vmatprep.subr.bf16.mxu0 0
  %1272 = vmatpush2.bf16.msra.mxu0 0
  %1273 = vmatprep.subr.bf16.mxu0 0
  %1274 = vmatpush2.bf16.msra.mxu0 0
  %1275 = vmatprep.mubr.bf16.mxu0 0
  %1276 = vmatmul.mubr.bf16.gmra.mxu0 %v1241
  %v1277 = vpop.f32.mrf.mxu0
  %v1278 = vadd.f32 %v1229, %v1277
  %v1279 = vpop.f32.mrf.mxu0
  %v1280 = vpop.f32.mrf.mxu0
  %v1281 = vadd.f32 %v1232, %v1280
  %v1282 = vpop.f32.mrf.mxu0
  %1283 = vdwg.mxu0
  %1284 = vmatprep.subr.bf16.mxu0 0
  %1285 = vmatpush1.bf16.msra.mxu0 0
  %1286 = vmatprep.subr.bf16.mxu0 0
  %1287 = vmatpush1.bf16.msra.mxu0 0
  %1288 = vmatprep.subr.bf16.mxu0 0
  %1289 = vmatpush1.bf16.msra.mxu0 0
  %1290 = vmatprep.subr.bf16.mxu0 0
  %1291 = vmatpush1.bf16.msra.mxu0 0
  %1292 = vmatprep.subr.bf16.mxu0 0
  %1293 = vmatpush1.bf16.msra.mxu0 %v403
  %1294 = vmatprep.subr.bf16.mxu0 0
  %1295 = vmatpush1.bf16.msra.mxu0 %v402
  %1296 = vmatprep.subr.bf16.mxu0 0
  %1297 = vmatpush1.bf16.msra.mxu0 %v401
  %1298 = vmatprep.subr.bf16.mxu0 0
  %1299 = vmatpush1.bf16.msra.mxu0 %v400
  %1300 = vmatprep.subr.bf16.mxu0 0
  %1301 = vmatpush2.bf16.msra.mxu0 0
  %1302 = vmatprep.subr.bf16.mxu0 0
  %1303 = vmatpush2.bf16.msra.mxu0 0
  %1304 = vmatprep.subr.bf16.mxu0 0
  %1305 = vmatpush2.bf16.msra.mxu0 0
  %1306 = vmatprep.subr.bf16.mxu0 0
  %1307 = vmatpush2.bf16.msra.mxu0 0
  %1308 = vmatprep.subr.bf16.mxu0 0
  %1309 = vmatpush2.bf16.msra.mxu0 0
  %1310 = vmatprep.subr.bf16.mxu0 0
  %1311 = vmatpush2.bf16.msra.mxu0 0
  %1312 = vmatprep.subr.bf16.mxu0 0
  %1313 = vmatpush2.bf16.msra.mxu0 0
  %1314 = vmatprep.subr.bf16.mxu0 0
  %1315 = vmatpush2.bf16.msra.mxu0 0
  %1316 = vmatprep.mubr.bf16.mxu0 0
  %1317 = vmatmul.mubr.bf16.gmra.mxu0 %v1046
  %v1318 = vpop.f32.mrf.mxu0
  %v1319 = vadd.f32 0.0, %v1318
  %v1320 = vpop.f32.mrf.mxu0
  %v1321 = vpop.f32.mrf.mxu0
  %v1322 = vadd.f32 0.0, %v1321
  %v1323 = vpop.f32.mrf.mxu0
  %1324 = vdwg.mxu0
  %v1325 = vadd.f32 %v1278, %v1319
  %v1326 = vadd.f32 %v1281, %v1322
  %v1327 = vadd.f32 %v1325, %v279
  %v1328 = vadd.f32 %v1326, %v279
  %v1329 = vmax.f32 %v1327, 0.0
  %v1330 = vmax.f32 %v1328, 0.0
  %v1331 = vpack.c.bf16 %v1330, %v1329
  %v1332 = vld [vmem:[%s3] sm:$0xf]
  %v1333 = vld [vmem:[%s3 + $0x4] sm:$0xf]
  %v1334 = vld [vmem:[%s3 + $0x8] sm:$0xf]
  %v1335 = vld [vmem:[%s3 + $0xc] sm:$0xf]
  %v1336 = vld [vmem:[%s3 + $0x10] sm:$0xf]
  %v1337 = vld [vmem:[%s3 + $0x14] sm:$0xf]
  %v1338 = vld [vmem:[%s3 + $0x18] sm:$0xf]
  %v1339 = vld [vmem:[%s3 + $0x1c] sm:$0xf]
  %v1340 = vld [vmem:[%s3 + $0x20] sm:$0xf]
  %v1341 = vld [vmem:[%s3 + $0x24] sm:$0xf]
  %v1342 = vld [vmem:[%s3 + $0x28] sm:$0xf]
  %v1343 = vld [vmem:[%s3 + $0x2c] sm:$0xf]
  %v1344 = vld [vmem:[%s3 + $0x30] sm:$0xf]
  %v1345 = vld [vmem:[%s3 + $0x34] sm:$0xf]
  %v1346 = vld [vmem:[%s3 + $0x38] sm:$0xf]
  %v1347 = vld [vmem:[%s3 + $0x3c] sm:$0xf]
  %s1348 = scalar_lea.vmem %s3, 64
  %v1349 = vld [vmem:[%s1348] sm:$0xf]
  %v1350 = vld [vmem:[%s1348 + $0x4] sm:$0xf]
  %v1351 = vld [vmem:[%s1348 + $0x8] sm:$0xf]
  %v1352 = vld [vmem:[%s1348 + $0xc] sm:$0xf]
  %v1353 = vld [vmem:[%s1348 + $0x10] sm:$0xf]
  %v1354 = vld [vmem:[%s1348 + $0x14] sm:$0xf]
  %v1355 = vld [vmem:[%s1348 + $0x18] sm:$0xf]
  %v1356 = vld [vmem:[%s1348 + $0x1c] sm:$0xf]
  %v1357 = vld [vmem:[%s1348 + $0x20] sm:$0xf]
  %v1358 = vld [vmem:[%s1348 + $0x24] sm:$0xf]
  %v1359 = vld [vmem:[%s1348 + $0x28] sm:$0xf]
  %v1360 = vld [vmem:[%s1348 + $0x2c] sm:$0xf]
  %v1361 = vld [vmem:[%s1348 + $0x30] sm:$0xf]
  %v1362 = vld [vmem:[%s1348 + $0x34] sm:$0xf]
  %v1363 = vld [vmem:[%s1348 + $0x38] sm:$0xf]
  %v1364 = vld [vmem:[%s1348 + $0x3c] sm:$0xf]
  %s1365 = scalar_lea.vmem %s3, 128
  %v1366 = vld [vmem:[%s1365] sm:$0xf]
  %v1367 = vld [vmem:[%s1365 + $0x4] sm:$0xf]
  %v1368 = vld [vmem:[%s1365 + $0x8] sm:$0xf]
  %v1369 = vld [vmem:[%s1365 + $0xc] sm:$0xf]
  %v1370 = vld [vmem:[%s1365 + $0x10] sm:$0xf]
  %v1371 = vld [vmem:[%s1365 + $0x14] sm:$0xf]
  %v1372 = vld [vmem:[%s1365 + $0x18] sm:$0xf]
  %v1373 = vld [vmem:[%s1365 + $0x1c] sm:$0xf]
  %v1374 = vld [vmem:[%s1365 + $0x20] sm:$0xf]
  %v1375 = vld [vmem:[%s1365 + $0x24] sm:$0xf]
  %v1376 = vld [vmem:[%s1365 + $0x28] sm:$0xf]
  %v1377 = vld [vmem:[%s1365 + $0x2c] sm:$0xf]
  %v1378 = vld [vmem:[%s1365 + $0x30] sm:$0xf]
  %v1379 = vld [vmem:[%s1365 + $0x34] sm:$0xf]
  %v1380 = vld [vmem:[%s1365 + $0x38] sm:$0xf]
  %v1381 = vld [vmem:[%s1365 + $0x3c] sm:$0xf]
  %v1382 = vld [vmem:[%s4] sm:$0x1]
  %v1399 = vunpack.c.l.b16 %v1366
  %v1400 = vunpack.c.l.b16 %v1367
  %v1401 = vunpack.c.l.b16 %v1368
  %v1402 = vunpack.c.l.b16 %v1369
  %v1403 = vunpack.c.l.b16 %v1370
  %v1404 = vunpack.c.l.b16 %v1371
  %v1405 = vunpack.c.l.b16 %v1372
  %v1406 = vunpack.c.l.b16 %v1373
  %v1407 = vunpack.c.l.b16 %v1374
  %v1408 = vunpack.c.l.b16 %v1375
  %v1409 = vunpack.c.l.b16 %v1376
  %v1410 = vunpack.c.l.b16 %v1377
  %v1411 = vunpack.c.l.b16 %v1378
  %v1412 = vunpack.c.l.b16 %v1379
  %v1413 = vunpack.c.l.b16 %v1380
  %v1414 = vunpack.c.l.b16 %v1381
  %v1415 = vpack.c.b16 %v1400, %v1399
  %v1416 = vpack.c.b16 %v1402, %v1401
  %v1417 = vpack.c.b16 %v1404, %v1403
  %v1418 = vpack.c.b16 %v1406, %v1405
  %v1419 = vpack.c.b16 %v1408, %v1407
  %v1420 = vpack.c.b16 %v1410, %v1409
  %v1421 = vpack.c.b16 %v1412, %v1411
  %v1422 = vpack.c.b16 %v1414, %v1413
  %1431 = vmatprep.subr.bf16.mxu0 0
  %1432 = vmatpush1.bf16.msra.mxu0 %v1422
  %1433 = vmatprep.subr.bf16.mxu0 0
  %1434 = vmatpush1.bf16.msra.mxu0 %v1421
  %1435 = vmatprep.subr.bf16.mxu0 0
  %1436 = vmatpush1.bf16.msra.mxu0 %v1420
  %1437 = vmatprep.subr.bf16.mxu0 0
  %1438 = vmatpush1.bf16.msra.mxu0 %v1419
  %1439 = vmatprep.subr.bf16.mxu0 0
  %1440 = vmatpush1.bf16.msra.mxu0 %v1418
  %1441 = vmatprep.subr.bf16.mxu0 0
  %1442 = vmatpush1.bf16.msra.mxu0 %v1417
  %1443 = vmatprep.subr.bf16.mxu0 0
  %1444 = vmatpush1.bf16.msra.mxu0 %v1416
  %1445 = vmatprep.subr.bf16.mxu0 0
  %1446 = vmatpush1.bf16.msra.mxu0 %v1415
  %1447 = vmatprep.subr.bf16.mxu0 0
  %1448 = vmatpush2.bf16.msra.mxu0 0
  %1449 = vmatprep.subr.bf16.mxu0 0
  %1450 = vmatpush2.bf16.msra.mxu0 0
  %1451 = vmatprep.subr.bf16.mxu0 0
  %1452 = vmatpush2.bf16.msra.mxu0 0
  %1453 = vmatprep.subr.bf16.mxu0 0
  %1454 = vmatpush2.bf16.msra.mxu0 0
  %1455 = vmatprep.subr.bf16.mxu0 0
  %1456 = vmatpush2.bf16.msra.mxu0 0
  %1457 = vmatprep.subr.bf16.mxu0 0
  %1458 = vmatpush2.bf16.msra.mxu0 0
  %1459 = vmatprep.subr.bf16.mxu0 0
  %1460 = vmatpush2.bf16.msra.mxu0 0
  %1461 = vmatprep.subr.bf16.mxu0 0
  %1462 = vmatpush2.bf16.msra.mxu0 0
  %1463 = vmatprep.mubr.bf16.mxu0 0
  %1464 = vmatmul.mubr.bf16.gmra.mxu0 %v455
  %v1465 = vpop.f32.mrf.mxu0
  %v1466 = vadd.f32 0.0, %v1465
  %v1467 = vpop.f32.mrf.mxu0
  %v1468 = vpop.f32.mrf.mxu0
  %v1469 = vadd.f32 0.0, %v1468
  %v1470 = vpop.f32.mrf.mxu0
  %1471 = vdwg.mxu0
  %v1488 = vunpack.c.l.b16 %v1349
  %v1489 = vunpack.c.l.b16 %v1350
  %v1490 = vunpack.c.l.b16 %v1351
  %v1491 = vunpack.c.l.b16 %v1352
  %v1492 = vunpack.c.l.b16 %v1353
  %v1493 = vunpack.c.l.b16 %v1354
  %v1494 = vunpack.c.l.b16 %v1355
  %v1495 = vunpack.c.l.b16 %v1356
  %v1496 = vunpack.c.l.b16 %v1357
  %v1497 = vunpack.c.l.b16 %v1358
  %v1498 = vunpack.c.l.b16 %v1359
  %v1499 = vunpack.c.l.b16 %v1360
  %v1500 = vunpack.c.l.b16 %v1361
  %v1501 = vunpack.c.l.b16 %v1362
  %v1502 = vunpack.c.l.b16 %v1363
  %v1503 = vunpack.c.l.b16 %v1364
  %v1504 = vpack.c.b16 %v1489, %v1488
  %v1505 = vpack.c.b16 %v1491, %v1490
  %v1506 = vpack.c.b16 %v1493, %v1492
  %v1507 = vpack.c.b16 %v1495, %v1494
  %v1508 = vpack.c.b16 %v1497, %v1496
  %v1509 = vpack.c.b16 %v1499, %v1498
  %v1510 = vpack.c.b16 %v1501, %v1500
  %v1511 = vpack.c.b16 %v1503, %v1502
  %1520 = vmatprep.subr.bf16.mxu0 0
  %1521 = vmatpush1.bf16.msra.mxu0 %v1511
  %1522 = vmatprep.subr.bf16.mxu0 0
  %1523 = vmatpush1.bf16.msra.mxu0 %v1510
  %1524 = vmatprep.subr.bf16.mxu0 0
  %1525 = vmatpush1.bf16.msra.mxu0 %v1509
  %1526 = vmatprep.subr.bf16.mxu0 0
  %1527 = vmatpush1.bf16.msra.mxu0 %v1508
  %1528 = vmatprep.subr.bf16.mxu0 0
  %1529 = vmatpush1.bf16.msra.mxu0 %v1507
  %1530 = vmatprep.subr.bf16.mxu0 0
  %1531 = vmatpush1.bf16.msra.mxu0 %v1506
  %1532 = vmatprep.subr.bf16.mxu0 0
  %1533 = vmatpush1.bf16.msra.mxu0 %v1505
  %1534 = vmatprep.subr.bf16.mxu0 0
  %1535 = vmatpush1.bf16.msra.mxu0 %v1504
  %1536 = vmatprep.subr.bf16.mxu0 0
  %1537 = vmatpush2.bf16.msra.mxu0 0
  %1538 = vmatprep.subr.bf16.mxu0 0
  %1539 = vmatpush2.bf16.msra.mxu0 0
  %1540 = vmatprep.subr.bf16.mxu0 0
  %1541 = vmatpush2.bf16.msra.mxu0 0
  %1542 = vmatprep.subr.bf16.mxu0 0
  %1543 = vmatpush2.bf16.msra.mxu0 0
  %1544 = vmatprep.subr.bf16.mxu0 0
  %1545 = vmatpush2.bf16.msra.mxu0 0
  %1546 = vmatprep.subr.bf16.mxu0 0
  %1547 = vmatpush2.bf16.msra.mxu0 0
  %1548 = vmatprep.subr.bf16.mxu0 0
  %1549 = vmatpush2.bf16.msra.mxu0 0
  %1550 = vmatprep.subr.bf16.mxu0 0
  %1551 = vmatpush2.bf16.msra.mxu0 0
  %1552 = vmatprep.mubr.bf16.mxu0 0
  %1553 = vmatmul.mubr.bf16.gmra.mxu0 %v285
  %v1554 = vpop.f32.mrf.mxu0
  %v1555 = vadd.f32 %v1466, %v1554
  %v1556 = vpop.f32.mrf.mxu0
  %v1557 = vpop.f32.mrf.mxu0
  %v1558 = vadd.f32 %v1469, %v1557
  %v1559 = vpop.f32.mrf.mxu0
  %1560 = vdwg.mxu0
  %v1562 = vlaneseq
  %v1563 = vshrl.u32 %v1562, 7
  %v1564 = vsub.s32 0, %v1563
  %v1565 = vrot.slane %v1382, %v1564
  %v1567 = vadd.f32 %v1555, %v1565
  %v1568 = vadd.f32 %v1558, %v1565
  %v1569 = vmax.f32 %v1567, 0.0
  %v1570 = vmax.f32 %v1568, 0.0
  %v1571 = vpack.c.bf16 %v1570, %v1569
  %1572 = vmatprep.subr.bf16.mxu0 0
  %1573 = vmatpush1.bf16.msra.mxu0 %v1422
  %1574 = vmatprep.subr.bf16.mxu0 0
  %1575 = vmatpush1.bf16.msra.mxu0 %v1421
  %1576 = vmatprep.subr.bf16.mxu0 0
  %1577 = vmatpush1.bf16.msra.mxu0 %v1420
  %1578 = vmatprep.subr.bf16.mxu0 0
  %1579 = vmatpush1.bf16.msra.mxu0 %v1419
  %1580 = vmatprep.subr.bf16.mxu0 0
  %1581 = vmatpush1.bf16.msra.mxu0 %v1418
  %1582 = vmatprep.subr.bf16.mxu0 0
  %1583 = vmatpush1.bf16.msra.mxu0 %v1417
  %1584 = vmatprep.subr.bf16.mxu0 0
  %1585 = vmatpush1.bf16.msra.mxu0 %v1416
  %1586 = vmatprep.subr.bf16.mxu0 0
  %1587 = vmatpush1.bf16.msra.mxu0 %v1415
  %1588 = vmatprep.subr.bf16.mxu0 0
  %1589 = vmatpush2.bf16.msra.mxu0 0
  %1590 = vmatprep.subr.bf16.mxu0 0
  %1591 = vmatpush2.bf16.msra.mxu0 0
  %1592 = vmatprep.subr.bf16.mxu0 0
  %1593 = vmatpush2.bf16.msra.mxu0 0
  %1594 = vmatprep.subr.bf16.mxu0 0
  %1595 = vmatpush2.bf16.msra.mxu0 0
  %1596 = vmatprep.subr.bf16.mxu0 0
  %1597 = vmatpush2.bf16.msra.mxu0 0
  %1598 = vmatprep.subr.bf16.mxu0 0
  %1599 = vmatpush2.bf16.msra.mxu0 0
  %1600 = vmatprep.subr.bf16.mxu0 0
  %1601 = vmatpush2.bf16.msra.mxu0 0
  %1602 = vmatprep.subr.bf16.mxu0 0
  %1603 = vmatpush2.bf16.msra.mxu0 0
  %1604 = vmatprep.mubr.bf16.mxu0 0
  %1605 = vmatmul.mubr.bf16.gmra.mxu0 %v747
  %v1606 = vpop.f32.mrf.mxu0
  %v1607 = vadd.f32 0.0, %v1606
  %v1608 = vpop.f32.mrf.mxu0
  %v1609 = vpop.f32.mrf.mxu0
  %v1610 = vadd.f32 0.0, %v1609
  %v1611 = vpop.f32.mrf.mxu0
  %1612 = vdwg.mxu0
  %1613 = vmatprep.subr.bf16.mxu0 0
  %1614 = vmatpush1.bf16.msra.mxu0 %v1511
  %1615 = vmatprep.subr.bf16.mxu0 0
  %1616 = vmatpush1.bf16.msra.mxu0 %v1510
  %1617 = vmatprep.subr.bf16.mxu0 0
  %1618 = vmatpush1.bf16.msra.mxu0 %v1509
  %1619 = vmatprep.subr.bf16.mxu0 0
  %1620 = vmatpush1.bf16.msra.mxu0 %v1508
  %1621 = vmatprep.subr.bf16.mxu0 0
  %1622 = vmatpush1.bf16.msra.mxu0 %v1507
  %1623 = vmatprep.subr.bf16.mxu0 0
  %1624 = vmatpush1.bf16.msra.mxu0 %v1506
  %1625 = vmatprep.subr.bf16.mxu0 0
  %1626 = vmatpush1.bf16.msra.mxu0 %v1505
  %1627 = vmatprep.subr.bf16.mxu0 0
  %1628 = vmatpush1.bf16.msra.mxu0 %v1504
  %1629 = vmatprep.subr.bf16.mxu0 0
  %1630 = vmatpush2.bf16.msra.mxu0 0
  %1631 = vmatprep.subr.bf16.mxu0 0
  %1632 = vmatpush2.bf16.msra.mxu0 0
  %1633 = vmatprep.subr.bf16.mxu0 0
  %1634 = vmatpush2.bf16.msra.mxu0 0
  %1635 = vmatprep.subr.bf16.mxu0 0
  %1636 = vmatpush2.bf16.msra.mxu0 0
  %1637 = vmatprep.subr.bf16.mxu0 0
  %1638 = vmatpush2.bf16.msra.mxu0 0
  %1639 = vmatprep.subr.bf16.mxu0 0
  %1640 = vmatpush2.bf16.msra.mxu0 0
  %1641 = vmatprep.subr.bf16.mxu0 0
  %1642 = vmatpush2.bf16.msra.mxu0 0
  %1643 = vmatprep.subr.bf16.mxu0 0
  %1644 = vmatpush2.bf16.msra.mxu0 0
  %1645 = vmatprep.mubr.bf16.mxu0 0
  %1646 = vmatmul.mubr.bf16.gmra.mxu0 %v601
  %v1647 = vpop.f32.mrf.mxu0
  %v1648 = vadd.f32 %v1607, %v1647
  %v1649 = vpop.f32.mrf.mxu0
  %v1650 = vpop.f32.mrf.mxu0
  %v1651 = vadd.f32 %v1610, %v1650
  %v1652 = vpop.f32.mrf.mxu0
  %1653 = vdwg.mxu0
  %v1670 = vunpack.c.l.b16 %v1332
  %v1671 = vunpack.c.l.b16 %v1333
  %v1672 = vunpack.c.l.b16 %v1334
  %v1673 = vunpack.c.l.b16 %v1335
  %v1674 = vunpack.c.l.b16 %v1336
  %v1675 = vunpack.c.l.b16 %v1337
  %v1676 = vunpack.c.l.b16 %v1338
  %v1677 = vunpack.c.l.b16 %v1339
  %v1678 = vunpack.c.l.b16 %v1340
  %v1679 = vunpack.c.l.b16 %v1341
  %v1680 = vunpack.c.l.b16 %v1342
  %v1681 = vunpack.c.l.b16 %v1343
  %v1682 = vunpack.c.l.b16 %v1344
  %v1683 = vunpack.c.l.b16 %v1345
  %v1684 = vunpack.c.l.b16 %v1346
  %v1685 = vunpack.c.l.b16 %v1347
  %v1686 = vpack.c.b16 %v1671, %v1670
  %v1687 = vpack.c.b16 %v1673, %v1672
  %v1688 = vpack.c.b16 %v1675, %v1674
  %v1689 = vpack.c.b16 %v1677, %v1676
  %v1690 = vpack.c.b16 %v1679, %v1678
  %v1691 = vpack.c.b16 %v1681, %v1680
  %v1692 = vpack.c.b16 %v1683, %v1682
  %v1693 = vpack.c.b16 %v1685, %v1684
  %1702 = vmatprep.subr.bf16.mxu0 0
  %1703 = vmatpush1.bf16.msra.mxu0 %v1693
  %1704 = vmatprep.subr.bf16.mxu0 0
  %1705 = vmatpush1.bf16.msra.mxu0 %v1692
  %1706 = vmatprep.subr.bf16.mxu0 0
  %1707 = vmatpush1.bf16.msra.mxu0 %v1691
  %1708 = vmatprep.subr.bf16.mxu0 0
  %1709 = vmatpush1.bf16.msra.mxu0 %v1690
  %1710 = vmatprep.subr.bf16.mxu0 0
  %1711 = vmatpush1.bf16.msra.mxu0 %v1689
  %1712 = vmatprep.subr.bf16.mxu0 0
  %1713 = vmatpush1.bf16.msra.mxu0 %v1688
  %1714 = vmatprep.subr.bf16.mxu0 0
  %1715 = vmatpush1.bf16.msra.mxu0 %v1687
  %1716 = vmatprep.subr.bf16.mxu0 0
  %1717 = vmatpush1.bf16.msra.mxu0 %v1686
  %1718 = vmatprep.subr.bf16.mxu0 0
  %1719 = vmatpush2.bf16.msra.mxu0 0
  %1720 = vmatprep.subr.bf16.mxu0 0
  %1721 = vmatpush2.bf16.msra.mxu0 0
  %1722 = vmatprep.subr.bf16.mxu0 0
  %1723 = vmatpush2.bf16.msra.mxu0 0
  %1724 = vmatprep.subr.bf16.mxu0 0
  %1725 = vmatpush2.bf16.msra.mxu0 0
  %1726 = vmatprep.subr.bf16.mxu0 0
  %1727 = vmatpush2.bf16.msra.mxu0 0
  %1728 = vmatprep.subr.bf16.mxu0 0
  %1729 = vmatpush2.bf16.msra.mxu0 0
  %1730 = vmatprep.subr.bf16.mxu0 0
  %1731 = vmatpush2.bf16.msra.mxu0 0
  %1732 = vmatprep.subr.bf16.mxu0 0
  %1733 = vmatpush2.bf16.msra.mxu0 0
  %1734 = vmatprep.mubr.bf16.mxu0 0
  %1735 = vmatmul.mubr.bf16.gmra.mxu0 %v455
  %v1736 = vpop.f32.mrf.mxu0
  %v1737 = vadd.f32 0.0, %v1736
  %v1738 = vpop.f32.mrf.mxu0
  %v1739 = vpop.f32.mrf.mxu0
  %v1740 = vadd.f32 0.0, %v1739
  %v1741 = vpop.f32.mrf.mxu0
  %1742 = vdwg.mxu0
  %v1743 = vadd.f32 %v1648, %v1737
  %v1744 = vadd.f32 %v1651, %v1740
  %v1745 = vadd.f32 %v1743, %v1565
  %v1746 = vadd.f32 %v1744, %v1565
  %v1747 = vmax.f32 %v1745, 0.0
  %v1748 = vmax.f32 %v1746, 0.0
  %v1749 = vpack.c.bf16 %v1748, %v1747
  %1750 = vmatprep.subr.bf16.mxu0 0
  %1751 = vmatpush1.bf16.msra.mxu0 %v1422
  %1752 = vmatprep.subr.bf16.mxu0 0
  %1753 = vmatpush1.bf16.msra.mxu0 %v1421
  %1754 = vmatprep.subr.bf16.mxu0 0
  %1755 = vmatpush1.bf16.msra.mxu0 %v1420
  %1756 = vmatprep.subr.bf16.mxu0 0
  %1757 = vmatpush1.bf16.msra.mxu0 %v1419
  %1758 = vmatprep.subr.bf16.mxu0 0
  %1759 = vmatpush1.bf16.msra.mxu0 %v1418
  %1760 = vmatprep.subr.bf16.mxu0 0
  %1761 = vmatpush1.bf16.msra.mxu0 %v1417
  %1762 = vmatprep.subr.bf16.mxu0 0
  %1763 = vmatpush1.bf16.msra.mxu0 %v1416
  %1764 = vmatprep.subr.bf16.mxu0 0
  %1765 = vmatpush1.bf16.msra.mxu0 %v1415
  %1766 = vmatprep.subr.bf16.mxu0 0
  %1767 = vmatpush2.bf16.msra.mxu0 0
  %1768 = vmatprep.subr.bf16.mxu0 0
  %1769 = vmatpush2.bf16.msra.mxu0 0
  %1770 = vmatprep.subr.bf16.mxu0 0
  %1771 = vmatpush2.bf16.msra.mxu0 0
  %1772 = vmatprep.subr.bf16.mxu0 0
  %1773 = vmatpush2.bf16.msra.mxu0 0
  %1774 = vmatprep.subr.bf16.mxu0 0
  %1775 = vmatpush2.bf16.msra.mxu0 0
  %1776 = vmatprep.subr.bf16.mxu0 0
  %1777 = vmatpush2.bf16.msra.mxu0 0
  %1778 = vmatprep.subr.bf16.mxu0 0
  %1779 = vmatpush2.bf16.msra.mxu0 0
  %1780 = vmatprep.subr.bf16.mxu0 0
  %1781 = vmatpush2.bf16.msra.mxu0 0
  %1782 = vmatprep.mubr.bf16.mxu0 0
  %1783 = vmatmul.mubr.bf16.gmra.mxu0 %v1039
  %v1784 = vpop.f32.mrf.mxu0
  %v1785 = vadd.f32 0.0, %v1784
  %v1786 = vpop.f32.mrf.mxu0
  %v1787 = vpop.f32.mrf.mxu0
  %v1788 = vadd.f32 0.0, %v1787
  %v1789 = vpop.f32.mrf.mxu0
  %1790 = vdwg.mxu0
  %1791 = vmatprep.subr.bf16.mxu0 0
  %1792 = vmatpush1.bf16.msra.mxu0 %v1511
  %1793 = vmatprep.subr.bf16.mxu0 0
  %1794 = vmatpush1.bf16.msra.mxu0 %v1510
  %1795 = vmatprep.subr.bf16.mxu0 0
  %1796 = vmatpush1.bf16.msra.mxu0 %v1509
  %1797 = vmatprep.subr.bf16.mxu0 0
  %1798 = vmatpush1.bf16.msra.mxu0 %v1508
  %1799 = vmatprep.subr.bf16.mxu0 0
  %1800 = vmatpush1.bf16.msra.mxu0 %v1507
  %1801 = vmatprep.subr.bf16.mxu0 0
  %1802 = vmatpush1.bf16.msra.mxu0 %v1506
  %1803 = vmatprep.subr.bf16.mxu0 0
  %1804 = vmatpush1.bf16.msra.mxu0 %v1505
  %1805 = vmatprep.subr.bf16.mxu0 0
  %1806 = vmatpush1.bf16.msra.mxu0 %v1504
  %1807 = vmatprep.subr.bf16.mxu0 0
  %1808 = vmatpush2.bf16.msra.mxu0 0
  %1809 = vmatprep.subr.bf16.mxu0 0
  %1810 = vmatpush2.bf16.msra.mxu0 0
  %1811 = vmatprep.subr.bf16.mxu0 0
  %1812 = vmatpush2.bf16.msra.mxu0 0
  %1813 = vmatprep.subr.bf16.mxu0 0
  %1814 = vmatpush2.bf16.msra.mxu0 0
  %1815 = vmatprep.subr.bf16.mxu0 0
  %1816 = vmatpush2.bf16.msra.mxu0 0
  %1817 = vmatprep.subr.bf16.mxu0 0
  %1818 = vmatpush2.bf16.msra.mxu0 0
  %1819 = vmatprep.subr.bf16.mxu0 0
  %1820 = vmatpush2.bf16.msra.mxu0 0
  %1821 = vmatprep.subr.bf16.mxu0 0
  %1822 = vmatpush2.bf16.msra.mxu0 0
  %1823 = vmatprep.mubr.bf16.mxu0 0
  %1824 = vmatmul.mubr.bf16.gmra.mxu0 %v893
  %v1825 = vpop.f32.mrf.mxu0
  %v1826 = vadd.f32 %v1785, %v1825
  %v1827 = vpop.f32.mrf.mxu0
  %v1828 = vpop.f32.mrf.mxu0
  %v1829 = vadd.f32 %v1788, %v1828
  %v1830 = vpop.f32.mrf.mxu0
  %1831 = vdwg.mxu0
  %1832 = vmatprep.subr.bf16.mxu0 0
  %1833 = vmatpush1.bf16.msra.mxu0 %v1693
  %1834 = vmatprep.subr.bf16.mxu0 0
  %1835 = vmatpush1.bf16.msra.mxu0 %v1692
  %1836 = vmatprep.subr.bf16.mxu0 0
  %1837 = vmatpush1.bf16.msra.mxu0 %v1691
  %1838 = vmatprep.subr.bf16.mxu0 0
  %1839 = vmatpush1.bf16.msra.mxu0 %v1690
  %1840 = vmatprep.subr.bf16.mxu0 0
  %1841 = vmatpush1.bf16.msra.mxu0 %v1689
  %1842 = vmatprep.subr.bf16.mxu0 0
  %1843 = vmatpush1.bf16.msra.mxu0 %v1688
  %1844 = vmatprep.subr.bf16.mxu0 0
  %1845 = vmatpush1.bf16.msra.mxu0 %v1687
  %1846 = vmatprep.subr.bf16.mxu0 0
  %1847 = vmatpush1.bf16.msra.mxu0 %v1686
  %1848 = vmatprep.subr.bf16.mxu0 0
  %1849 = vmatpush2.bf16.msra.mxu0 0
  %1850 = vmatprep.subr.bf16.mxu0 0
  %1851 = vmatpush2.bf16.msra.mxu0 0
  %1852 = vmatprep.subr.bf16.mxu0 0
  %1853 = vmatpush2.bf16.msra.mxu0 0
  %1854 = vmatprep.subr.bf16.mxu0 0
  %1855 = vmatpush2.bf16.msra.mxu0 0
  %1856 = vmatprep.subr.bf16.mxu0 0
  %1857 = vmatpush2.bf16.msra.mxu0 0
  %1858 = vmatprep.subr.bf16.mxu0 0
  %1859 = vmatpush2.bf16.msra.mxu0 0
  %1860 = vmatprep.subr.bf16.mxu0 0
  %1861 = vmatpush2.bf16.msra.mxu0 0
  %1862 = vmatprep.subr.bf16.mxu0 0
  %1863 = vmatpush2.bf16.msra.mxu0 0
  %1864 = vmatprep.mubr.bf16.mxu0 0
  %1865 = vmatmul.mubr.bf16.gmra.mxu0 %v747
  %v1866 = vpop.f32.mrf.mxu0
  %v1867 = vadd.f32 0.0, %v1866
  %v1868 = vpop.f32.mrf.mxu0
  %v1869 = vpop.f32.mrf.mxu0
  %v1870 = vadd.f32 0.0, %v1869
  %v1871 = vpop.f32.mrf.mxu0
  %1872 = vdwg.mxu0
  %v1873 = vadd.f32 %v1826, %v1867
  %v1874 = vadd.f32 %v1829, %v1870
  %v1875 = vadd.f32 %v1873, %v1565
  %v1876 = vadd.f32 %v1874, %v1565
  %v1877 = vmax.f32 %v1875, 0.0
  %v1878 = vmax.f32 %v1876, 0.0
  %v1879 = vpack.c.bf16 %v1878, %v1877
  %1880 = vmatprep.subr.bf16.mxu0 0
  %1881 = vmatpush1.bf16.msra.mxu0 %v1422
  %1882 = vmatprep.subr.bf16.mxu0 0
  %1883 = vmatpush1.bf16.msra.mxu0 %v1421
  %1884 = vmatprep.subr.bf16.mxu0 0
  %1885 = vmatpush1.bf16.msra.mxu0 %v1420
  %1886 = vmatprep.subr.bf16.mxu0 0
  %1887 = vmatpush1.bf16.msra.mxu0 %v1419
  %1888 = vmatprep.subr.bf16.mxu0 0
  %1889 = vmatpush1.bf16.msra.mxu0 %v1418
  %1890 = vmatprep.subr.bf16.mxu0 0
  %1891 = vmatpush1.bf16.msra.mxu0 %v1417
  %1892 = vmatprep.subr.bf16.mxu0 0
  %1893 = vmatpush1.bf16.msra.mxu0 %v1416
  %1894 = vmatprep.subr.bf16.mxu0 0
  %1895 = vmatpush1.bf16.msra.mxu0 %v1415
  %1896 = vmatprep.subr.bf16.mxu0 0
  %1897 = vmatpush2.bf16.msra.mxu0 0
  %1898 = vmatprep.subr.bf16.mxu0 0
  %1899 = vmatpush2.bf16.msra.mxu0 0
  %1900 = vmatprep.subr.bf16.mxu0 0
  %1901 = vmatpush2.bf16.msra.mxu0 0
  %1902 = vmatprep.subr.bf16.mxu0 0
  %1903 = vmatpush2.bf16.msra.mxu0 0
  %1904 = vmatprep.subr.bf16.mxu0 0
  %1905 = vmatpush2.bf16.msra.mxu0 0
  %1906 = vmatprep.subr.bf16.mxu0 0
  %1907 = vmatpush2.bf16.msra.mxu0 0
  %1908 = vmatprep.subr.bf16.mxu0 0
  %1909 = vmatpush2.bf16.msra.mxu0 0
  %1910 = vmatprep.subr.bf16.mxu0 0
  %1911 = vmatpush2.bf16.msra.mxu0 0
  %1912 = vmatprep.mubr.bf16.mxu0 0
  %1913 = vmatmul.mubr.bf16.gmra.mxu0 %v1331
  %v1914 = vpop.f32.mrf.mxu0
  %v1915 = vadd.f32 0.0, %v1914
  %v1916 = vpop.f32.mrf.mxu0
  %v1917 = vpop.f32.mrf.mxu0
  %v1918 = vadd.f32 0.0, %v1917
  %v1919 = vpop.f32.mrf.mxu0
  %1920 = vdwg.mxu0
  %1921 = vmatprep.subr.bf16.mxu0 0
  %1922 = vmatpush1.bf16.msra.mxu0 %v1511
  %1923 = vmatprep.subr.bf16.mxu0 0
  %1924 = vmatpush1.bf16.msra.mxu0 %v1510
  %1925 = vmatprep.subr.bf16.mxu0 0
  %1926 = vmatpush1.bf16.msra.mxu0 %v1509
  %1927 = vmatprep.subr.bf16.mxu0 0
  %1928 = vmatpush1.bf16.msra.mxu0 %v1508
  %1929 = vmatprep.subr.bf16.mxu0 0
  %1930 = vmatpush1.bf16.msra.mxu0 %v1507
  %1931 = vmatprep.subr.bf16.mxu0 0
  %1932 = vmatpush1.bf16.msra.mxu0 %v1506
  %1933 = vmatprep.subr.bf16.mxu0 0
  %1934 = vmatpush1.bf16.msra.mxu0 %v1505
  %1935 = vmatprep.subr.bf16.mxu0 0
  %1936 = vmatpush1.bf16.msra.mxu0 %v1504
  %1937 = vmatprep.subr.bf16.mxu0 0
  %1938 = vmatpush2.bf16.msra.mxu0 0
  %1939 = vmatprep.subr.bf16.mxu0 0
  %1940 = vmatpush2.bf16.msra.mxu0 0
  %1941 = vmatprep.subr.bf16.mxu0 0
  %1942 = vmatpush2.bf16.msra.mxu0 0
  %1943 = vmatprep.subr.bf16.mxu0 0
  %1944 = vmatpush2.bf16.msra.mxu0 0
  %1945 = vmatprep.subr.bf16.mxu0 0
  %1946 = vmatpush2.bf16.msra.mxu0 0
  %1947 = vmatprep.subr.bf16.mxu0 0
  %1948 = vmatpush2.bf16.msra.mxu0 0
  %1949 = vmatprep.subr.bf16.mxu0 0
  %1950 = vmatpush2.bf16.msra.mxu0 0
  %1951 = vmatprep.subr.bf16.mxu0 0
  %1952 = vmatpush2.bf16.msra.mxu0 0
  %1953 = vmatprep.mubr.bf16.mxu0 0
  %1954 = vmatmul.mubr.bf16.gmra.mxu0 %v1185
  %v1955 = vpop.f32.mrf.mxu0
  %v1956 = vadd.f32 %v1915, %v1955
  %v1957 = vpop.f32.mrf.mxu0
  %v1958 = vpop.f32.mrf.mxu0
  %v1959 = vadd.f32 %v1918, %v1958
  %v1960 = vpop.f32.mrf.mxu0
  %1961 = vdwg.mxu0
  %1962 = vmatprep.subr.bf16.mxu0 0
  %1963 = vmatpush1.bf16.msra.mxu0 %v1693
  %1964 = vmatprep.subr.bf16.mxu0 0
  %1965 = vmatpush1.bf16.msra.mxu0 %v1692
  %1966 = vmatprep.subr.bf16.mxu0 0
  %1967 = vmatpush1.bf16.msra.mxu0 %v1691
  %1968 = vmatprep.subr.bf16.mxu0 0
  %1969 = vmatpush1.bf16.msra.mxu0 %v1690
  %1970 = vmatprep.subr.bf16.mxu0 0
  %1971 = vmatpush1.bf16.msra.mxu0 %v1689
  %1972 = vmatprep.subr.bf16.mxu0 0
  %1973 = vmatpush1.bf16.msra.mxu0 %v1688
  %1974 = vmatprep.subr.bf16.mxu0 0
  %1975 = vmatpush1.bf16.msra.mxu0 %v1687
  %1976 = vmatprep.subr.bf16.mxu0 0
  %1977 = vmatpush1.bf16.msra.mxu0 %v1686
  %1978 = vmatprep.subr.bf16.mxu0 0
  %1979 = vmatpush2.bf16.msra.mxu0 0
  %1980 = vmatprep.subr.bf16.mxu0 0
  %1981 = vmatpush2.bf16.msra.mxu0 0
  %1982 = vmatprep.subr.bf16.mxu0 0
  %1983 = vmatpush2.bf16.msra.mxu0 0
  %1984 = vmatprep.subr.bf16.mxu0 0
  %1985 = vmatpush2.bf16.msra.mxu0 0
  %1986 = vmatprep.subr.bf16.mxu0 0
  %1987 = vmatpush2.bf16.msra.mxu0 0
  %1988 = vmatprep.subr.bf16.mxu0 0
  %1989 = vmatpush2.bf16.msra.mxu0 0
  %1990 = vmatprep.subr.bf16.mxu0 0
  %1991 = vmatpush2.bf16.msra.mxu0 0
  %1992 = vmatprep.subr.bf16.mxu0 0
  %1993 = vmatpush2.bf16.msra.mxu0 0
  %1994 = vmatprep.mubr.bf16.mxu0 0
  %1995 = vmatmul.mubr.bf16.gmra.mxu0 %v1039
  %v1996 = vpop.f32.mrf.mxu0
  %v1997 = vadd.f32 0.0, %v1996
  %v1998 = vpop.f32.mrf.mxu0
  %v1999 = vpop.f32.mrf.mxu0
  %v2000 = vadd.f32 0.0, %v1999
  %v2001 = vpop.f32.mrf.mxu0
  %2002 = vdwg.mxu0
  %v2003 = vadd.f32 %v1956, %v1997
  %v2004 = vadd.f32 %v1959, %v2000
  %v2005 = vadd.f32 %v2003, %v1565
  %v2006 = vadd.f32 %v2004, %v1565
  %v2007 = vmax.f32 %v2005, 0.0
  %v2008 = vmax.f32 %v2006, 0.0
  %v2009 = vpack.c.bf16 %v2008, %v2007
  %v2010 = vld [vmem:[%s6] sm:$0x1]
  %v2011 = vld [vmem:[%s5] sm:$0xf]
  %v2012 = vld [vmem:[%s5 + $0x4] sm:$0xf]
  %v2013 = vld [vmem:[%s5 + $0x8] sm:$0xf]
  %v2014 = vld [vmem:[%s5 + $0xc] sm:$0xf]
  %v2015 = vld [vmem:[%s5 + $0x10] sm:$0xf]
  %v2016 = vld [vmem:[%s5 + $0x14] sm:$0xf]
  %v2017 = vld [vmem:[%s5 + $0x18] sm:$0xf]
  %v2018 = vld [vmem:[%s5 + $0x1c] sm:$0xf]
  %v2027 = vunpack.c.l.b16 %v2011
  %v2028 = vunpack.c.l.b16 %v2012
  %v2029 = vunpack.c.l.b16 %v2013
  %v2030 = vunpack.c.l.b16 %v2014
  %v2031 = vunpack.c.l.b16 %v2015
  %v2032 = vunpack.c.l.b16 %v2016
  %v2033 = vunpack.c.l.b16 %v2017
  %v2034 = vunpack.c.l.b16 %v2018
  %v2035 = vpack.c.b16 %v2028, %v2027
  %v2036 = vpack.c.b16 %v2030, %v2029
  %v2037 = vpack.c.b16 %v2032, %v2031
  %v2038 = vpack.c.b16 %v2034, %v2033
  %v2044 = vsel %vm157, %v1571, 0
  %2046 = vmatprep.subr.bf16.mxu0 0
  %2047 = vmatpush1.bf16.msra.mxu0 0
  %2048 = vmatprep.subr.bf16.mxu0 0
  %2049 = vmatpush1.bf16.msra.mxu0 0
  %2050 = vmatprep.subr.bf16.mxu0 0
  %2051 = vmatpush1.bf16.msra.mxu0 0
  %2052 = vmatprep.subr.bf16.mxu0 0
  %2053 = vmatpush1.bf16.msra.mxu0 0
  %2054 = vmatprep.subr.bf16.mxu0 0
  %2055 = vmatpush1.bf16.msra.mxu0 %v2038
  %2056 = vmatprep.subr.bf16.mxu0 0
  %2057 = vmatpush1.bf16.msra.mxu0 %v2037
  %2058 = vmatprep.subr.bf16.mxu0 0
  %2059 = vmatpush1.bf16.msra.mxu0 %v2036
  %2060 = vmatprep.subr.bf16.mxu0 0
  %2061 = vmatpush1.bf16.msra.mxu0 %v2035
  %2062 = vmatprep.subr.bf16.mxu0 0
  %2063 = vmatpush2.bf16.msra.mxu0 0
  %2064 = vmatprep.subr.bf16.mxu0 0
  %2065 = vmatpush2.bf16.msra.mxu0 0
  %2066 = vmatprep.subr.bf16.mxu0 0
  %2067 = vmatpush2.bf16.msra.mxu0 0
  %2068 = vmatprep.subr.bf16.mxu0 0
  %2069 = vmatpush2.bf16.msra.mxu0 0
  %2070 = vmatprep.subr.bf16.mxu0 0
  %2071 = vmatpush2.bf16.msra.mxu0 0
  %2072 = vmatprep.subr.bf16.mxu0 0
  %2073 = vmatpush2.bf16.msra.mxu0 0
  %2074 = vmatprep.subr.bf16.mxu0 0
  %2075 = vmatpush2.bf16.msra.mxu0 0
  %2076 = vmatprep.subr.bf16.mxu0 0
  %2077 = vmatpush2.bf16.msra.mxu0 0
  %2078 = vmatprep.mubr.bf16.mxu0 0
  %2079 = vmatmul.mubr.bf16.gmra.mxu0 %v2044
  %v2080 = vpop.f32.mrf.mxu0
  %v2081 = vadd.f32 0.0, %v2080
  %v2082 = vpop.f32.mrf.mxu0
  %v2083 = vpop.f32.mrf.mxu0
  %v2084 = vadd.f32 0.0, %v2083
  %v2085 = vpop.f32.mrf.mxu0
  %2086 = vdwg.mxu0
  %v2088 = vlaneseq
  %v2089 = vshrl.u32 %v2088, 7
  %v2090 = vsub.s32 0, %v2089
  %v2091 = vrot.slane %v2010, %v2090
  %v2093 = vadd.f32 %v2091, %v2081
  %v2094 = vadd.f32 %v2091, %v2084
  %v2095 = vld [vmem:[%s5 + $0x20] sm:$0xf]
  %v2096 = vld [vmem:[%s5 + $0x24] sm:$0xf]
  %v2097 = vld [vmem:[%s5 + $0x28] sm:$0xf]
  %v2098 = vld [vmem:[%s5 + $0x2c] sm:$0xf]
  %v2099 = vld [vmem:[%s5 + $0x30] sm:$0xf]
  %v2100 = vld [vmem:[%s5 + $0x34] sm:$0xf]
  %v2101 = vld [vmem:[%s5 + $0x38] sm:$0xf]
  %v2102 = vld [vmem:[%s5 + $0x3c] sm:$0xf]
  %v2111 = vunpack.c.l.b16 %v2095
  %v2112 = vunpack.c.l.b16 %v2096
  %v2113 = vunpack.c.l.b16 %v2097
  %v2114 = vunpack.c.l.b16 %v2098
  %v2115 = vunpack.c.l.b16 %v2099
  %v2116 = vunpack.c.l.b16 %v2100
  %v2117 = vunpack.c.l.b16 %v2101
  %v2118 = vunpack.c.l.b16 %v2102
  %v2119 = vpack.c.b16 %v2112, %v2111
  %v2120 = vpack.c.b16 %v2114, %v2113
  %v2121 = vpack.c.b16 %v2116, %v2115
  %v2122 = vpack.c.b16 %v2118, %v2117
  %v2128 = vsel %vm157, %v1749, 0
  %2130 = vmatprep.subr.bf16.mxu0 0
  %2131 = vmatpush1.bf16.msra.mxu0 0
  %2132 = vmatprep.subr.bf16.mxu0 0
  %2133 = vmatpush1.bf16.msra.mxu0 0
  %2134 = vmatprep.subr.bf16.mxu0 0
  %2135 = vmatpush1.bf16.msra.mxu0 0
  %2136 = vmatprep.subr.bf16.mxu0 0
  %2137 = vmatpush1.bf16.msra.mxu0 0
  %2138 = vmatprep.subr.bf16.mxu0 0
  %2139 = vmatpush1.bf16.msra.mxu0 %v2122
  %2140 = vmatprep.subr.bf16.mxu0 0
  %2141 = vmatpush1.bf16.msra.mxu0 %v2121
  %2142 = vmatprep.subr.bf16.mxu0 0
  %2143 = vmatpush1.bf16.msra.mxu0 %v2120
  %2144 = vmatprep.subr.bf16.mxu0 0
  %2145 = vmatpush1.bf16.msra.mxu0 %v2119
  %2146 = vmatprep.subr.bf16.mxu0 0
  %2147 = vmatpush2.bf16.msra.mxu0 0
  %2148 = vmatprep.subr.bf16.mxu0 0
  %2149 = vmatpush2.bf16.msra.mxu0 0
  %2150 = vmatprep.subr.bf16.mxu0 0
  %2151 = vmatpush2.bf16.msra.mxu0 0
  %2152 = vmatprep.subr.bf16.mxu0 0
  %2153 = vmatpush2.bf16.msra.mxu0 0
  %2154 = vmatprep.subr.bf16.mxu0 0
  %2155 = vmatpush2.bf16.msra.mxu0 0
  %2156 = vmatprep.subr.bf16.mxu0 0
  %2157 = vmatpush2.bf16.msra.mxu0 0
  %2158 = vmatprep.subr.bf16.mxu0 0
  %2159 = vmatpush2.bf16.msra.mxu0 0
  %2160 = vmatprep.subr.bf16.mxu0 0
  %2161 = vmatpush2.bf16.msra.mxu0 0
  %2162 = vmatprep.mubr.bf16.mxu0 0
  %2163 = vmatmul.mubr.bf16.gmra.mxu0 %v2128
  %v2164 = vpop.f32.mrf.mxu0
  %v2165 = vadd.f32 0.0, %v2164
  %v2166 = vpop.f32.mrf.mxu0
  %v2167 = vpop.f32.mrf.mxu0
  %v2168 = vadd.f32 0.0, %v2167
  %v2169 = vpop.f32.mrf.mxu0
  %2170 = vdwg.mxu0
  %v2171 = vadd.f32 %v2093, %v2165
  %v2172 = vadd.f32 %v2094, %v2168
  %v2173 = vld [vmem:[%s5 + $0x40] sm:$0xf]
  %v2174 = vld [vmem:[%s5 + $0x44] sm:$0xf]
  %v2175 = vld [vmem:[%s5 + $0x48] sm:$0xf]
  %v2176 = vld [vmem:[%s5 + $0x4c] sm:$0xf]
  %v2177 = vld [vmem:[%s5 + $0x50] sm:$0xf]
  %v2178 = vld [vmem:[%s5 + $0x54] sm:$0xf]
  %v2179 = vld [vmem:[%s5 + $0x58] sm:$0xf]
  %v2180 = vld [vmem:[%s5 + $0x5c] sm:$0xf]
  %v2189 = vunpack.c.l.b16 %v2173
  %v2190 = vunpack.c.l.b16 %v2174
  %v2191 = vunpack.c.l.b16 %v2175
  %v2192 = vunpack.c.l.b16 %v2176
  %v2193 = vunpack.c.l.b16 %v2177
  %v2194 = vunpack.c.l.b16 %v2178
  %v2195 = vunpack.c.l.b16 %v2179
  %v2196 = vunpack.c.l.b16 %v2180
  %v2197 = vpack.c.b16 %v2190, %v2189
  %v2198 = vpack.c.b16 %v2192, %v2191
  %v2199 = vpack.c.b16 %v2194, %v2193
  %v2200 = vpack.c.b16 %v2196, %v2195
  %v2206 = vsel %vm157, %v1879, 0
  %2208 = vmatprep.subr.bf16.mxu0 0
  %2209 = vmatpush1.bf16.msra.mxu0 0
  %2210 = vmatprep.subr.bf16.mxu0 0
  %2211 = vmatpush1.bf16.msra.mxu0 0
  %2212 = vmatprep.subr.bf16.mxu0 0
  %2213 = vmatpush1.bf16.msra.mxu0 0
  %2214 = vmatprep.subr.bf16.mxu0 0
  %2215 = vmatpush1.bf16.msra.mxu0 0
  %2216 = vmatprep.subr.bf16.mxu0 0
  %2217 = vmatpush1.bf16.msra.mxu0 %v2200
  %2218 = vmatprep.subr.bf16.mxu0 0
  %2219 = vmatpush1.bf16.msra.mxu0 %v2199
  %2220 = vmatprep.subr.bf16.mxu0 0
  %2221 = vmatpush1.bf16.msra.mxu0 %v2198
  %2222 = vmatprep.subr.bf16.mxu0 0
  %2223 = vmatpush1.bf16.msra.mxu0 %v2197
  %2224 = vmatprep.subr.bf16.mxu0 0
  %2225 = vmatpush2.bf16.msra.mxu0 0
  %2226 = vmatprep.subr.bf16.mxu0 0
  %2227 = vmatpush2.bf16.msra.mxu0 0
  %2228 = vmatprep.subr.bf16.mxu0 0
  %2229 = vmatpush2.bf16.msra.mxu0 0
  %2230 = vmatprep.subr.bf16.mxu0 0
  %2231 = vmatpush2.bf16.msra.mxu0 0
  %2232 = vmatprep.subr.bf16.mxu0 0
  %2233 = vmatpush2.bf16.msra.mxu0 0
  %2234 = vmatprep.subr.bf16.mxu0 0
  %2235 = vmatpush2.bf16.msra.mxu0 0
  %2236 = vmatprep.subr.bf16.mxu0 0
  %2237 = vmatpush2.bf16.msra.mxu0 0
  %2238 = vmatprep.subr.bf16.mxu0 0
  %2239 = vmatpush2.bf16.msra.mxu0 0
  %2240 = vmatprep.mubr.bf16.mxu0 0
  %2241 = vmatmul.mubr.bf16.gmra.mxu0 %v2206
  %v2242 = vpop.f32.mrf.mxu0
  %v2243 = vadd.f32 0.0, %v2242
  %v2244 = vpop.f32.mrf.mxu0
  %v2245 = vpop.f32.mrf.mxu0
  %v2246 = vadd.f32 0.0, %v2245
  %v2247 = vpop.f32.mrf.mxu0
  %2248 = vdwg.mxu0
  %v2249 = vadd.f32 %v2171, %v2243
  %v2250 = vadd.f32 %v2172, %v2246
  %v2251 = vld [vmem:[%s5 + $0x60] sm:$0xf]
  %v2252 = vld [vmem:[%s5 + $0x64] sm:$0xf]
  %v2253 = vld [vmem:[%s5 + $0x68] sm:$0xf]
  %v2254 = vld [vmem:[%s5 + $0x6c] sm:$0xf]
  %v2255 = vld [vmem:[%s5 + $0x70] sm:$0xf]
  %v2256 = vld [vmem:[%s5 + $0x74] sm:$0xf]
  %v2257 = vld [vmem:[%s5 + $0x78] sm:$0xf]
  %v2258 = vld [vmem:[%s5 + $0x7c] sm:$0xf]
  %v2267 = vunpack.c.l.b16 %v2251
  %v2268 = vunpack.c.l.b16 %v2252
  %v2269 = vunpack.c.l.b16 %v2253
  %v2270 = vunpack.c.l.b16 %v2254
  %v2271 = vunpack.c.l.b16 %v2255
  %v2272 = vunpack.c.l.b16 %v2256
  %v2273 = vunpack.c.l.b16 %v2257
  %v2274 = vunpack.c.l.b16 %v2258
  %v2275 = vpack.c.b16 %v2268, %v2267
  %v2276 = vpack.c.b16 %v2270, %v2269
  %v2277 = vpack.c.b16 %v2272, %v2271
  %v2278 = vpack.c.b16 %v2274, %v2273
  %v2284 = vsel %vm157, %v2009, 0
  %2286 = vmatprep.subr.bf16.mxu0 0
  %2287 = vmatpush1.bf16.msra.mxu0 0
  %2288 = vmatprep.subr.bf16.mxu0 0
  %2289 = vmatpush1.bf16.msra.mxu0 0
  %2290 = vmatprep.subr.bf16.mxu0 0
  %2291 = vmatpush1.bf16.msra.mxu0 0
  %2292 = vmatprep.subr.bf16.mxu0 0
  %2293 = vmatpush1.bf16.msra.mxu0 0
  %2294 = vmatprep.subr.bf16.mxu0 0
  %2295 = vmatpush1.bf16.msra.mxu0 %v2278
  %2296 = vmatprep.subr.bf16.mxu0 0
  %2297 = vmatpush1.bf16.msra.mxu0 %v2277
  %2298 = vmatprep.subr.bf16.mxu0 0
  %2299 = vmatpush1.bf16.msra.mxu0 %v2276
  %2300 = vmatprep.subr.bf16.mxu0 0
  %2301 = vmatpush1.bf16.msra.mxu0 %v2275
  %2302 = vmatprep.subr.bf16.mxu0 0
  %2303 = vmatpush2.bf16.msra.mxu0 0
  %2304 = vmatprep.subr.bf16.mxu0 0
  %2305 = vmatpush2.bf16.msra.mxu0 0
  %2306 = vmatprep.subr.bf16.mxu0 0
  %2307 = vmatpush2.bf16.msra.mxu0 0
  %2308 = vmatprep.subr.bf16.mxu0 0
  %2309 = vmatpush2.bf16.msra.mxu0 0
  %2310 = vmatprep.subr.bf16.mxu0 0
  %2311 = vmatpush2.bf16.msra.mxu0 0
  %2312 = vmatprep.subr.bf16.mxu0 0
  %2313 = vmatpush2.bf16.msra.mxu0 0
  %2314 = vmatprep.subr.bf16.mxu0 0
  %2315 = vmatpush2.bf16.msra.mxu0 0
  %2316 = vmatprep.subr.bf16.mxu0 0
  %2317 = vmatpush2.bf16.msra.mxu0 0
  %2318 = vmatprep.mubr.bf16.mxu0 0
  %2319 = vmatmul.mubr.bf16.gmra.mxu0 %v2284
  %v2320 = vpop.f32.mrf.mxu0
  %v2321 = vadd.f32 0.0, %v2320
  %v2322 = vpop.f32.mrf.mxu0
  %v2323 = vpop.f32.mrf.mxu0
  %v2324 = vadd.f32 0.0, %v2323
  %v2325 = vpop.f32.mrf.mxu0
  %2326 = vdwg.mxu0
  %v2327 = vadd.f32 %v2249, %v2321
  %v2328 = vadd.f32 %v2250, %v2324
  %v2329 = vmax.f32 %v2327, 0.0
  %v2330 = vmax.f32 %v2328, 0.0
  %v2331 = vpack.c.bf16 %v2330, %v2329
  %v2332 = vld [vmem:[%s7] sm:$0xff]
  %v2333 = vld [vmem:[%s7 + $0x8] sm:$0xf]
  %v2334 = vld [vmem:[%s7 + $0xc] sm:$0xff]
  %v2335 = vld [vmem:[%s7 + $0x14] sm:$0xf]
  %v2336 = vld [vmem:[%s7 + $0x18] sm:$0xff]
  %v2337 = vld [vmem:[%s7 + $0x20] sm:$0xf]
  %v2338 = vld [vmem:[%s7 + $0x24] sm:$0xff]
  %v2339 = vld [vmem:[%s7 + $0x2c] sm:$0xf]
  %v2340 = vld [vmem:[%s7 + $0x30] sm:$0xff]
  %v2341 = vld [vmem:[%s7 + $0x38] sm:$0xf]
  %v2342 = vld [vmem:[%s7 + $0x3c] sm:$0xff]
  %v2343 = vld [vmem:[%s7 + $0x44] sm:$0xf]
  %v2344 = vld [vmem:[%s7 + $0x48] sm:$0xff]
  %v2345 = vld [vmem:[%s7 + $0x50] sm:$0xf]
  %v2346 = vld [vmem:[%s7 + $0x54] sm:$0xff]
  %v2347 = vld [vmem:[%s7 + $0x5c] sm:$0xf]
  %v2348 = vld [vmem:[%s7 + $0x60] sm:$0xff]
  %v2349 = vld [vmem:[%s7 + $0x68] sm:$0xf]
  %v2350 = vld [vmem:[%s7 + $0x6c] sm:$0xff]
  %v2351 = vld [vmem:[%s7 + $0x74] sm:$0xf]
  %v2352 = vld [vmem:[%s7 + $0x78] sm:$0xff]
  %v2353 = vld [vmem:[%s7 + $0x80] sm:$0xf]
  %v2354 = vld [vmem:[%s7 + $0x84] sm:$0xff]
  %v2355 = vld [vmem:[%s7 + $0x8c] sm:$0xf]
  %v2356 = vld [vmem:[%s7 + $0x90] sm:$0xff]
  %v2357 = vld [vmem:[%s7 + $0x98] sm:$0xf]
  %v2358 = vld [vmem:[%s7 + $0x9c] sm:$0xff]
  %v2359 = vld [vmem:[%s7 + $0xa4] sm:$0xf]
  %v2360 = vld [vmem:[%s7 + $0xa8] sm:$0xff]
  %v2361 = vld [vmem:[%s7 + $0xb0] sm:$0xf]
  %v2362 = vld [vmem:[%s7 + $0xb4] sm:$0xff]
  %v2363 = vld [vmem:[%s7 + $0xbc] sm:$0xf]
  %v2364 = vld [vmem:[%s9] sm:$0x7]
  %v2366 = vlaneseq
  %v2367 = vshrl.u32 %v2366, 7
  %v2368 = vsub.s32 0, %v2367
  %v2369 = vrot.slane %v2364, %v2368
  %v2370 = vlaneseq
  %v2371 = vshrl.u32 %v2370, 7
  %v2372 = vsub.s32 1, %v2371
  %v2373 = vrot.slane %v2364, %v2372
  %v2374 = vlaneseq
  %v2375 = vshrl.u32 %v2374, 7
  %v2376 = vsub.s32 2, %v2375
  %v2377 = vrot.slane %v2364, %v2376
  %v2413 = vunpack.c.l.b16 %v2332
  %v2414 = vunpack.c.h.b16 %v2332
  %v2415 = vunpack.c.l.b16 %v2333
  %v2416 = vunpack.c.l.b16 %v2334
  %v2417 = vunpack.c.h.b16 %v2334
  %v2418 = vunpack.c.l.b16 %v2335
  %v2419 = vunpack.c.l.b16 %v2336
  %v2420 = vunpack.c.h.b16 %v2336
  %v2421 = vunpack.c.l.b16 %v2337
  %v2422 = vunpack.c.l.b16 %v2338
  %v2423 = vunpack.c.h.b16 %v2338
  %v2424 = vunpack.c.l.b16 %v2339
  %v2425 = vunpack.c.l.b16 %v2340
  %v2426 = vunpack.c.h.b16 %v2340
  %v2427 = vunpack.c.l.b16 %v2341
  %v2428 = vunpack.c.l.b16 %v2342
  %v2429 = vunpack.c.h.b16 %v2342
  %v2430 = vunpack.c.l.b16 %v2343
  %v2431 = vunpack.c.l.b16 %v2344
  %v2432 = vunpack.c.h.b16 %v2344
  %v2433 = vunpack.c.l.b16 %v2345
  %v2434 = vunpack.c.l.b16 %v2346
  %v2435 = vunpack.c.h.b16 %v2346
  %v2436 = vunpack.c.l.b16 %v2347
  %v2437 = vunpack.c.l.b16 %v2348
  %v2438 = vunpack.c.h.b16 %v2348
  %v2439 = vunpack.c.l.b16 %v2349
  %v2440 = vunpack.c.l.b16 %v2350
  %v2441 = vunpack.c.h.b16 %v2350
  %v2442 = vunpack.c.l.b16 %v2351
  %v2443 = vunpack.c.l.b16 %v2352
  %v2444 = vunpack.c.h.b16 %v2352
  %v2445 = vunpack.c.l.b16 %v2353
  %v2446 = vunpack.c.l.b16 %v2354
  %v2447 = vunpack.c.h.b16 %v2354
  %v2448 = vunpack.c.l.b16 %v2355
  %v2449 = vunpack.c.l.b16 %v2356
  %v2450 = vunpack.c.h.b16 %v2356
  %v2451 = vunpack.c.l.b16 %v2357
  %v2452 = vunpack.c.l.b16 %v2358
  %v2453 = vunpack.c.h.b16 %v2358
  %v2454 = vunpack.c.l.b16 %v2359
  %v2455 = vunpack.c.l.b16 %v2360
  %v2456 = vunpack.c.h.b16 %v2360
  %v2457 = vunpack.c.l.b16 %v2361
  %v2458 = vunpack.c.l.b16 %v2362
  %v2459 = vunpack.c.h.b16 %v2362
  %v2460 = vunpack.c.l.b16 %v2363
  %v2461 = vpack.c.b16 %v2416, %v2413
  %v2462 = vpack.c.b16 %v2417, %v2414
  %v2463 = vpack.c.b16 %v2418, %v2415
  %v2464 = vpack.c.b16 %v2422, %v2419
  %v2465 = vpack.c.b16 %v2423, %v2420
  %v2466 = vpack.c.b16 %v2424, %v2421
  %v2467 = vpack.c.b16 %v2428, %v2425
  %v2468 = vpack.c.b16 %v2429, %v2426
  %v2469 = vpack.c.b16 %v2430, %v2427
  %v2470 = vpack.c.b16 %v2434, %v2431
  %v2471 = vpack.c.b16 %v2435, %v2432
  %v2472 = vpack.c.b16 %v2436, %v2433
  %v2473 = vpack.c.b16 %v2440, %v2437
  %v2474 = vpack.c.b16 %v2441, %v2438
  %v2475 = vpack.c.b16 %v2442, %v2439
  %v2476 = vpack.c.b16 %v2446, %v2443
  %v2477 = vpack.c.b16 %v2447, %v2444
  %v2478 = vpack.c.b16 %v2448, %v2445
  %v2479 = vpack.c.b16 %v2452, %v2449
  %v2480 = vpack.c.b16 %v2453, %v2450
  %v2481 = vpack.c.b16 %v2454, %v2451
  %v2482 = vpack.c.b16 %v2458, %v2455
  %v2483 = vpack.c.b16 %v2459, %v2456
  %v2484 = vpack.c.b16 %v2460, %v2457
  %2509 = vmatprep.subr.bf16.mxu0 %v2483
  %2510 = vmatpush1.bf16.msra.mxu0 %v2482
  %2511 = vmatprep.subr.bf16.mxu0 %v2480
  %2512 = vmatpush1.bf16.msra.mxu0 %v2479
  %2513 = vmatprep.subr.bf16.mxu0 %v2477
  %2514 = vmatpush1.bf16.msra.mxu0 %v2476
  %2515 = vmatprep.subr.bf16.mxu0 %v2474
  %2516 = vmatpush1.bf16.msra.mxu0 %v2473
  %2517 = vmatprep.subr.bf16.mxu0 %v2471
  %2518 = vmatpush1.bf16.msra.mxu0 %v2470
  %2519 = vmatprep.subr.bf16.mxu0 %v2468
  %2520 = vmatpush1.bf16.msra.mxu0 %v2467
  %2521 = vmatprep.subr.bf16.mxu0 %v2465
  %2522 = vmatpush1.bf16.msra.mxu0 %v2464
  %2523 = vmatprep.subr.bf16.mxu0 %v2462
  %2524 = vmatpush1.bf16.msra.mxu0 %v2461
  %2525 = vmatprep.subr.bf16.mxu0 0
  %2526 = vmatpush2.bf16.msra.mxu0 0
  %2527 = vmatprep.subr.bf16.mxu0 0
  %2528 = vmatpush2.bf16.msra.mxu0 0
  %2529 = vmatprep.subr.bf16.mxu0 0
  %2530 = vmatpush2.bf16.msra.mxu0 0
  %2531 = vmatprep.subr.bf16.mxu0 0
  %2532 = vmatpush2.bf16.msra.mxu0 0
  %2533 = vmatprep.subr.bf16.mxu0 0
  %2534 = vmatpush2.bf16.msra.mxu0 0
  %2535 = vmatprep.subr.bf16.mxu0 0
  %2536 = vmatpush2.bf16.msra.mxu0 0
  %2537 = vmatprep.subr.bf16.mxu0 0
  %2538 = vmatpush2.bf16.msra.mxu0 0
  %2539 = vmatprep.subr.bf16.mxu0 0
  %2540 = vmatpush2.bf16.msra.mxu0 0
  %2541 = vmatprep.mubr.bf16.mxu0 0
  %2542 = vmatmul.mubr.bf16.gmra.mxu0 %v2331
  %v2543 = vpop.f32.mrf.mxu0
  %v2544 = vadd.f32 %v2369, %v2543
  %v2545 = vpop.f32.mrf.mxu0
  %v2546 = vadd.f32 %v2373, %v2545
  %v2547 = vpop.f32.mrf.mxu0
  %v2548 = vadd.f32 %v2369, %v2547
  %v2549 = vpop.f32.mrf.mxu0
  %v2550 = vadd.f32 %v2373, %v2549
  %2551 = vdwg.mxu0
  %2552 = vmatprep.subr.bf16.mxu0 0
  %2553 = vmatpush1.bf16.msra.mxu0 %v2484
  %2554 = vmatprep.subr.bf16.mxu0 0
  %2555 = vmatpush1.bf16.msra.mxu0 %v2481
  %2556 = vmatprep.subr.bf16.mxu0 0
  %2557 = vmatpush1.bf16.msra.mxu0 %v2478
  %2558 = vmatprep.subr.bf16.mxu0 0
  %2559 = vmatpush1.bf16.msra.mxu0 %v2475
  %2560 = vmatprep.subr.bf16.mxu0 0
  %2561 = vmatpush1.bf16.msra.mxu0 %v2472
  %2562 = vmatprep.subr.bf16.mxu0 0
  %2563 = vmatpush1.bf16.msra.mxu0 %v2469
  %2564 = vmatprep.subr.bf16.mxu0 0
  %2565 = vmatpush1.bf16.msra.mxu0 %v2466
  %2566 = vmatprep.subr.bf16.mxu0 0
  %2567 = vmatpush1.bf16.msra.mxu0 %v2463
  %2568 = vmatprep.subr.bf16.mxu0 0
  %2569 = vmatpush2.bf16.msra.mxu0 0
  %2570 = vmatprep.subr.bf16.mxu0 0
  %2571 = vmatpush2.bf16.msra.mxu0 0
  %2572 = vmatprep.subr.bf16.mxu0 0
  %2573 = vmatpush2.bf16.msra.mxu0 0
  %2574 = vmatprep.subr.bf16.mxu0 0
  %2575 = vmatpush2.bf16.msra.mxu0 0
  %2576 = vmatprep.subr.bf16.mxu0 0
  %2577 = vmatpush2.bf16.msra.mxu0 0
  %2578 = vmatprep.subr.bf16.mxu0 0
  %2579 = vmatpush2.bf16.msra.mxu0 0
  %2580 = vmatprep.subr.bf16.mxu0 0
  %2581 = vmatpush2.bf16.msra.mxu0 0
  %2582 = vmatprep.subr.bf16.mxu0 0
  %2583 = vmatpush2.bf16.msra.mxu0 0
  %2584 = vmatprep.mubr.bf16.mxu0 0
  %2585 = vmatmul.mubr.bf16.gmra.mxu0 %v2331
  %v2586 = vpop.f32.mrf.mxu0
  %v2587 = vadd.f32 %v2377, %v2586
  %v2588 = vpop.f32.mrf.mxu0
  %v2589 = vpop.f32.mrf.mxu0
  %v2590 = vadd.f32 %v2377, %v2589
  %v2591 = vpop.f32.mrf.mxu0
  %2592 = vdwg.mxu0
  %v2593 = vld [vmem:[%s8] sm:$0xff]
  %v2594 = vld [vmem:[%s8 + $0x8] sm:$0xf]
  %v2595 = vld [vmem:[%s8 + $0xc] sm:$0xff]
  %v2596 = vld [vmem:[%s8 + $0x14] sm:$0xf]
  %v2597 = vld [vmem:[%s8 + $0x18] sm:$0xff]
  %v2598 = vld [vmem:[%s8 + $0x20] sm:$0xf]
  %v2599 = vld [vmem:[%s8 + $0x24] sm:$0xff]
  %v2600 = vld [vmem:[%s8 + $0x2c] sm:$0xf]
  %v2601 = vld [vmem:[%s8 + $0x30] sm:$0xff]
  %v2602 = vld [vmem:[%s8 + $0x38] sm:$0xf]
  %v2603 = vld [vmem:[%s8 + $0x3c] sm:$0xff]
  %v2604 = vld [vmem:[%s8 + $0x44] sm:$0xf]
  %v2605 = vld [vmem:[%s8 + $0x48] sm:$0xff]
  %v2606 = vld [vmem:[%s8 + $0x50] sm:$0xf]
  %v2607 = vld [vmem:[%s8 + $0x54] sm:$0xff]
  %v2608 = vld [vmem:[%s8 + $0x5c] sm:$0xf]
  %v2609 = vld [vmem:[%s8 + $0x60] sm:$0xff]
  %v2610 = vld [vmem:[%s8 + $0x68] sm:$0xf]
  %v2611 = vld [vmem:[%s8 + $0x6c] sm:$0xff]
  %v2612 = vld [vmem:[%s8 + $0x74] sm:$0xf]
  %v2613 = vld [vmem:[%s8 + $0x78] sm:$0xff]
  %v2614 = vld [vmem:[%s8 + $0x80] sm:$0xf]
  %v2615 = vld [vmem:[%s8 + $0x84] sm:$0xff]
  %v2616 = vld [vmem:[%s8 + $0x8c] sm:$0xf]
  %v2617 = vld [vmem:[%s8 + $0x90] sm:$0xff]
  %v2618 = vld [vmem:[%s8 + $0x98] sm:$0xf]
  %v2619 = vld [vmem:[%s8 + $0x9c] sm:$0xff]
  %v2620 = vld [vmem:[%s8 + $0xa4] sm:$0xf]
  %v2621 = vld [vmem:[%s8 + $0xa8] sm:$0xff]
  %v2622 = vld [vmem:[%s8 + $0xb0] sm:$0xf]
  %v2623 = vld [vmem:[%s8 + $0xb4] sm:$0xff]
  %v2624 = vld [vmem:[%s8 + $0xbc] sm:$0xf]
  %v2625 = vld [vmem:[%s10] sm:$0x7]
  %v2626 = vld [vmem:[%s11] sm:$0xff]
  %v2627 = vpack.c.bf16 %v2626, %v2626
  %v2629 = vlaneseq
  %v2630 = vshrl.u32 %v2629, 7
  %v2631 = vsub.s32 0, %v2630
  %v2632 = vrot.slane %v2625, %v2631
  %v2633 = vlaneseq
  %v2634 = vshrl.u32 %v2633, 7
  %v2635 = vsub.s32 1, %v2634
  %v2636 = vrot.slane %v2625, %v2635
  %v2637 = vlaneseq
  %v2638 = vshrl.u32 %v2637, 7
  %v2639 = vsub.s32 2, %v2638
  %v2640 = vrot.slane %v2625, %v2639
  %v2676 = vunpack.c.l.b16 %v2593
  %v2677 = vunpack.c.h.b16 %v2593
  %v2678 = vunpack.c.l.b16 %v2594
  %v2679 = vunpack.c.l.b16 %v2595
  %v2680 = vunpack.c.h.b16 %v2595
  %v2681 = vunpack.c.l.b16 %v2596
  %v2682 = vunpack.c.l.b16 %v2597
  %v2683 = vunpack.c.h.b16 %v2597
  %v2684 = vunpack.c.l.b16 %v2598
  %v2685 = vunpack.c.l.b16 %v2599
  %v2686 = vunpack.c.h.b16 %v2599
  %v2687 = vunpack.c.l.b16 %v2600
  %v2688 = vunpack.c.l.b16 %v2601
  %v2689 = vunpack.c.h.b16 %v2601
  %v2690 = vunpack.c.l.b16 %v2602
  %v2691 = vunpack.c.l.b16 %v2603
  %v2692 = vunpack.c.h.b16 %v2603
  %v2693 = vunpack.c.l.b16 %v2604
  %v2694 = vunpack.c.l.b16 %v2605
  %v2695 = vunpack.c.h.b16 %v2605
  %v2696 = vunpack.c.l.b16 %v2606
  %v2697 = vunpack.c.l.b16 %v2607
  %v2698 = vunpack.c.h.b16 %v2607
  %v2699 = vunpack.c.l.b16 %v2608
  %v2700 = vunpack.c.l.b16 %v2609
  %v2701 = vunpack.c.h.b16 %v2609
  %v2702 = vunpack.c.l.b16 %v2610
  %v2703 = vunpack.c.l.b16 %v2611
  %v2704 = vunpack.c.h.b16 %v2611
  %v2705 = vunpack.c.l.b16 %v2612
  %v2706 = vunpack.c.l.b16 %v2613
  %v2707 = vunpack.c.h.b16 %v2613
  %v2708 = vunpack.c.l.b16 %v2614
  %v2709 = vunpack.c.l.b16 %v2615
  %v2710 = vunpack.c.h.b16 %v2615
  %v2711 = vunpack.c.l.b16 %v2616
  %v2712 = vunpack.c.l.b16 %v2617
  %v2713 = vunpack.c.h.b16 %v2617
  %v2714 = vunpack.c.l.b16 %v2618
  %v2715 = vunpack.c.l.b16 %v2619
  %v2716 = vunpack.c.h.b16 %v2619
  %v2717 = vunpack.c.l.b16 %v2620
  %v2718 = vunpack.c.l.b16 %v2621
  %v2719 = vunpack.c.h.b16 %v2621
  %v2720 = vunpack.c.l.b16 %v2622
  %v2721 = vunpack.c.l.b16 %v2623
  %v2722 = vunpack.c.h.b16 %v2623
  %v2723 = vunpack.c.l.b16 %v2624
  %v2724 = vpack.c.b16 %v2679, %v2676
  %v2725 = vpack.c.b16 %v2680, %v2677
  %v2726 = vpack.c.b16 %v2681, %v2678
  %v2727 = vpack.c.b16 %v2685, %v2682
  %v2728 = vpack.c.b16 %v2686, %v2683
  %v2729 = vpack.c.b16 %v2687, %v2684
  %v2730 = vpack.c.b16 %v2691, %v2688
  %v2731 = vpack.c.b16 %v2692, %v2689
  %v2732 = vpack.c.b16 %v2693, %v2690
  %v2733 = vpack.c.b16 %v2697, %v2694
  %v2734 = vpack.c.b16 %v2698, %v2695
  %v2735 = vpack.c.b16 %v2699, %v2696
  %v2736 = vpack.c.b16 %v2703, %v2700
  %v2737 = vpack.c.b16 %v2704, %v2701
  %v2738 = vpack.c.b16 %v2705, %v2702
  %v2739 = vpack.c.b16 %v2709, %v2706
  %v2740 = vpack.c.b16 %v2710, %v2707
  %v2741 = vpack.c.b16 %v2711, %v2708
  %v2742 = vpack.c.b16 %v2715, %v2712
  %v2743 = vpack.c.b16 %v2716, %v2713
  %v2744 = vpack.c.b16 %v2717, %v2714
  %v2745 = vpack.c.b16 %v2721, %v2718
  %v2746 = vpack.c.b16 %v2722, %v2719
  %v2747 = vpack.c.b16 %v2723, %v2720
  %2772 = vmatprep.subr.bf16.mxu0 %v2746
  %2773 = vmatpush1.bf16.msra.mxu0 %v2745
  %2774 = vmatprep.subr.bf16.mxu0 %v2743
  %2775 = vmatpush1.bf16.msra.mxu0 %v2742
  %2776 = vmatprep.subr.bf16.mxu0 %v2740
  %2777 = vmatpush1.bf16.msra.mxu0 %v2739
  %2778 = vmatprep.subr.bf16.mxu0 %v2737
  %2779 = vmatpush1.bf16.msra.mxu0 %v2736
  %2780 = vmatprep.subr.bf16.mxu0 %v2734
  %2781 = vmatpush1.bf16.msra.mxu0 %v2733
  %2782 = vmatprep.subr.bf16.mxu0 %v2731
  %2783 = vmatpush1.bf16.msra.mxu0 %v2730
  %2784 = vmatprep.subr.bf16.mxu0 %v2728
  %2785 = vmatpush1.bf16.msra.mxu0 %v2727
  %2786 = vmatprep.subr.bf16.mxu0 %v2725
  %2787 = vmatpush1.bf16.msra.mxu0 %v2724
  %2788 = vmatprep.subr.bf16.mxu0 0
  %2789 = vmatpush2.bf16.msra.mxu0 0
  %2790 = vmatprep.subr.bf16.mxu0 0
  %2791 = vmatpush2.bf16.msra.mxu0 0
  %2792 = vmatprep.subr.bf16.mxu0 0
  %2793 = vmatpush2.bf16.msra.mxu0 0
  %2794 = vmatprep.subr.bf16.mxu0 0
  %2795 = vmatpush2.bf16.msra.mxu0 0
  %2796 = vmatprep.subr.bf16.mxu0 0
  %2797 = vmatpush2.bf16.msra.mxu0 0
  %2798 = vmatprep.subr.bf16.mxu0 0
  %2799 = vmatpush2.bf16.msra.mxu0 0
  %2800 = vmatprep.subr.bf16.mxu0 0
  %2801 = vmatpush2.bf16.msra.mxu0 0
  %2802 = vmatprep.subr.bf16.mxu0 0
  %2803 = vmatpush2.bf16.msra.mxu0 0
  %2804 = vmatprep.mubr.bf16.mxu0 0
  %2805 = vmatmul.mubr.bf16.gmra.mxu0 %v2627
  %v2806 = vpop.f32.mrf.mxu0
  %v2807 = vadd.f32 %v2632, %v2806
  %v2808 = vpop.f32.mrf.mxu0
  %v2809 = vadd.f32 %v2636, %v2808
  %v2810 = vpop.f32.mrf.mxu0
  %v2811 = vpop.f32.mrf.mxu0
  %2812 = vdwg.mxu0
  %2813 = vmatprep.subr.bf16.mxu0 0
  %2814 = vmatpush1.bf16.msra.mxu0 %v2747
  %2815 = vmatprep.subr.bf16.mxu0 0
  %2816 = vmatpush1.bf16.msra.mxu0 %v2744
  %2817 = vmatprep.subr.bf16.mxu0 0
  %2818 = vmatpush1.bf16.msra.mxu0 %v2741
  %2819 = vmatprep.subr.bf16.mxu0 0
  %2820 = vmatpush1.bf16.msra.mxu0 %v2738
  %2821 = vmatprep.subr.bf16.mxu0 0
  %2822 = vmatpush1.bf16.msra.mxu0 %v2735
  %2823 = vmatprep.subr.bf16.mxu0 0
  %2824 = vmatpush1.bf16.msra.mxu0 %v2732
  %2825 = vmatprep.subr.bf16.mxu0 0
  %2826 = vmatpush1.bf16.msra.mxu0 %v2729
  %2827 = vmatprep.subr.bf16.mxu0 0
  %2828 = vmatpush1.bf16.msra.mxu0 %v2726
  %2829 = vmatprep.subr.bf16.mxu0 0
  %2830 = vmatpush2.bf16.msra.mxu0 0
  %2831 = vmatprep.subr.bf16.mxu0 0
  %2832 = vmatpush2.bf16.msra.mxu0 0
  %2833 = vmatprep.subr.bf16.mxu0 0
  %2834 = vmatpush2.bf16.msra.mxu0 0
  %2835 = vmatprep.subr.bf16.mxu0 0
  %2836 = vmatpush2.bf16.msra.mxu0 0
  %2837 = vmatprep.subr.bf16.mxu0 0
  %2838 = vmatpush2.bf16.msra.mxu0 0
  %2839 = vmatprep.subr.bf16.mxu0 0
  %2840 = vmatpush2.bf16.msra.mxu0 0
  %2841 = vmatprep.subr.bf16.mxu0 0
  %2842 = vmatpush2.bf16.msra.mxu0 0
  %2843 = vmatprep.subr.bf16.mxu0 0
  %2844 = vmatpush2.bf16.msra.mxu0 0
  %2845 = vmatprep.mubr.bf16.mxu0 0
  %2846 = vmatmul.mubr.bf16.gmra.mxu0 %v2627
  %v2847 = vpop.f32.mrf.mxu0
  %v2848 = vadd.f32 %v2640, %v2847
  %v2849 = vpop.f32.mrf.mxu0
  %v2850 = vpop.f32.mrf.mxu0
  %v2851 = vpop.f32.mrf.mxu0
  %2852 = vdwg.mxu0
  %v2853 = vadd.f32 %v2544, %v2807
  %v2854 = vxor.u32 %v2853, 2147483648
  %v2855 = vmul.f32 %v2854, 1.442695
  %v2856 = vpow.pop %v2855
  %v2857 = vadd.f32 %v2856, 1.0
  %v2858 = vrcp.pop %v2857
  %v2859 = vmul.f32 1.0, %v2858
  %v2860 = vadd.f32 %v2546, %v2809
  %v2861 = vxor.u32 %v2860, 2147483648
  %v2862 = vmul.f32 %v2861, 1.442695
  %v2863 = vpow.pop %v2862
  %v2864 = vadd.f32 %v2863, 1.0
  %v2865 = vrcp.pop %v2864
  %v2866 = vmul.f32 1.0, %v2865
  %v2867 = vmul.f32 %v2859, %v2848
  %v2868 = vadd.f32 %v2587, %v2867
  %v2869 = vtanh.pop %v2868
  %v2870 = vsub.f32 1.0, %v2866
  %v2871 = vmul.f32 %v2870, %v2869
  %v2872 = vmul.f32 %v2866, %v2626
  %v2873 = vadd.f32 %v2871, %v2872
  %v2874 = vld [vmem:[%s12] sm:$0xff]
  %v2875 = vmul.f32 %v2873, %v2874
  %v2876 = vpack.c.bf16 %v2875, %v2875
  %2877 = vmatprep.subr.bf16.mxu0 %v2746
  %2878 = vmatpush1.bf16.msra.mxu0 %v2745
  %2879 = vmatprep.subr.bf16.mxu0 %v2743
  %2880 = vmatpush1.bf16.msra.mxu0 %v2742
  %2881 = vmatprep.subr.bf16.mxu0 %v2740
  %2882 = vmatpush1.bf16.msra.mxu0 %v2739
  %2883 = vmatprep.subr.bf16.mxu0 %v2737
  %2884 = vmatpush1.bf16.msra.mxu0 %v2736
  %2885 = vmatprep.subr.bf16.mxu0 %v2734
  %2886 = vmatpush1.bf16.msra.mxu0 %v2733
  %2887 = vmatprep.subr.bf16.mxu0 %v2731
  %2888 = vmatpush1.bf16.msra.mxu0 %v2730
  %2889 = vmatprep.subr.bf16.mxu0 %v2728
  %2890 = vmatpush1.bf16.msra.mxu0 %v2727
  %2891 = vmatprep.subr.bf16.mxu0 %v2725
  %2892 = vmatpush1.bf16.msra.mxu0 %v2724
  %2893 = vmatprep.subr.bf16.mxu0 0
  %2894 = vmatpush2.bf16.msra.mxu0 0
  %2895 = vmatprep.subr.bf16.mxu0 0
  %2896 = vmatpush2.bf16.msra.mxu0 0
  %2897 = vmatprep.subr.bf16.mxu0 0
  %2898 = vmatpush2.bf16.msra.mxu0 0
  %2899 = vmatprep.subr.bf16.mxu0 0
  %2900 = vmatpush2.bf16.msra.mxu0 0
  %2901 = vmatprep.subr.bf16.mxu0 0
  %2902 = vmatpush2.bf16.msra.mxu0 0
  %2903 = vmatprep.subr.bf16.mxu0 0
  %2904 = vmatpush2.bf16.msra.mxu0 0
  %2905 = vmatprep.subr.bf16.mxu0 0
  %2906 = vmatpush2.bf16.msra.mxu0 0
  %2907 = vmatprep.subr.bf16.mxu0 0
  %2908 = vmatpush2.bf16.msra.mxu0 0
  %2909 = vmatprep.mubr.bf16.mxu0 0
  %2910 = vmatmul.mubr.bf16.gmra.mxu0 %v2876
  %v2911 = vpop.f32.mrf.mxu0
  %v2912 = vadd.f32 %v2632, %v2911
  %v2913 = vpop.f32.mrf.mxu0
  %v2914 = vadd.f32 %v2636, %v2913
  %v2915 = vpop.f32.mrf.mxu0
  %v2916 = vpop.f32.mrf.mxu0
  %2917 = vdwg.mxu0
  %2918 = vmatprep.subr.bf16.mxu0 0
  %2919 = vmatpush1.bf16.msra.mxu0 %v2747
  %2920 = vmatprep.subr.bf16.mxu0 0
  %2921 = vmatpush1.bf16.msra.mxu0 %v2744
  %2922 = vmatprep.subr.bf16.mxu0 0
  %2923 = vmatpush1.bf16.msra.mxu0 %v2741
  %2924 = vmatprep.subr.bf16.mxu0 0
  %2925 = vmatpush1.bf16.msra.mxu0 %v2738
  %2926 = vmatprep.subr.bf16.mxu0 0
  %2927 = vmatpush1.bf16.msra.mxu0 %v2735
  %2928 = vmatprep.subr.bf16.mxu0 0
  %2929 = vmatpush1.bf16.msra.mxu0 %v2732
  %2930 = vmatprep.subr.bf16.mxu0 0
  %2931 = vmatpush1.bf16.msra.mxu0 %v2729
  %2932 = vmatprep.subr.bf16.mxu0 0
  %2933 = vmatpush1.bf16.msra.mxu0 %v2726
  %2934 = vmatprep.subr.bf16.mxu0 0
  %2935 = vmatpush2.bf16.msra.mxu0 0
  %2936 = vmatprep.subr.bf16.mxu0 0
  %2937 = vmatpush2.bf16.msra.mxu0 0
  %2938 = vmatprep.subr.bf16.mxu0 0
  %2939 = vmatpush2.bf16.msra.mxu0 0
  %2940 = vmatprep.subr.bf16.mxu0 0
  %2941 = vmatpush2.bf16.msra.mxu0 0
  %2942 = vmatprep.subr.bf16.mxu0 0
  %2943 = vmatpush2.bf16.msra.mxu0 0
  %2944 = vmatprep.subr.bf16.mxu0 0
  %2945 = vmatpush2.bf16.msra.mxu0 0
  %2946 = vmatprep.subr.bf16.mxu0 0
  %2947 = vmatpush2.bf16.msra.mxu0 0
  %2948 = vmatprep.subr.bf16.mxu0 0
  %2949 = vmatpush2.bf16.msra.mxu0 0
  %2950 = vmatprep.mubr.bf16.mxu0 0
  %2951 = vmatmul.mubr.bf16.gmra.mxu0 %v2876
  %v2952 = vpop.f32.mrf.mxu0
  %v2953 = vadd.f32 %v2640, %v2952
  %v2954 = vpop.f32.mrf.mxu0
  %v2955 = vpop.f32.mrf.mxu0
  %v2956 = vpop.f32.mrf.mxu0
  %2957 = vdwg.mxu0
  %v2958 = vadd.f32 %v2548, %v2912
  %v2959 = vxor.u32 %v2958, 2147483648
  %v2960 = vmul.f32 %v2959, 1.442695
  %v2961 = vpow.pop %v2960
  %v2962 = vadd.f32 %v2961, 1.0
  %v2963 = vrcp.pop %v2962
  %v2964 = vmul.f32 1.0, %v2963
  %v2965 = vadd.f32 %v2550, %v2914
  %v2966 = vxor.u32 %v2965, 2147483648
  %v2967 = vmul.f32 %v2966, 1.442695
  %v2968 = vpow.pop %v2967
  %v2969 = vadd.f32 %v2968, 1.0
  %v2970 = vrcp.pop %v2969
  %v2971 = vmul.f32 1.0, %v2970
  %v2972 = vmul.f32 %v2964, %v2953
  %v2973 = vadd.f32 %v2590, %v2972
  %v2974 = vtanh.pop %v2973
  %v2975 = vsub.f32 1.0, %v2971
  %v2976 = vmul.f32 %v2975, %v2974
  %v2977 = vmul.f32 %v2971, %v2875
  %v2978 = vadd.f32 %v2976, %v2977
  %v2979 = vpack.c.bf16 %v2873, %v2873
  %v2980 = vld [vmem:[%s13] sm:$0xf]
  %v2981 = vld [vmem:[%s13 + $0x4] sm:$0xf]
  %v2982 = vld [vmem:[%s13 + $0x8] sm:$0xf]
  %v2983 = vld [vmem:[%s13 + $0xc] sm:$0xf]
  %v2984 = vld [vmem:[%s13 + $0x10] sm:$0xf]
  %v2985 = vld [vmem:[%s13 + $0x14] sm:$0xf]
  %v2986 = vld [vmem:[%s13 + $0x18] sm:$0xf]
  %v2987 = vld [vmem:[%s13 + $0x1c] sm:$0xf]
  %v2988 = vld [vmem:[%s13 + $0x20] sm:$0xf]
  %v2989 = vld [vmem:[%s13 + $0x24] sm:$0xf]
  %v2990 = vld [vmem:[%s13 + $0x28] sm:$0xf]
  %v2991 = vld [vmem:[%s13 + $0x2c] sm:$0xf]
  %v2992 = vld [vmem:[%s13 + $0x30] sm:$0xf]
  %v2993 = vld [vmem:[%s13 + $0x34] sm:$0xf]
  %v2994 = vld [vmem:[%s13 + $0x38] sm:$0xf]
  %v2995 = vld [vmem:[%s13 + $0x3c] sm:$0xf]
  %v2996 = vpack.c.bf16 %v2978, %v2978
  %v2997 = vld [vmem:[%s14] sm:$0xf]
  %v2998 = vld [vmem:[%s14 + $0x4] sm:$0xf]
  %v2999 = vld [vmem:[%s14 + $0x8] sm:$0xf]
  %v3000 = vld [vmem:[%s14 + $0xc] sm:$0xf]
  %v3001 = vld [vmem:[%s14 + $0x10] sm:$0xf]
  %v3002 = vld [vmem:[%s14 + $0x14] sm:$0xf]
  %v3003 = vld [vmem:[%s14 + $0x18] sm:$0xf]
  %v3004 = vld [vmem:[%s14 + $0x1c] sm:$0xf]
  %v3005 = vld [vmem:[%s14 + $0x20] sm:$0xf]
  %v3006 = vld [vmem:[%s14 + $0x24] sm:$0xf]
  %v3007 = vld [vmem:[%s14 + $0x28] sm:$0xf]
  %v3008 = vld [vmem:[%s14 + $0x2c] sm:$0xf]
  %v3009 = vld [vmem:[%s14 + $0x30] sm:$0xf]
  %v3010 = vld [vmem:[%s14 + $0x34] sm:$0xf]
  %v3011 = vld [vmem:[%s14 + $0x38] sm:$0xf]
  %v3012 = vld [vmem:[%s14 + $0x3c] sm:$0xf]
  %v3029 = vunpack.c.l.b16 %v2997
  %v3030 = vunpack.c.l.b16 %v2998
  %v3031 = vunpack.c.l.b16 %v2999
  %v3032 = vunpack.c.l.b16 %v3000
  %v3033 = vunpack.c.l.b16 %v3001
  %v3034 = vunpack.c.l.b16 %v3002
  %v3035 = vunpack.c.l.b16 %v3003
  %v3036 = vunpack.c.l.b16 %v3004
  %v3037 = vunpack.c.l.b16 %v3005
  %v3038 = vunpack.c.l.b16 %v3006
  %v3039 = vunpack.c.l.b16 %v3007
  %v3040 = vunpack.c.l.b16 %v3008
  %v3041 = vunpack.c.l.b16 %v3009
  %v3042 = vunpack.c.l.b16 %v3010
  %v3043 = vunpack.c.l.b16 %v3011
  %v3044 = vunpack.c.l.b16 %v3012
  %v3045 = vpack.c.b16 %v3030, %v3029
  %v3046 = vpack.c.b16 %v3032, %v3031
  %v3047 = vpack.c.b16 %v3034, %v3033
  %v3048 = vpack.c.b16 %v3036, %v3035
  %v3049 = vpack.c.b16 %v3038, %v3037
  %v3050 = vpack.c.b16 %v3040, %v3039
  %v3051 = vpack.c.b16 %v3042, %v3041
  %v3052 = vpack.c.b16 %v3044, %v3043
  %3061 = vmatprep.subr.bf16.mxu0 0
  %3062 = vmatpush1.bf16.msra.mxu0 %v3052
  %3063 = vmatprep.subr.bf16.mxu0 0
  %3064 = vmatpush1.bf16.msra.mxu0 %v3051
  %3065 = vmatprep.subr.bf16.mxu0 0
  %3066 = vmatpush1.bf16.msra.mxu0 %v3050
  %3067 = vmatprep.subr.bf16.mxu0 0
  %3068 = vmatpush1.bf16.msra.mxu0 %v3049
  %3069 = vmatprep.subr.bf16.mxu0 0
  %3070 = vmatpush1.bf16.msra.mxu0 %v3048
  %3071 = vmatprep.subr.bf16.mxu0 0
  %3072 = vmatpush1.bf16.msra.mxu0 %v3047
  %3073 = vmatprep.subr.bf16.mxu0 0
  %3074 = vmatpush1.bf16.msra.mxu0 %v3046
  %3075 = vmatprep.subr.bf16.mxu0 0
  %3076 = vmatpush1.bf16.msra.mxu0 %v3045
  %3077 = vmatprep.subr.bf16.mxu0 0
  %3078 = vmatpush2.bf16.msra.mxu0 0
  %3079 = vmatprep.subr.bf16.mxu0 0
  %3080 = vmatpush2.bf16.msra.mxu0 0
  %3081 = vmatprep.subr.bf16.mxu0 0
  %3082 = vmatpush2.bf16.msra.mxu0 0
  %3083 = vmatprep.subr.bf16.mxu0 0
  %3084 = vmatpush2.bf16.msra.mxu0 0
  %3085 = vmatprep.subr.bf16.mxu0 0
  %3086 = vmatpush2.bf16.msra.mxu0 0
  %3087 = vmatprep.subr.bf16.mxu0 0
  %3088 = vmatpush2.bf16.msra.mxu0 0
  %3089 = vmatprep.subr.bf16.mxu0 0
  %3090 = vmatpush2.bf16.msra.mxu0 0
  %3091 = vmatprep.subr.bf16.mxu0 0
  %3092 = vmatpush2.bf16.msra.mxu0 0
  %3093 = vmatprep.mubr.bf16.mxu0 0
  %3094 = vmatmul.mubr.bf16.gmra.mxu0 %v2996
  %v3095 = vpop.f32.mrf.mxu0
  %v3096 = vadd.f32 0.0, %v3095
  %v3097 = vpop.f32.mrf.mxu0
  %v3098 = vpop.f32.mrf.mxu0
  %v3099 = vpop.f32.mrf.mxu0
  %3100 = vdwg.mxu0
  %v3117 = vunpack.c.l.b16 %v2980
  %v3118 = vunpack.c.l.b16 %v2981
  %v3119 = vunpack.c.l.b16 %v2982
  %v3120 = vunpack.c.l.b16 %v2983
  %v3121 = vunpack.c.l.b16 %v2984
  %v3122 = vunpack.c.l.b16 %v2985
  %v3123 = vunpack.c.l.b16 %v2986
  %v3124 = vunpack.c.l.b16 %v2987
  %v3125 = vunpack.c.l.b16 %v2988
  %v3126 = vunpack.c.l.b16 %v2989
  %v3127 = vunpack.c.l.b16 %v2990
  %v3128 = vunpack.c.l.b16 %v2991
  %v3129 = vunpack.c.l.b16 %v2992
  %v3130 = vunpack.c.l.b16 %v2993
  %v3131 = vunpack.c.l.b16 %v2994
  %v3132 = vunpack.c.l.b16 %v2995
  %v3133 = vpack.c.b16 %v3118, %v3117
  %v3134 = vpack.c.b16 %v3120, %v3119
  %v3135 = vpack.c.b16 %v3122, %v3121
  %v3136 = vpack.c.b16 %v3124, %v3123
  %v3137 = vpack.c.b16 %v3126, %v3125
  %v3138 = vpack.c.b16 %v3128, %v3127
  %v3139 = vpack.c.b16 %v3130, %v3129
  %v3140 = vpack.c.b16 %v3132, %v3131
  %3149 = vmatprep.subr.bf16.mxu0 0
  %3150 = vmatpush1.bf16.msra.mxu0 %v3140
  %3151 = vmatprep.subr.bf16.mxu0 0
  %3152 = vmatpush1.bf16.msra.mxu0 %v3139
  %3153 = vmatprep.subr.bf16.mxu0 0
  %3154 = vmatpush1.bf16.msra.mxu0 %v3138
  %3155 = vmatprep.subr.bf16.mxu0 0
  %3156 = vmatpush1.bf16.msra.mxu0 %v3137
  %3157 = vmatprep.subr.bf16.mxu0 0
  %3158 = vmatpush1.bf16.msra.mxu0 %v3136
  %3159 = vmatprep.subr.bf16.mxu0 0
  %3160 = vmatpush1.bf16.msra.mxu0 %v3135
  %3161 = vmatprep.subr.bf16.mxu0 0
  %3162 = vmatpush1.bf16.msra.mxu0 %v3134
  %3163 = vmatprep.subr.bf16.mxu0 0
  %3164 = vmatpush1.bf16.msra.mxu0 %v3133
  %3165 = vmatprep.subr.bf16.mxu0 0
  %3166 = vmatpush2.bf16.msra.mxu0 0
  %3167 = vmatprep.subr.bf16.mxu0 0
  %3168 = vmatpush2.bf16.msra.mxu0 0
  %3169 = vmatprep.subr.bf16.mxu0 0
  %3170 = vmatpush2.bf16.msra.mxu0 0
  %3171 = vmatprep.subr.bf16.mxu0 0
  %3172 = vmatpush2.bf16.msra.mxu0 0
  %3173 = vmatprep.subr.bf16.mxu0 0
  %3174 = vmatpush2.bf16.msra.mxu0 0
  %3175 = vmatprep.subr.bf16.mxu0 0
  %3176 = vmatpush2.bf16.msra.mxu0 0
  %3177 = vmatprep.subr.bf16.mxu0 0
  %3178 = vmatpush2.bf16.msra.mxu0 0
  %3179 = vmatprep.subr.bf16.mxu0 0
  %3180 = vmatpush2.bf16.msra.mxu0 0
  %3181 = vmatprep.mubr.bf16.mxu0 0
  %3182 = vmatmul.mubr.bf16.gmra.mxu0 %v2979
  %v3183 = vpop.f32.mrf.mxu0
  %v3184 = vadd.f32 %v3096, %v3183
  %v3185 = vpop.f32.mrf.mxu0
  %v3186 = vpop.f32.mrf.mxu0
  %v3187 = vpop.f32.mrf.mxu0
  %3188 = vdwg.mxu0
  %v3189 = vld [vmem:[%s15] sm:$0x1]
  %v3191 = vlaneseq
  %v3192 = vshrl.u32 %v3191, 7
  %v3193 = vsub.s32 0, %v3192
  %v3194 = vrot.slane %v3189, %v3193
  %v3196 = vadd.f32 %v3184, %v3194
  %3197 = vst [vmem:[%s16] sm:$0xff] %v3196
  %3198 = vst [vmem:[%s16 + $0x8] sm:$0xff] %v2873
  %3199 = vst [vmem:[%s16 + $0x10] sm:$0xff] %v2978
  // Predicated region
  $region66: #{inverse_transition_forward.1} parent=0 // pred_check
    _
  $region67: #{inverse_transition_forward.1} parent=0 // pred_check_branch
    %3201 = sbr.rel (0) target = $region69
  $region68: #{inverse_transition_forward.1} parent=0 // pred_region
    _
  $region69: #{inverse_transition_forward.1} parent=0 // pred_fallthru
    _
  // Predicated region
  $region70: #{inverse_transition_forward.1} parent=0 // pred_check
    _
  $region71: #{inverse_transition_forward.1} parent=0 // pred_check_branch
    %3203 = sbr.rel (0) target = $region73
  $region72: #{inverse_transition_forward.1} parent=0 // pred_region
    _
  $region73: #{inverse_transition_forward.1} parent=0 // pred_fallthru
    _

</llo_original>
